<compile_context>
chip_gen: v5e
topology: v5e:2x2
jax: 0.10.0
libtpu: 0.0.40
codegen_flags: <defaults>
</compile_context>

<pallas_src>
import functools
import math

import jax
import jax.numpy as jnp
from jax.experimental import pallas as pl
from jax.experimental.pallas import tpu as pltpu


# ----------------------------- kernel ---------------------------------------


def _set2set_kernel(n_iters, n_layers, hp, n_graphs_p, hoist_xt, *refs):
    """grid = (n_iters, n_node_blocks); all Set2Set state lives in VMEM scratch.

    refs = (batch_ref, x_ref, [xT_ref], W_0, b_0, ..., W_{L-1}, b_{L-1},
            out_ref, q_s, r_s, h_s, c_s, m_s, l_s)
    W_0: (3Hp, 4Hp) = stacked [Wq; Wr; Whh]; W_l (l>0): (2Hp, 4Hp) = [Wih; Whh].
    Gate order (i, f, g, o), each gate block lane-padded to Hp.
    """
    n_prm = 2 * n_layers
    idx = 0
    batch_ref = refs[idx]; idx += 1
    x_ref = refs[idx]; idx += 1
    xt_ref = None
    if hoist_xt:
        xt_ref = refs[idx]; idx += 1
    prm = refs[idx:idx + n_prm]; idx += n_prm
    out_ref = refs[idx]; idx += 1
    q_s, r_s, h_s, c_s, m_s, l_s = refs[idx:]

    t = pl.program_id(0)          # Set2Set iteration
    j = pl.program_id(1)          # node block
    nb = pl.num_programs(1)

    @pl.when(jnp.logical_and(t == 0, j == 0))
    def _init_state():
        q_s[...] = jnp.zeros(q_s.shape, jnp.float32)
        r_s[...] = jnp.zeros(r_s.shape, jnp.float32)
        h_s[...] = jnp.zeros(h_s.shape, jnp.float32)
        c_s[...] = jnp.zeros(c_s.shape, jnp.float32)

    @pl.when(j == 0)
    def _lstm_step_and_reset():
        # One multi-layer LSTM step with input q_star = [q_prev, r_prev].
        # One fused MXU matmul per layer (weights are host-stacked).
        q_prev = q_s[...]
        r_prev = r_s[...]
        inp = None
        for l in range(n_layers):
            h_l = h_s[:, l * hp:(l + 1) * hp]
            c_l = c_s[:, l * hp:(l + 1) * hp]
            w = prm[2 * l][...]
            b = prm[2 * l + 1][...]
            if l == 0:
                act = jnp.concatenate([q_prev, r_prev, h_l], axis=1)
            else:
                act = jnp.concatenate([inp, h_l], axis=1)
            gates = jnp.dot(act, w, preferred_element_type=jnp.float32) + b
            i_g = jax.nn.sigmoid(gates[:, 0 * hp:1 * hp])
            f_g = jax.nn.sigmoid(gates[:, 1 * hp:2 * hp])
            g_g = jnp.tanh(gates[:, 2 * hp:3 * hp])
            o_g = jax.nn.sigmoid(gates[:, 3 * hp:4 * hp])
            c_new = f_g * c_l + i_g * g_g
            h_new = o_g * jnp.tanh(c_new)
            c_s[:, l * hp:(l + 1) * hp] = c_new
            h_s[:, l * hp:(l + 1) * hp] = h_new
            inp = h_new
        q_s[...] = inp                                        # top-layer h -> q
        # reset online-softmax state for this Set2Set iteration
        r_s[...] = jnp.zeros(r_s.shape, jnp.float32)          # weighted acc
        m_s[...] = jnp.full(m_s.shape, -1e30, jnp.float32)    # running max
        l_s[...] = jnp.zeros(l_s.shape, jnp.float32)          # running exp-sum

    # ---- online segment softmax over this node block, (B, N_blk) layout ----
    x_blk = x_ref[...]                                        # (N_blk, Hp)
    bid = batch_ref[...]                                      # (1, N_blk) int32
    q = q_s[...]                                              # (B, Hp)
    nblk = bid.shape[1]

    row_ids = jax.lax.broadcasted_iota(jnp.int32, (n_graphs_p, nblk), 0)
    mask = row_ids == bid                                     # (B, N_blk) bool

    # scores[b, n] = <q_b, x_n>  (only the entry with b == batch[n] is used)
    if hoist_xt:
        scores = jnp.dot(q, xt_ref[...], preferred_element_type=jnp.float32)
    else:
        scores = jax.lax.dot_general(q, x_blk, (((1,), (1,)), ((), ())),
                                     preferred_element_type=jnp.float32)
    masked = jnp.where(mask, scores, jnp.float32(-1e30))

    m_prev = m_s[...]                                         # (B, 1)
    m_new = jnp.maximum(m_prev, jnp.max(masked, axis=-1, keepdims=True))
    alpha = jnp.exp(m_prev - m_new)
    p = jnp.where(mask, jnp.exp(masked - m_new), jnp.float32(0.0))
    l_s[...] = alpha * l_s[...] + jnp.sum(p, axis=-1, keepdims=True)
    r_s[...] = alpha * r_s[...] + jnp.dot(p, x_blk,
                                          preferred_element_type=jnp.float32)
    m_s[...] = m_new

    @pl.when(j == nb - 1)
    def _finalize_r():
        l_val = l_s[...]
        denom = jnp.where(l_val > 0.0, l_val, jnp.float32(1.0))  # empty graphs
        r_s[...] = r_s[...] * pl.reciprocal(denom, approx=True)  # r = acc / sum

    @pl.when(jnp.logical_and(t == n_iters - 1, j == nb - 1))
    def _write_out():
        out_ref[:, 0:hp] = q_s[...]
        out_ref[:, hp:2 * hp] = r_s[...]


# ------------------------- host-side helpers --------------------------------


def _pad_w_t(w, H, Hp):
    """(4H, d) PyTorch-layout weight -> transposed, gate-padded (Hp, 4Hp)."""
    d = w.shape[1]
    out = jnp.zeros((Hp, 4 * Hp), jnp.float32)
    for g in range(4):
        out = out.at[:d, g * Hp:g * Hp + H].set(w[g * H:(g + 1) * H, :].T)
    return out


def _pad_b(b, H, Hp):
    """(4H,) bias -> gate-padded (1, 4Hp)."""
    out = jnp.zeros((1, 4 * Hp), jnp.float32)
    for g in range(4):
        out = out.at[0, g * Hp:g * Hp + H].set(b[g * H:(g + 1) * H])
    return out


def _vmem_physical_bytes():
    """Per-generation physical VMEM (fallback: conservative 64 MiB = v7x)."""
    try:
        info = pltpu.get_tpu_info()
        for attr in ("vmem_capacity_bytes", "vmem_bytes"):
            v = getattr(info, attr, None)
            if v:
                return int(v)
    except Exception:
        pass
    return 64 << 20


class Set2SetReadOutPallas:
    """JAX/Pallas port of Set2SetReadOutPYG (field='node_feat')."""

    def __init__(self, in_feats, n_iters, n_layers, field="node_feat",
                 seed=0, block_n=2048):
        if field != "node_feat":
            raise ValueError("Field must be 'node_feat'")
        self.in_feats = in_feats
        self.n_iters = n_iters
        self.n_layers = n_layers
        self.block_n = max(128, (block_n // 128) * 128)   # streaming block rows

        H = in_feats
        Hp = -(-H // 128) * 128           # feature axis padded to 128 lanes
        self.Hp = Hp

        bound = 1.0 / math.sqrt(H)        # PyTorch nn.LSTM default init
        key = jax.random.PRNGKey(seed)
        self.raw_params = []              # per layer: (w_ih, w_hh, b_ih, b_hh)
        for l in range(n_layers):
            in_l = 2 * H if l == 0 else H
            key, k1, k2, k3, k4 = jax.random.split(key, 5)
            w_ih = jax.random.uniform(k1, (4 * H, in_l), jnp.float32, -bound, bound)
            w_hh = jax.random.uniform(k2, (4 * H, H), jnp.float32, -bound, bound)
            b_ih = jax.random.uniform(k3, (4 * H,), jnp.float32, -bound, bound)
            b_hh = jax.random.uniform(k4, (4 * H,), jnp.float32, -bound, bound)
            self.raw_params.append((w_ih, w_hh, b_ih, b_hh))

        # Fused kernel parameters: per layer one stacked, transposed,
        # gate-padded weight matrix and one pre-summed bias row.
        #   layer 0 : W = [Wq; Wr; Whh]  (3Hp, 4Hp)    (avoids the q_star concat
        #             being a separate matmul: one matmul per layer)
        #   layer l : W = [Wih; Whh]     (2Hp, 4Hp)
        flat = []
        for l, (w_ih, w_hh, b_ih, b_hh) in enumerate(self.raw_params):
            b = _pad_b(b_ih + b_hh, H, Hp)
            if l == 0:
                w = jnp.concatenate([_pad_w_t(w_ih[:, :H], H, Hp),   # q -> gates
                                     _pad_w_t(w_ih[:, H:], H, Hp),   # r -> gates
                                     _pad_w_t(w_hh, H, Hp)], axis=0)
            else:
                w = jnp.concatenate([_pad_w_t(w_ih, H, Hp),
                                     _pad_w_t(w_hh, H, Hp)], axis=0)
            flat += [w, b]
        self.flat_params = flat

    def __call__(self, node_feat, batch, num_graphs):
        H, Hp = self.in_feats, self.Hp
        L = self.n_layers
        N = node_feat.shape[0]
        B = int(num_graphs)
        Bp = -(-B // 8) * 8               # sublane-full (B, .) tiles / vst

        f32 = 4
        n_pad128 = -(-N // 128) * 128

        # ---- VMEM budget & tiling mode (resident x vs streamed blocks) ----
        param_bytes = sum(int(p.size) for p in self.flat_params) * f32
        state_bytes = f32 * (2 * Bp * Hp + 2 * Bp * L * Hp + 2 * Bp)
        out_bytes = 2 * f32 * Bp * 2 * Hp                 # allow 2 out buffers
        margin = 2 << 20
        fixed = param_bytes + state_bytes + out_bytes + margin

        x_bytes = f32 * n_pad128 * Hp
        interm_res = 4 * f32 * Bp * n_pad128              # scores/mask/p temps

        phys = _vmem_physical_bytes()
        budget = int(phys * 0.70)

        if fixed + 2 * x_bytes + interm_res <= budget:
            resident, hoist = True, True                  # x and x^T resident
        elif fixed + x_bytes + interm_res <= budget:
            resident, hoist = True, False                 # x resident only
        else:
            resident, hoist = False, False                # stream node blocks

        if resident:
            n_blk, n_pad, n_blocks = n_pad128, n_pad128, 1
            need = fixed + (2 if hoist else 1) * x_bytes + interm_res
        else:
            n_blk = min(self.block_n, n_pad128)
            while (n_blk > 128 and
                   fixed + 2 * f32 * n_blk * Hp + 4 * f32 * Bp * n_blk > budget):
                n_blk = max(128, (n_blk // 2 // 128) * 128)
            n_pad = -(-N // n_blk) * n_blk
            n_blocks = n_pad // n_blk
            need = fixed + 2 * f32 * n_blk * Hp + 4 * f32 * Bp * n_blk

        vmem_limit = int(min(int(phys * 0.90), max(32 << 20, need + (8 << 20))))

        # ---- padded device inputs ----
        x_pad = jnp.zeros((n_pad, Hp), jnp.float32)
        x_pad = x_pad.at[:N, :H].set(node_feat.astype(jnp.float32))
        # padded nodes get graph id Bp (out of range) -> contribute nothing
        batch_pad = jnp.full((1, n_pad), Bp, jnp.int32)
        batch_pad = batch_pad.at[0, :N].set(batch.astype(jnp.int32))

        kernel = functools.partial(_set2set_kernel, self.n_iters, L, Hp, Bp,
                                   hoist)

        def run(use_buffered):
            def const_spec(shape):
                if use_buffered:
                    return pl.BlockSpec(shape, lambda t, j: (0, 0),
                                        pipeline_mode=pl.Buffered(1))
                return pl.BlockSpec(shape, lambda t, j: (0, 0))

            if resident:
                in_specs = [const_spec((1, n_blk)),          # batch ids
                            const_spec((n_blk, Hp))]         # node features
                args = [batch_pad, x_pad]
                if hoist:
                    in_specs.append(const_spec((Hp, n_blk)))  # x^T (host-built)
                    args.append(x_pad.T)
            else:
                in_specs = [pl.BlockSpec((1, n_blk), lambda t, j: (0, j)),
                            pl.BlockSpec((n_blk, Hp), lambda t, j: (j, 0))]
                args = [batch_pad, x_pad]
            in_specs += [const_spec(p.shape) for p in self.flat_params]
            args += list(self.flat_params)

            return pl.pallas_call(
                kernel,
                out_shape=jax.ShapeDtypeStruct((Bp, 2 * Hp), jnp.float32),
                grid_spec=pltpu.PrefetchScalarGridSpec(
                    num_scalar_prefetch=0,
                    grid=(self.n_iters, n_blocks),
                    in_specs=in_specs,
                    out_specs=pl.BlockSpec((Bp, 2 * Hp), lambda t, j: (0, 0)),
                    scratch_shapes=[
                        pltpu.VMEM((Bp, Hp), jnp.float32),       # q
                        pltpu.VMEM((Bp, Hp), jnp.float32),       # r / acc
                        pltpu.VMEM((Bp, L * Hp), jnp.float32),   # h (L layers)
                        pltpu.VMEM((Bp, L * Hp), jnp.float32),   # c (L layers)
                        pltpu.VMEM((Bp, 1), jnp.float32),        # running max
                        pltpu.VMEM((Bp, 1), jnp.float32),        # running sum
                    ]),
                compiler_params=pltpu.CompilerParams(
                    dimension_semantics=("arbitrary", "arbitrary"),
                    vmem_limit_bytes=vmem_limit),
            )(*args)

        try:
            out = run(True)
        except Exception:
            # Fallback if pipeline_mode=pl.Buffered(1) is rejected by this jax.
            out = run(False)

        if Hp == H and Bp == B:
            return out
        return jnp.concatenate([out[:B, :H], out[:B, Hp:Hp + H]], axis=-1)


# --------------------------- pure-JAX reference ------------------------------


def _reference_set2set(raw_params, x, batch, num_graphs, n_iters, n_layers, H):
    B = num_graphs
    x = x.astype(jnp.float32)
    S = jax.nn.one_hot(batch, B, dtype=jnp.float32)          # (N, B)
    hs = [jnp.zeros((B, H), jnp.float32) for _ in range(n_layers)]
    cs = [jnp.zeros((B, H), jnp.float32) for _ in range(n_layers)]
    q_star = jnp.zeros((B, 2 * H), jnp.float32)
    for _ in range(n_iters):
        inp = q_star
        for l in range(n_layers):
            w_ih, w_hh, b_ih, b_hh = raw_params[l]
            gates = inp @ w_ih.T + hs[l] @ w_hh.T + b_ih + b_hh
            i_g = jax.nn.sigmoid(gates[:, :H])
            f_g = jax.nn.sigmoid(gates[:, H:2 * H])
            g_g = jnp.tanh(gates[:, 2 * H:3 * H])
            o_g = jax.nn.sigmoid(gates[:, 3 * H:])
            cs[l] = f_g * cs[l] + i_g * g_g
            hs[l] = o_g * jnp.tanh(cs[l])
            inp = hs[l]
        q = hs[-1]
        e = jnp.sum(x * q[batch], axis=-1)                   # (N,)
        masked = jnp.where(S > 0.5, e[:, None], -1e30)       # (N, B)
        m = jnp.max(masked, axis=0)                          # (B,)
        p = jnp.exp(e - m[batch])
        denom = S.T @ p                                      # (B,)
        a = p / denom[batch]
        r = S.T @ (a[:, None] * x)                           # (B, H)
        q_star = jnp.concatenate([q, r], axis=-1)
    return q_star


# --------------------------------- demo --------------------------------------


if __name__ == "__main__":
    in_feats = 32
    n_iters = 3
    n_layers = 2
    N = 16
    num_graphs = 2

    key = jax.random.PRNGKey(0)
    node_feat = jax.random.normal(key, (N, in_feats), jnp.float32)
    batch = jnp.concatenate([jnp.zeros((9,), jnp.int32),
                             jnp.ones((7,), jnp.int32)])

    readout = Set2SetReadOutPallas(in_feats, n_iters, n_layers,
                                   field="node_feat", seed=0)
    out = readout(node_feat, batch, num_graphs)
    out = jax.block_until_ready(out)
    assert out.shape == (num_graphs, 2 * in_feats)
    assert bool(jnp.all(jnp.isfinite(out)))

    ref = _reference_set2set(readout.raw_params, node_feat, batch,
                             num_graphs, n_iters, n_layers, in_feats)
    assert jnp.allclose(out, ref, rtol=1e-2, atol=1e-2), \
        float(jnp.max(jnp.abs(out - ref)))

    print("KERNEL_OK")
</pallas_src>

<mosaic_0001>
module attributes {stable_mosaic.version = 11 : i64} {
  func.func @_set2set_kernel(%arg0: i32, %arg1: i32, %arg2: memref<1x128xi32, #tpu.memory_space<vmem>>, %arg3: memref<128x128xf32, #tpu.memory_space<vmem>>, %arg4: memref<128x128xf32, #tpu.memory_space<vmem>>, %arg5: memref<384x512xf32, #tpu.memory_space<vmem>>, %arg6: memref<1x512xf32, #tpu.memory_space<vmem>>, %arg7: memref<256x512xf32, #tpu.memory_space<vmem>>, %arg8: memref<1x512xf32, #tpu.memory_space<vmem>>, %arg9: memref<8x256xf32, #tpu.memory_space<vmem>>, %arg10: memref<8x128xf32, #tpu.memory_space<vmem>>, %arg11: memref<8x128xf32, #tpu.memory_space<vmem>>, %arg12: memref<8x256xf32, #tpu.memory_space<vmem>>, %arg13: memref<8x256xf32, #tpu.memory_space<vmem>>, %arg14: memref<8x1xf32, #tpu.memory_space<vmem>>, %arg15: memref<8x1xf32, #tpu.memory_space<vmem>>) attributes {dimension_semantics = [#tpu.dimension_semantics<arbitrary>, #tpu.dimension_semantics<arbitrary>], iteration_bounds = array<i64: 3, 1>, scalar_prefetch = 0 : i64, scratch_operands = 6 : i64, tpu.core_type = #tpu.core_type<tc>, window_params = [{pipeline_mode = #tpu.pipeline_mode<synchronous>, transform_indices = @transform_0, window_bounds = array<i64: 1, 128>}, {pipeline_mode = #tpu.pipeline_mode<synchronous>, transform_indices = @transform_1, window_bounds = array<i64: 128, 128>}, {pipeline_mode = #tpu.pipeline_mode<synchronous>, transform_indices = @transform_2, window_bounds = array<i64: 128, 128>}, {pipeline_mode = #tpu.pipeline_mode<synchronous>, transform_indices = @transform_3, window_bounds = array<i64: 384, 512>}, {pipeline_mode = #tpu.pipeline_mode<synchronous>, transform_indices = @transform_4, window_bounds = array<i64: 1, 512>}, {pipeline_mode = #tpu.pipeline_mode<synchronous>, transform_indices = @transform_5, window_bounds = array<i64: 256, 512>}, {pipeline_mode = #tpu.pipeline_mode<synchronous>, transform_indices = @transform_6, window_bounds = array<i64: 1, 512>}, {pipeline_mode = #tpu.pipeline_mode<synchronous>, transform_indices = @transform_7, window_bounds = array<i64: 8, 256>}]} {
    %c0_i32 = arith.constant 0 : i32
    %0 = arith.cmpi eq, %arg0, %c0_i32 : i32
    %c0_i32_0 = arith.constant 0 : i32
    %1 = arith.cmpi eq, %arg1, %c0_i32_0 : i32
    %2 = arith.andi %0, %1 : i1
    %3 = arith.extui %2 : i1 to i32
    %c0_i32_1 = arith.constant 0 : i32
    %4 = arith.cmpi ne, %3, %c0_i32_1 : i32
    scf.if %4 {
      %cst_32 = arith.constant 0.000000e+00 : f32
      %50 = vector.broadcast %cst_32 : f32 to vector<8x128xf32>
      %c0_33 = arith.constant 0 : index
      %c0_34 = arith.constant 0 : index
      %51 = vector.load %arg10[%c0_33, %c0_34] : memref<8x128xf32, #tpu.memory_space<vmem>>, vector<8x128xf32>
      tpu.vector_store %arg10[%c0_33, %c0_34], %50 {strides = array<i32>} : memref<8x128xf32, #tpu.memory_space<vmem>>, vector<8x128xf32>,
      %cst_35 = arith.constant 0.000000e+00 : f32
      %52 = vector.broadcast %cst_35 : f32 to vector<8x128xf32>
      %c0_36 = arith.constant 0 : index
      %c0_37 = arith.constant 0 : index
      %53 = vector.load %arg11[%c0_36, %c0_37] : memref<8x128xf32, #tpu.memory_space<vmem>>, vector<8x128xf32>
      tpu.vector_store %arg11[%c0_36, %c0_37], %52 {strides = array<i32>} : memref<8x128xf32, #tpu.memory_space<vmem>>, vector<8x128xf32>,
      %cst_38 = arith.constant 0.000000e+00 : f32
      %54 = vector.broadcast %cst_38 : f32 to vector<8x256xf32>
      %c0_39 = arith.constant 0 : index
      %c0_40 = arith.constant 0 : index
      %55 = vector.load %arg12[%c0_39, %c0_40] : memref<8x256xf32, #tpu.memory_space<vmem>>, vector<8x256xf32>
      tpu.vector_store %arg12[%c0_39, %c0_40], %54 {strides = array<i32>} : memref<8x256xf32, #tpu.memory_space<vmem>>, vector<8x256xf32>,
      %cst_41 = arith.constant 0.000000e+00 : f32
      %56 = vector.broadcast %cst_41 : f32 to vector<8x256xf32>
      %c0_42 = arith.constant 0 : index
      %c0_43 = arith.constant 0 : index
      %57 = vector.load %arg13[%c0_42, %c0_43] : memref<8x256xf32, #tpu.memory_space<vmem>>, vector<8x256xf32>
      tpu.vector_store %arg13[%c0_42, %c0_43], %56 {strides = array<i32>} : memref<8x256xf32, #tpu.memory_space<vmem>>, vector<8x256xf32>,
    } else {
    }
    %c0_i32_2 = arith.constant 0 : i32
    %5 = arith.cmpi eq, %arg1, %c0_i32_2 : i32
    %6 = arith.extui %5 : i1 to i32
    %c0_i32_3 = arith.constant 0 : i32
    %7 = arith.cmpi ne, %6, %c0_i32_3 : i32
    scf.if %7 {
      %c0_32 = arith.constant 0 : index
      %c0_33 = arith.constant 0 : index
      %50 = vector.load %arg10[%c0_32, %c0_33] : memref<8x128xf32, #tpu.memory_space<vmem>>, vector<8x128xf32>
      %c0_34 = arith.constant 0 : index
      %c0_35 = arith.constant 0 : index
      %51 = vector.load %arg11[%c0_34, %c0_35] : memref<8x128xf32, #tpu.memory_space<vmem>>, vector<8x128xf32>
      %c0_36 = arith.constant 0 : index
      %c0_37 = arith.constant 0 : index
      %52 = vector.load %arg12[%c0_36, %c0_37] : memref<8x256xf32, #tpu.memory_space<vmem>>, vector<8x128xf32>
      %c0_38 = arith.constant 0 : index
      %c0_39 = arith.constant 0 : index
      %53 = vector.load %arg13[%c0_38, %c0_39] : memref<8x256xf32, #tpu.memory_space<vmem>>, vector<8x128xf32>
      %c0_40 = arith.constant 0 : index
      %c0_41 = arith.constant 0 : index
      %54 = vector.load %arg5[%c0_40, %c0_41] : memref<384x512xf32, #tpu.memory_space<vmem>>, vector<384x512xf32>
      %c0_42 = arith.constant 0 : index
      %c0_43 = arith.constant 0 : index
      %55 = vector.load %arg6[%c0_42, %c0_43] : memref<1x512xf32, #tpu.memory_space<vmem>>, vector<1x512xf32>
      %56 = tpu.concatenate %50, %51, %52 in 1 : vector<8x128xf32>, vector<8x128xf32>, vector<8x128xf32> -> vector<8x384xf32>
      %cst_44 = arith.constant dense<0.000000e+00> : vector<8x512xf32>
      %57 = tpu.matmul %56, %54, %cst_44 {dimension_numbers = #tpu.dot_dimension_numbers<[1], [0], [0], [1], [0, 0, 1, 1], [], []>} : vector<8x384xf32>, vector<384x512xf32>, vector<8x512xf32> -> vector<8x512xf32>
      %58 = vector.broadcast %55 : vector<1x512xf32> to vector<8x512xf32>
      %59 = arith.addf %57, %58 : vector<8x512xf32>
      %60 = vector.extract_strided_slice %59 {offsets = [0, 0], sizes = [8, 128], strides = [1, 1]} : vector<8x512xf32> to vector<8x128xf32>
      %61 = arith.negf %60 : vector<8x128xf32>
      %62 = math.exp %61 : vector<8x128xf32>
      %cst_45 = arith.constant 1.000000e+00 : f32
      %63 = vector.broadcast %cst_45 : f32 to vector<8x128xf32>
      %64 = arith.addf %63, %62 : vector<8x128xf32>
      %65 = arith.divf %63, %64 : vector<8x128xf32>
      %66 = vector.extract_strided_slice %59 {offsets = [0, 128], sizes = [8, 128], strides = [1, 1]} : vector<8x512xf32> to vector<8x128xf32>
      %67 = arith.negf %66 : vector<8x128xf32>
      %68 = math.exp %67 : vector<8x128xf32>
      %cst_46 = arith.constant 1.000000e+00 : f32
      %69 = vector.broadcast %cst_46 : f32 to vector<8x128xf32>
      %70 = arith.addf %69, %68 : vector<8x128xf32>
      %71 = arith.divf %69, %70 : vector<8x128xf32>
      %72 = vector.extract_strided_slice %59 {offsets = [0, 256], sizes = [8, 128], strides = [1, 1]} : vector<8x512xf32> to vector<8x128xf32>
      %73 = math.tanh %72 : vector<8x128xf32>
      %74 = vector.extract_strided_slice %59 {offsets = [0, 384], sizes = [8, 128], strides = [1, 1]} : vector<8x512xf32> to vector<8x128xf32>
      %75 = arith.negf %74 : vector<8x128xf32>
      %76 = math.exp %75 : vector<8x128xf32>
      %cst_47 = arith.constant 1.000000e+00 : f32
      %77 = vector.broadcast %cst_47 : f32 to vector<8x128xf32>
      %78 = arith.addf %77, %76 : vector<8x128xf32>
      %79 = arith.divf %77, %78 : vector<8x128xf32>
      %80 = arith.mulf %71, %53 : vector<8x128xf32>
      %81 = arith.mulf %65, %73 : vector<8x128xf32>
      %82 = arith.addf %80, %81 : vector<8x128xf32>
      %83 = math.tanh %82 : vector<8x128xf32>
      %84 = arith.mulf %79, %83 : vector<8x128xf32>
      %c0_48 = arith.constant 0 : index
      %c0_49 = arith.constant 0 : index
      %85 = vector.load %arg13[%c0_48, %c0_49] : memref<8x256xf32, #tpu.memory_space<vmem>>, vector<8x128xf32>
      tpu.vector_store %arg13[%c0_48, %c0_49], %82 {strides = array<i32>} : memref<8x256xf32, #tpu.memory_space<vmem>>, vector<8x128xf32>,
      %c0_50 = arith.constant 0 : index
      %c0_51 = arith.constant 0 : index
      %86 = vector.load %arg12[%c0_50, %c0_51] : memref<8x256xf32, #tpu.memory_space<vmem>>, vector<8x128xf32>
      tpu.vector_store %arg12[%c0_50, %c0_51], %84 {strides = array<i32>} : memref<8x256xf32, #tpu.memory_space<vmem>>, vector<8x128xf32>,
      %c0_52 = arith.constant 0 : index
      %c128 = arith.constant 128 : index
      %87 = vector.load %arg12[%c0_52, %c128] : memref<8x256xf32, #tpu.memory_space<vmem>>, vector<8x128xf32>
      %c0_53 = arith.constant 0 : index
      %c128_54 = arith.constant 128 : index
      %88 = vector.load %arg13[%c0_53, %c128_54] : memref<8x256xf32, #tpu.memory_space<vmem>>, vector<8x128xf32>
      %c0_55 = arith.constant 0 : index
      %c0_56 = arith.constant 0 : index
      %89 = vector.load %arg7[%c0_55, %c0_56] : memref<256x512xf32, #tpu.memory_space<vmem>>, vector<256x512xf32>
      %c0_57 = arith.constant 0 : index
      %c0_58 = arith.constant 0 : index
      %90 = vector.load %arg8[%c0_57, %c0_58] : memref<1x512xf32, #tpu.memory_space<vmem>>, vector<1x512xf32>
      %91 = tpu.concatenate %84, %87 in 1 : vector<8x128xf32>, vector<8x128xf32> -> vector<8x256xf32>
      %cst_59 = arith.constant dense<0.000000e+00> : vector<8x512xf32>
      %92 = tpu.matmul %91, %89, %cst_59 {dimension_numbers = #tpu.dot_dimension_numbers<[1], [0], [0], [1], [0, 0, 1, 1], [], []>} : vector<8x256xf32>, vector<256x512xf32>, vector<8x512xf32> -> vector<8x512xf32>
      %93 = vector.broadcast %90 : vector<1x512xf32> to vector<8x512xf32>
      %94 = arith.addf %92, %93 : vector<8x512xf32>
      %95 = vector.extract_strided_slice %94 {offsets = [0, 0], sizes = [8, 128], strides = [1, 1]} : vector<8x512xf32> to vector<8x128xf32>
      %96 = arith.negf %95 : vector<8x128xf32>
      %97 = math.exp %96 : vector<8x128xf32>
      %cst_60 = arith.constant 1.000000e+00 : f32
      %98 = vector.broadcast %cst_60 : f32 to vector<8x128xf32>
      %99 = arith.addf %98, %97 : vector<8x128xf32>
      %100 = arith.divf %98, %99 : vector<8x128xf32>
      %101 = vector.extract_strided_slice %94 {offsets = [0, 128], sizes = [8, 128], strides = [1, 1]} : vector<8x512xf32> to vector<8x128xf32>
      %102 = arith.negf %101 : vector<8x128xf32>
      %103 = math.exp %102 : vector<8x128xf32>
      %cst_61 = arith.constant 1.000000e+00 : f32
      %104 = vector.broadcast %cst_61 : f32 to vector<8x128xf32>
      %105 = arith.addf %104, %103 : vector<8x128xf32>
      %106 = arith.divf %104, %105 : vector<8x128xf32>
      %107 = vector.extract_strided_slice %94 {offsets = [0, 256], sizes = [8, 128], strides = [1, 1]} : vector<8x512xf32> to vector<8x128xf32>
      %108 = math.tanh %107 : vector<8x128xf32>
      %109 = vector.extract_strided_slice %94 {offsets = [0, 384], sizes = [8, 128], strides = [1, 1]} : vector<8x512xf32> to vector<8x128xf32>
      %110 = arith.negf %109 : vector<8x128xf32>
      %111 = math.exp %110 : vector<8x128xf32>
      %cst_62 = arith.constant 1.000000e+00 : f32
      %112 = vector.broadcast %cst_62 : f32 to vector<8x128xf32>
      %113 = arith.addf %112, %111 : vector<8x128xf32>
      %114 = arith.divf %112, %113 : vector<8x128xf32>
      %115 = arith.mulf %106, %88 : vector<8x128xf32>
      %116 = arith.mulf %100, %108 : vector<8x128xf32>
      %117 = arith.addf %115, %116 : vector<8x128xf32>
      %118 = math.tanh %117 : vector<8x128xf32>
      %119 = arith.mulf %114, %118 : vector<8x128xf32>
      %c0_63 = arith.constant 0 : index
      %c128_64 = arith.constant 128 : index
      %120 = vector.load %arg13[%c0_63, %c128_64] : memref<8x256xf32, #tpu.memory_space<vmem>>, vector<8x128xf32>
      tpu.vector_store %arg13[%c0_63, %c128_64], %117 {strides = array<i32>} : memref<8x256xf32, #tpu.memory_space<vmem>>, vector<8x128xf32>,
      %c0_65 = arith.constant 0 : index
      %c128_66 = arith.constant 128 : index
      %121 = vector.load %arg12[%c0_65, %c128_66] : memref<8x256xf32, #tpu.memory_space<vmem>>, vector<8x128xf32>
      tpu.vector_store %arg12[%c0_65, %c128_66], %119 {strides = array<i32>} : memref<8x256xf32, #tpu.memory_space<vmem>>, vector<8x128xf32>,
      %c0_67 = arith.constant 0 : index
      %c0_68 = arith.constant 0 : index
      %122 = vector.load %arg10[%c0_67, %c0_68] : memref<8x128xf32, #tpu.memory_space<vmem>>, vector<8x128xf32>
      tpu.vector_store %arg10[%c0_67, %c0_68], %119 {strides = array<i32>} : memref<8x128xf32, #tpu.memory_space<vmem>>, vector<8x128xf32>,
      %cst_69 = arith.constant 0.000000e+00 : f32
      %123 = vector.broadcast %cst_69 : f32 to vector<8x128xf32>
      %c0_70 = arith.constant 0 : index
      %c0_71 = arith.constant 0 : index
      %124 = vector.load %arg11[%c0_70, %c0_71] : memref<8x128xf32, #tpu.memory_space<vmem>>, vector<8x128xf32>
      tpu.vector_store %arg11[%c0_70, %c0_71], %123 {strides = array<i32>} : memref<8x128xf32, #tpu.memory_space<vmem>>, vector<8x128xf32>,
      %cst_72 = arith.constant -1.000000e+30 : f32
      %125 = vector.broadcast %cst_72 : f32 to vector<8x1xf32>
      %c0_73 = arith.constant 0 : index
      %c0_74 = arith.constant 0 : index
      %126 = vector.load %arg14[%c0_73, %c0_74] : memref<8x1xf32, #tpu.memory_space<vmem>>, vector<8x1xf32>
      tpu.vector_store %arg14[%c0_73, %c0_74], %125 {strides = array<i32>} : memref<8x1xf32, #tpu.memory_space<vmem>>, vector<8x1xf32>,
      %cst_75 = arith.constant 0.000000e+00 : f32
      %127 = vector.broadcast %cst_75 : f32 to vector<8x1xf32>
      %c0_76 = arith.constant 0 : index
      %c0_77 = arith.constant 0 : index
      %128 = vector.load %arg15[%c0_76, %c0_77] : memref<8x1xf32, #tpu.memory_space<vmem>>, vector<8x1xf32>
      tpu.vector_store %arg15[%c0_76, %c0_77], %127 {strides = array<i32>} : memref<8x1xf32, #tpu.memory_space<vmem>>, vector<8x1xf32>,
    } else {
    }
    %c0 = arith.constant 0 : index
    %c0_4 = arith.constant 0 : index
    %8 = vector.load %arg3[%c0, %c0_4] : memref<128x128xf32, #tpu.memory_space<vmem>>, vector<128x128xf32>
    %c0_5 = arith.constant 0 : index
    %c0_6 = arith.constant 0 : index
    %9 = vector.load %arg2[%c0_5, %c0_6] : memref<1x128xi32, #tpu.memory_space<vmem>>, vector<1x128xi32>
    %c0_7 = arith.constant 0 : index
    %c0_8 = arith.constant 0 : index
    %10 = vector.load %arg10[%c0_7, %c0_8] : memref<8x128xf32, #tpu.memory_space<vmem>>, vector<8x128xf32>
    %11 = tpu.iota {dimensions = array<i32: 0>} : vector<8x128xi32>
    %12 = vector.broadcast %9 : vector<1x128xi32> to vector<8x128xi32>
    %13 = arith.cmpi eq, %11, %12 : vector<8x128xi32>
    %c0_9 = arith.constant 0 : index
    %c0_10 = arith.constant 0 : index
    %14 = vector.load %arg4[%c0_9, %c0_10] : memref<128x128xf32, #tpu.memory_space<vmem>>, vector<128x128xf32>
    %cst = arith.constant dense<0.000000e+00> : vector<8x128xf32>
    %15 = tpu.matmul %10, %14, %cst {dimension_numbers = #tpu.dot_dimension_numbers<[1], [0], [0], [1], [0, 0, 1, 1], [], []>} : vector<8x128xf32>, vector<128x128xf32>, vector<8x128xf32> -> vector<8x128xf32>
    %cst_11 = arith.constant -1.000000e+30 : f32
    %16 = vector.broadcast %cst_11 : f32 to vector<8x128xf32>
    %17 = arith.select %13, %15, %16 : vector<8x128xi1>, vector<8x128xf32>
    %c0_12 = arith.constant 0 : index
    %c0_13 = arith.constant 0 : index
    %18 = vector.load %arg14[%c0_12, %c0_13] : memref<8x1xf32, #tpu.memory_space<vmem>>, vector<8x1xf32>
    %cst_14 = arith.constant dense<0xFF800000> : vector<8xf32>
    %19 = vector.multi_reduction <maximumf>, %17, %cst_14 [1] : vector<8x128xf32> to vector<8xf32>
    %20 = vector.shape_cast %19 : vector<8xf32> to vector<8x1xf32>
    %21 = arith.maximumf %18, %20 : vector<8x1xf32>
    %22 = arith.subf %18, %21 : vector<8x1xf32>
    %23 = math.exp %22 : vector<8x1xf32>
    %24 = vector.broadcast %21 : vector<8x1xf32> to vector<8x128xf32>
    %25 = arith.subf %17, %24 : vector<8x128xf32>
    %26 = math.exp %25 : vector<8x128xf32>
    %cst_15 = arith.constant 0.000000e+00 : f32
    %27 = vector.broadcast %cst_15 : f32 to vector<8x128xf32>
    %28 = arith.select %13, %26, %27 : vector<8x128xi1>, vector<8x128xf32>
    %c0_16 = arith.constant 0 : index
    %c0_17 = arith.constant 0 : index
    %29 = vector.load %arg15[%c0_16, %c0_17] : memref<8x1xf32, #tpu.memory_space<vmem>>, vector<8x1xf32>
    %30 = arith.mulf %23, %29 : vector<8x1xf32>
    %cst_18 = arith.constant dense<0.000000e+00> : vector<8xf32>
    %31 = vector.multi_reduction <add>, %28, %cst_18 [1] : vector<8x128xf32> to vector<8xf32>
    %32 = vector.shape_cast %31 : vector<8xf32> to vector<8x1xf32>
    %33 = arith.addf %30, %32 : vector<8x1xf32>
    %c0_19 = arith.constant 0 : index
    %c0_20 = arith.constant 0 : index
    %34 = vector.load %arg15[%c0_19, %c0_20] : memref<8x1xf32, #tpu.memory_space<vmem>>, vector<8x1xf32>
    tpu.vector_store %arg15[%c0_19, %c0_20], %33 {strides = array<i32>} : memref<8x1xf32, #tpu.memory_space<vmem>>, vector<8x1xf32>,
    %c0_21 = arith.constant 0 : index
    %c0_22 = arith.constant 0 : index
    %35 = vector.load %arg11[%c0_21, %c0_22] : memref<8x128xf32, #tpu.memory_space<vmem>>, vector<8x128xf32>
    %36 = vector.broadcast %23 : vector<8x1xf32> to vector<8x128xf32>
    %37 = arith.mulf %36, %35 : vector<8x128xf32>
    %cst_23 = arith.constant dense<0.000000e+00> : vector<8x128xf32>
    %38 = tpu.matmul %28, %8, %cst_23 {dimension_numbers = #tpu.dot_dimension_numbers<[1], [0], [0], [1], [0, 0, 1, 1], [], []>} : vector<8x128xf32>, vector<128x128xf32>, vector<8x128xf32> -> vector<8x128xf32>
    %39 = arith.addf %37, %38 : vector<8x128xf32>
    %c0_24 = arith.constant 0 : index
    %c0_25 = arith.constant 0 : index
    %40 = vector.load %arg11[%c0_24, %c0_25] : memref<8x128xf32, #tpu.memory_space<vmem>>, vector<8x128xf32>
    tpu.vector_store %arg11[%c0_24, %c0_25], %39 {strides = array<i32>} : memref<8x128xf32, #tpu.memory_space<vmem>>, vector<8x128xf32>,
    %c0_26 = arith.constant 0 : index
    %c0_27 = arith.constant 0 : index
    %41 = vector.load %arg14[%c0_26, %c0_27] : memref<8x1xf32, #tpu.memory_space<vmem>>, vector<8x1xf32>
    tpu.vector_store %arg14[%c0_26, %c0_27], %21 {strides = array<i32>} : memref<8x1xf32, #tpu.memory_space<vmem>>, vector<8x1xf32>,
    %c0_i32_28 = arith.constant 0 : i32
    %42 = arith.cmpi eq, %arg1, %c0_i32_28 : i32
    %43 = arith.extui %42 : i1 to i32
    %c0_i32_29 = arith.constant 0 : i32
    %44 = arith.cmpi ne, %43, %c0_i32_29 : i32
    scf.if %44 {
      %c0_32 = arith.constant 0 : index
      %c0_33 = arith.constant 0 : index
      %50 = vector.load %arg15[%c0_32, %c0_33] : memref<8x1xf32, #tpu.memory_space<vmem>>, vector<8x1xf32>
      %cst_34 = arith.constant 0.000000e+00 : f32
      %51 = vector.broadcast %cst_34 : f32 to vector<8x1xf32>
      %52 = arith.cmpf ogt, %50, %51 : vector<8x1xf32>
      %cst_35 = arith.constant 1.000000e+00 : f32
      %53 = vector.broadcast %cst_35 : f32 to vector<8x1xf32>
      %54 = arith.select %52, %50, %53 : vector<8x1xi1>, vector<8x1xf32>
      %c0_36 = arith.constant 0 : index
      %c0_37 = arith.constant 0 : index
      %55 = vector.load %arg11[%c0_36, %c0_37] : memref<8x128xf32, #tpu.memory_space<vmem>>, vector<8x128xf32>
      %56 = tpu.reciprocal %54 {approx = true} : vector<8x1xf32> -> vector<8x1xf32>
      %57 = vector.broadcast %56 : vector<8x1xf32> to vector<8x128xf32>
      %58 = arith.mulf %55, %57 : vector<8x128xf32>
      %c0_38 = arith.constant 0 : index
      %c0_39 = arith.constant 0 : index
      %59 = vector.load %arg11[%c0_38, %c0_39] : memref<8x128xf32, #tpu.memory_space<vmem>>, vector<8x128xf32>
      tpu.vector_store %arg11[%c0_38, %c0_39], %58 {strides = array<i32>} : memref<8x128xf32, #tpu.memory_space<vmem>>, vector<8x128xf32>,
    } else {
    }
    %c2_i32 = arith.constant 2 : i32
    %45 = arith.cmpi eq, %arg0, %c2_i32 : i32
    %c0_i32_30 = arith.constant 0 : i32
    %46 = arith.cmpi eq, %arg1, %c0_i32_30 : i32
    %47 = arith.andi %45, %46 : i1
    %48 = arith.extui %47 : i1 to i32
    %c0_i32_31 = arith.constant 0 : i32
    %49 = arith.cmpi ne, %48, %c0_i32_31 : i32
    scf.if %49 {
      %c0_32 = arith.constant 0 : index
      %c0_33 = arith.constant 0 : index
      %50 = vector.load %arg10[%c0_32, %c0_33] : memref<8x128xf32, #tpu.memory_space<vmem>>, vector<8x128xf32>
      %c0_34 = arith.constant 0 : index
      %c0_35 = arith.constant 0 : index
      %51 = vector.load %arg9[%c0_34, %c0_35] : memref<8x256xf32, #tpu.memory_space<vmem>>, vector<8x128xf32>
      tpu.vector_store %arg9[%c0_34, %c0_35], %50 {strides = array<i32>} : memref<8x256xf32, #tpu.memory_space<vmem>>, vector<8x128xf32>,
      %c0_36 = arith.constant 0 : index
      %c0_37 = arith.constant 0 : index
      %52 = vector.load %arg11[%c0_36, %c0_37] : memref<8x128xf32, #tpu.memory_space<vmem>>, vector<8x128xf32>
      %c0_38 = arith.constant 0 : index
      %c128 = arith.constant 128 : index
      %53 = vector.load %arg9[%c0_38, %c128] : memref<8x256xf32, #tpu.memory_space<vmem>>, vector<8x128xf32>
      tpu.vector_store %arg9[%c0_38, %c128], %52 {strides = array<i32>} : memref<8x256xf32, #tpu.memory_space<vmem>>, vector<8x128xf32>,
    } else {
    }
    return
  }
  func.func @transform_0(%arg0: i32, %arg1: i32) -> (i32, i32) {
    %c0_i32 = arith.constant 0 : i32
    %c0_i32_0 = arith.constant 0 : i32
    %c0_i32_1 = arith.constant 0 : i32
    return %c0_i32, %c0_i32_0 : i32, i32
  }
  func.func @transform_1(%arg0: i32, %arg1: i32) -> (i32, i32) {
    %c0_i32 = arith.constant 0 : i32
    %c0_i32_0 = arith.constant 0 : i32
    %c0_i32_1 = arith.constant 0 : i32
    return %c0_i32, %c0_i32_0 : i32, i32
  }
  func.func @transform_2(%arg0: i32, %arg1: i32) -> (i32, i32) {
    %c0_i32 = arith.constant 0 : i32
    %c0_i32_0 = arith.constant 0 : i32
    %c0_i32_1 = arith.constant 0 : i32
    return %c0_i32, %c0_i32_0 : i32, i32
  }
  func.func @transform_3(%arg0: i32, %arg1: i32) -> (i32, i32) {
    %c0_i32 = arith.constant 0 : i32
    %c0_i32_0 = arith.constant 0 : i32
    %c0_i32_1 = arith.constant 0 : i32
    return %c0_i32, %c0_i32_0 : i32, i32
  }
  func.func @transform_4(%arg0: i32, %arg1: i32) -> (i32, i32) {
    %c0_i32 = arith.constant 0 : i32
    %c0_i32_0 = arith.constant 0 : i32
    %c0_i32_1 = arith.constant 0 : i32
    return %c0_i32, %c0_i32_0 : i32, i32
  }
  func.func @transform_5(%arg0: i32, %arg1: i32) -> (i32, i32) {
    %c0_i32 = arith.constant 0 : i32
    %c0_i32_0 = arith.constant 0 : i32
    %c0_i32_1 = arith.constant 0 : i32
    return %c0_i32, %c0_i32_0 : i32, i32
  }
  func.func @transform_6(%arg0: i32, %arg1: i32) -> (i32, i32) {
    %c0_i32 = arith.constant 0 : i32
    %c0_i32_0 = arith.constant 0 : i32
    %c0_i32_1 = arith.constant 0 : i32
    return %c0_i32, %c0_i32_0 : i32, i32
  }
  func.func @transform_7(%arg0: i32, %arg1: i32) -> (i32, i32) {
    %c0_i32 = arith.constant 0 : i32
    %c0_i32_0 = arith.constant 0 : i32
    %c0_i32_1 = arith.constant 0 : i32
    return %c0_i32, %c0_i32_0 : i32, i32
  }
}

module attributes {stable_mosaic.version = 11 : i64} {
  func.func @_set2set_kernel(%arg0: i32, %arg1: i32, %arg2: memref<1x128xi32, #tpu.memory_space<vmem>>, %arg3: memref<128x128xf32, #tpu.memory_space<vmem>>, %arg4: memref<128x128xf32, #tpu.memory_space<vmem>>, %arg5: memref<384x512xf32, #tpu.memory_space<vmem>>, %arg6: memref<1x512xf32, #tpu.memory_space<vmem>>, %arg7: memref<256x512xf32, #tpu.memory_space<vmem>>, %arg8: memref<1x512xf32, #tpu.memory_space<vmem>>, %arg9: memref<8x256xf32, #tpu.memory_space<vmem>>, %arg10: memref<8x128xf32, #tpu.memory_space<vmem>>, %arg11: memref<8x128xf32, #tpu.memory_space<vmem>>, %arg12: memref<8x256xf32, #tpu.memory_space<vmem>>, %arg13: memref<8x256xf32, #tpu.memory_space<vmem>>, %arg14: memref<8x1xf32, #tpu.memory_space<vmem>>, %arg15: memref<8x1xf32, #tpu.memory_space<vmem>>) attributes {dimension_semantics = [#tpu.dimension_semantics<arbitrary>, #tpu.dimension_semantics<arbitrary>], iteration_bounds = array<i64: 3, 1>, scalar_prefetch = 0 : i64, scratch_operands = 6 : i64, tpu.core_type = #tpu.core_type<tc>, window_params = [{pipeline_mode = #tpu.pipeline_mode<synchronous>, transform_indices = @transform_0, window_bounds = array<i64: 1, 128>}, {pipeline_mode = #tpu.pipeline_mode<synchronous>, transform_indices = @transform_1, window_bounds = array<i64: 128, 128>}, {pipeline_mode = #tpu.pipeline_mode<synchronous>, transform_indices = @transform_2, window_bounds = array<i64: 128, 128>}, {pipeline_mode = #tpu.pipeline_mode<synchronous>, transform_indices = @transform_3, window_bounds = array<i64: 384, 512>}, {pipeline_mode = #tpu.pipeline_mode<synchronous>, transform_indices = @transform_4, window_bounds = array<i64: 1, 512>}, {pipeline_mode = #tpu.pipeline_mode<synchronous>, transform_indices = @transform_5, window_bounds = array<i64: 256, 512>}, {pipeline_mode = #tpu.pipeline_mode<synchronous>, transform_indices = @transform_6, window_bounds = array<i64: 1, 512>}, {pipeline_mode = #tpu.pipeline_mode<synchronous>, transform_indices = @transform_7, window_bounds = array<i64: 8, 256>}]} {
    %c0_i32 = arith.constant 0 : i32
    %0 = arith.cmpi eq, %arg0, %c0_i32 : i32
    %c0_i32_0 = arith.constant 0 : i32
    %1 = arith.cmpi eq, %arg1, %c0_i32_0 : i32
    %2 = arith.andi %0, %1 : i1
    %3 = arith.extui %2 : i1 to i32
    %c0_i32_1 = arith.constant 0 : i32
    %4 = arith.cmpi ne, %3, %c0_i32_1 : i32
    scf.if %4 {
      %cst_32 = arith.constant 0.000000e+00 : f32
      %50 = vector.broadcast %cst_32 : f32 to vector<8x128xf32>
      %c0_33 = arith.constant 0 : index
      %c0_34 = arith.constant 0 : index
      %51 = vector.load %arg10[%c0_33, %c0_34] : memref<8x128xf32, #tpu.memory_space<vmem>>, vector<8x128xf32>
      tpu.vector_store %arg10[%c0_33, %c0_34], %50 {strides = array<i32>} : memref<8x128xf32, #tpu.memory_space<vmem>>, vector<8x128xf32>,
      %cst_35 = arith.constant 0.000000e+00 : f32
      %52 = vector.broadcast %cst_35 : f32 to vector<8x128xf32>
      %c0_36 = arith.constant 0 : index
      %c0_37 = arith.constant 0 : index
      %53 = vector.load %arg11[%c0_36, %c0_37] : memref<8x128xf32, #tpu.memory_space<vmem>>, vector<8x128xf32>
      tpu.vector_store %arg11[%c0_36, %c0_37], %52 {strides = array<i32>} : memref<8x128xf32, #tpu.memory_space<vmem>>, vector<8x128xf32>,
      %cst_38 = arith.constant 0.000000e+00 : f32
      %54 = vector.broadcast %cst_38 : f32 to vector<8x256xf32>
      %c0_39 = arith.constant 0 : index
      %c0_40 = arith.constant 0 : index
      %55 = vector.load %arg12[%c0_39, %c0_40] : memref<8x256xf32, #tpu.memory_space<vmem>>, vector<8x256xf32>
      tpu.vector_store %arg12[%c0_39, %c0_40], %54 {strides = array<i32>} : memref<8x256xf32, #tpu.memory_space<vmem>>, vector<8x256xf32>,
      %cst_41 = arith.constant 0.000000e+00 : f32
      %56 = vector.broadcast %cst_41 : f32 to vector<8x256xf32>
      %c0_42 = arith.constant 0 : index
      %c0_43 = arith.constant 0 : index
      %57 = vector.load %arg13[%c0_42, %c0_43] : memref<8x256xf32, #tpu.memory_space<vmem>>, vector<8x256xf32>
      tpu.vector_store %arg13[%c0_42, %c0_43], %56 {strides = array<i32>} : memref<8x256xf32, #tpu.memory_space<vmem>>, vector<8x256xf32>,
    } else {
    }
    %c0_i32_2 = arith.constant 0 : i32
    %5 = arith.cmpi eq, %arg1, %c0_i32_2 : i32
    %6 = arith.extui %5 : i1 to i32
    %c0_i32_3 = arith.constant 0 : i32
    %7 = arith.cmpi ne, %6, %c0_i32_3 : i32
    scf.if %7 {
      %c0_32 = arith.constant 0 : index
      %c0_33 = arith.constant 0 : index
      %50 = vector.load %arg10[%c0_32, %c0_33] : memref<8x128xf32, #tpu.memory_space<vmem>>, vector<8x128xf32>
      %c0_34 = arith.constant 0 : index
      %c0_35 = arith.constant 0 : index
      %51 = vector.load %arg11[%c0_34, %c0_35] : memref<8x128xf32, #tpu.memory_space<vmem>>, vector<8x128xf32>
      %c0_36 = arith.constant 0 : index
      %c0_37 = arith.constant 0 : index
      %52 = vector.load %arg12[%c0_36, %c0_37] : memref<8x256xf32, #tpu.memory_space<vmem>>, vector<8x128xf32>
      %c0_38 = arith.constant 0 : index
      %c0_39 = arith.constant 0 : index
      %53 = vector.load %arg13[%c0_38, %c0_39] : memref<8x256xf32, #tpu.memory_space<vmem>>, vector<8x128xf32>
      %c0_40 = arith.constant 0 : index
      %c0_41 = arith.constant 0 : index
      %54 = vector.load %arg5[%c0_40, %c0_41] : memref<384x512xf32, #tpu.memory_space<vmem>>, vector<384x512xf32>
      %c0_42 = arith.constant 0 : index
      %c0_43 = arith.constant 0 : index
      %55 = vector.load %arg6[%c0_42, %c0_43] : memref<1x512xf32, #tpu.memory_space<vmem>>, vector<1x512xf32>
      %56 = tpu.concatenate %50, %51, %52 in 1 : vector<8x128xf32>, vector<8x128xf32>, vector<8x128xf32> -> vector<8x384xf32>
      %cst_44 = arith.constant dense<0.000000e+00> : vector<8x512xf32>
      %57 = tpu.matmul %56, %54, %cst_44 {dimension_numbers = #tpu.dot_dimension_numbers<[1], [0], [0], [1], [0, 0, 1, 1], [], []>} : vector<8x384xf32>, vector<384x512xf32>, vector<8x512xf32> -> vector<8x512xf32>
      %58 = vector.broadcast %55 : vector<1x512xf32> to vector<8x512xf32>
      %59 = arith.addf %57, %58 : vector<8x512xf32>
      %60 = vector.extract_strided_slice %59 {offsets = [0, 0], sizes = [8, 128], strides = [1, 1]} : vector<8x512xf32> to vector<8x128xf32>
      %61 = arith.negf %60 : vector<8x128xf32>
      %62 = math.exp %61 : vector<8x128xf32>
      %cst_45 = arith.constant 1.000000e+00 : f32
      %63 = vector.broadcast %cst_45 : f32 to vector<8x128xf32>
      %64 = arith.addf %63, %62 : vector<8x128xf32>
      %65 = arith.divf %63, %64 : vector<8x128xf32>
      %66 = vector.extract_strided_slice %59 {offsets = [0, 128], sizes = [8, 128], strides = [1, 1]} : vector<8x512xf32> to vector<8x128xf32>
      %67 = arith.negf %66 : vector<8x128xf32>
      %68 = math.exp %67 : vector<8x128xf32>
      %cst_46 = arith.constant 1.000000e+00 : f32
      %69 = vector.broadcast %cst_46 : f32 to vector<8x128xf32>
      %70 = arith.addf %69, %68 : vector<8x128xf32>
      %71 = arith.divf %69, %70 : vector<8x128xf32>
      %72 = vector.extract_strided_slice %59 {offsets = [0, 256], sizes = [8, 128], strides = [1, 1]} : vector<8x512xf32> to vector<8x128xf32>
      %73 = math.tanh %72 : vector<8x128xf32>
      %74 = vector.extract_strided_slice %59 {offsets = [0, 384], sizes = [8, 128], strides = [1, 1]} : vector<8x512xf32> to vector<8x128xf32>
      %75 = arith.negf %74 : vector<8x128xf32>
      %76 = math.exp %75 : vector<8x128xf32>
      %cst_47 = arith.constant 1.000000e+00 : f32
      %77 = vector.broadcast %cst_47 : f32 to vector<8x128xf32>
      %78 = arith.addf %77, %76 : vector<8x128xf32>
      %79 = arith.divf %77, %78 : vector<8x128xf32>
      %80 = arith.mulf %71, %53 : vector<8x128xf32>
      %81 = arith.mulf %65, %73 : vector<8x128xf32>
      %82 = arith.addf %80, %81 : vector<8x128xf32>
      %83 = math.tanh %82 : vector<8x128xf32>
      %84 = arith.mulf %79, %83 : vector<8x128xf32>
      %c0_48 = arith.constant 0 : index
      %c0_49 = arith.constant 0 : index
      %85 = vector.load %arg13[%c0_48, %c0_49] : memref<8x256xf32, #tpu.memory_space<vmem>>, vector<8x128xf32>
      tpu.vector_store %arg13[%c0_48, %c0_49], %82 {strides = array<i32>} : memref<8x256xf32, #tpu.memory_space<vmem>>, vector<8x128xf32>,
      %c0_50 = arith.constant 0 : index
      %c0_51 = arith.constant 0 : index
      %86 = vector.load %arg12[%c0_50, %c0_51] : memref<8x256xf32, #tpu.memory_space<vmem>>, vector<8x128xf32>
      tpu.vector_store %arg12[%c0_50, %c0_51], %84 {strides = array<i32>} : memref<8x256xf32, #tpu.memory_space<vmem>>, vector<8x128xf32>,
      %c0_52 = arith.constant 0 : index
      %c128 = arith.constant 128 : index
      %87 = vector.load %arg12[%c0_52, %c128] : memref<8x256xf32, #tpu.memory_space<vmem>>, vector<8x128xf32>
      %c0_53 = arith.constant 0 : index
      %c128_54 = arith.constant 128 : index
      %88 = vector.load %arg13[%c0_53, %c128_54] : memref<8x256xf32, #tpu.memory_space<vmem>>, vector<8x128xf32>
      %c0_55 = arith.constant 0 : index
      %c0_56 = arith.constant 0 : index
      %89 = vector.load %arg7[%c0_55, %c0_56] : memref<256x512xf32, #tpu.memory_space<vmem>>, vector<256x512xf32>
      %c0_57 = arith.constant 0 : index
      %c0_58 = arith.constant 0 : index
      %90 = vector.load %arg8[%c0_57, %c0_58] : memref<1x512xf32, #tpu.memory_space<vmem>>, vector<1x512xf32>
      %91 = tpu.concatenate %84, %87 in 1 : vector<8x128xf32>, vector<8x128xf32> -> vector<8x256xf32>
      %cst_59 = arith.constant dense<0.000000e+00> : vector<8x512xf32>
      %92 = tpu.matmul %91, %89, %cst_59 {dimension_numbers = #tpu.dot_dimension_numbers<[1], [0], [0], [1], [0, 0, 1, 1], [], []>} : vector<8x256xf32>, vector<256x512xf32>, vector<8x512xf32> -> vector<8x512xf32>
      %93 = vector.broadcast %90 : vector<1x512xf32> to vector<8x512xf32>
      %94 = arith.addf %92, %93 : vector<8x512xf32>
      %95 = vector.extract_strided_slice %94 {offsets = [0, 0], sizes = [8, 128], strides = [1, 1]} : vector<8x512xf32> to vector<8x128xf32>
      %96 = arith.negf %95 : vector<8x128xf32>
      %97 = math.exp %96 : vector<8x128xf32>
      %cst_60 = arith.constant 1.000000e+00 : f32
      %98 = vector.broadcast %cst_60 : f32 to vector<8x128xf32>
      %99 = arith.addf %98, %97 : vector<8x128xf32>
      %100 = arith.divf %98, %99 : vector<8x128xf32>
      %101 = vector.extract_strided_slice %94 {offsets = [0, 128], sizes = [8, 128], strides = [1, 1]} : vector<8x512xf32> to vector<8x128xf32>
      %102 = arith.negf %101 : vector<8x128xf32>
      %103 = math.exp %102 : vector<8x128xf32>
      %cst_61 = arith.constant 1.000000e+00 : f32
      %104 = vector.broadcast %cst_61 : f32 to vector<8x128xf32>
      %105 = arith.addf %104, %103 : vector<8x128xf32>
      %106 = arith.divf %104, %105 : vector<8x128xf32>
      %107 = vector.extract_strided_slice %94 {offsets = [0, 256], sizes = [8, 128], strides = [1, 1]} : vector<8x512xf32> to vector<8x128xf32>
      %108 = math.tanh %107 : vector<8x128xf32>
      %109 = vector.extract_strided_slice %94 {offsets = [0, 384], sizes = [8, 128], strides = [1, 1]} : vector<8x512xf32> to vector<8x128xf32>
      %110 = arith.negf %109 : vector<8x128xf32>
      %111 = math.exp %110 : vector<8x128xf32>
      %cst_62 = arith.constant 1.000000e+00 : f32
      %112 = vector.broadcast %cst_62 : f32 to vector<8x128xf32>
      %113 = arith.addf %112, %111 : vector<8x128xf32>
      %114 = arith.divf %112, %113 : vector<8x128xf32>
      %115 = arith.mulf %106, %88 : vector<8x128xf32>
      %116 = arith.mulf %100, %108 : vector<8x128xf32>
      %117 = arith.addf %115, %116 : vector<8x128xf32>
      %118 = math.tanh %117 : vector<8x128xf32>
      %119 = arith.mulf %114, %118 : vector<8x128xf32>
      %c0_63 = arith.constant 0 : index
      %c128_64 = arith.constant 128 : index
      %120 = vector.load %arg13[%c0_63, %c128_64] : memref<8x256xf32, #tpu.memory_space<vmem>>, vector<8x128xf32>
      tpu.vector_store %arg13[%c0_63, %c128_64], %117 {strides = array<i32>} : memref<8x256xf32, #tpu.memory_space<vmem>>, vector<8x128xf32>,
      %c0_65 = arith.constant 0 : index
      %c128_66 = arith.constant 128 : index
      %121 = vector.load %arg12[%c0_65, %c128_66] : memref<8x256xf32, #tpu.memory_space<vmem>>, vector<8x128xf32>
      tpu.vector_store %arg12[%c0_65, %c128_66], %119 {strides = array<i32>} : memref<8x256xf32, #tpu.memory_space<vmem>>, vector<8x128xf32>,
      %c0_67 = arith.constant 0 : index
      %c0_68 = arith.constant 0 : index
      %122 = vector.load %arg10[%c0_67, %c0_68] : memref<8x128xf32, #tpu.memory_space<vmem>>, vector<8x128xf32>
      tpu.vector_store %arg10[%c0_67, %c0_68], %119 {strides = array<i32>} : memref<8x128xf32, #tpu.memory_space<vmem>>, vector<8x128xf32>,
      %cst_69 = arith.constant 0.000000e+00 : f32
      %123 = vector.broadcast %cst_69 : f32 to vector<8x128xf32>
      %c0_70 = arith.constant 0 : index
      %c0_71 = arith.constant 0 : index
      %124 = vector.load %arg11[%c0_70, %c0_71] : memref<8x128xf32, #tpu.memory_space<vmem>>, vector<8x128xf32>
      tpu.vector_store %arg11[%c0_70, %c0_71], %123 {strides = array<i32>} : memref<8x128xf32, #tpu.memory_space<vmem>>, vector<8x128xf32>,
      %cst_72 = arith.constant -1.000000e+30 : f32
      %125 = vector.broadcast %cst_72 : f32 to vector<8x1xf32>
      %c0_73 = arith.constant 0 : index
      %c0_74 = arith.constant 0 : index
      %126 = vector.load %arg14[%c0_73, %c0_74] : memref<8x1xf32, #tpu.memory_space<vmem>>, vector<8x1xf32>
      tpu.vector_store %arg14[%c0_73, %c0_74], %125 {strides = array<i32>} : memref<8x1xf32, #tpu.memory_space<vmem>>, vector<8x1xf32>,
      %cst_75 = arith.constant 0.000000e+00 : f32
      %127 = vector.broadcast %cst_75 : f32 to vector<8x1xf32>
      %c0_76 = arith.constant 0 : index
      %c0_77 = arith.constant 0 : index
      %128 = vector.load %arg15[%c0_76, %c0_77] : memref<8x1xf32, #tpu.memory_space<vmem>>, vector<8x1xf32>
      tpu.vector_store %arg15[%c0_76, %c0_77], %127 {strides = array<i32>} : memref<8x1xf32, #tpu.memory_space<vmem>>, vector<8x1xf32>,
    } else {
    }
    %c0 = arith.constant 0 : index
    %c0_4 = arith.constant 0 : index
    %8 = vector.load %arg3[%c0, %c0_4] : memref<128x128xf32, #tpu.memory_space<vmem>>, vector<128x128xf32>
    %c0_5 = arith.constant 0 : index
    %c0_6 = arith.constant 0 : index
    %9 = vector.load %arg2[%c0_5, %c0_6] : memref<1x128xi32, #tpu.memory_space<vmem>>, vector<1x128xi32>
    %c0_7 = arith.constant 0 : index
    %c0_8 = arith.constant 0 : index
    %10 = vector.load %arg10[%c0_7, %c0_8] : memref<8x128xf32, #tpu.memory_space<vmem>>, vector<8x128xf32>
    %11 = tpu.iota {dimensions = array<i32: 0>} : vector<8x128xi32>
    %12 = vector.broadcast %9 : vector<1x128xi32> to vector<8x128xi32>
    %13 = arith.cmpi eq, %11, %12 : vector<8x128xi32>
    %c0_9 = arith.constant 0 : index
    %c0_10 = arith.constant 0 : index
    %14 = vector.load %arg4[%c0_9, %c0_10] : memref<128x128xf32, #tpu.memory_space<vmem>>, vector<128x128xf32>
    %cst = arith.constant dense<0.000000e+00> : vector<8x128xf32>
    %15 = tpu.matmul %10, %14, %cst {dimension_numbers = #tpu.dot_dimension_numbers<[1], [0], [0], [1], [0, 0, 1, 1], [], []>} : vector<8x128xf32>, vector<128x128xf32>, vector<8x128xf32> -> vector<8x128xf32>
    %cst_11 = arith.constant -1.000000e+30 : f32
    %16 = vector.broadcast %cst_11 : f32 to vector<8x128xf32>
    %17 = arith.select %13, %15, %16 : vector<8x128xi1>, vector<8x128xf32>
    %c0_12 = arith.constant 0 : index
    %c0_13 = arith.constant 0 : index
    %18 = vector.load %arg14[%c0_12, %c0_13] : memref<8x1xf32, #tpu.memory_space<vmem>>, vector<8x1xf32>
    %cst_14 = arith.constant dense<0xFF800000> : vector<8xf32>
    %19 = vector.multi_reduction <maximumf>, %17, %cst_14 [1] : vector<8x128xf32> to vector<8xf32>
    %20 = vector.shape_cast %19 : vector<8xf32> to vector<8x1xf32>
    %21 = arith.maximumf %18, %20 : vector<8x1xf32>
    %22 = arith.subf %18, %21 : vector<8x1xf32>
    %23 = math.exp %22 : vector<8x1xf32>
    %24 = vector.broadcast %21 : vector<8x1xf32> to vector<8x128xf32>
    %25 = arith.subf %17, %24 : vector<8x128xf32>
    %26 = math.exp %25 : vector<8x128xf32>
    %cst_15 = arith.constant 0.000000e+00 : f32
    %27 = vector.broadcast %cst_15 : f32 to vector<8x128xf32>
    %28 = arith.select %13, %26, %27 : vector<8x128xi1>, vector<8x128xf32>
    %c0_16 = arith.constant 0 : index
    %c0_17 = arith.constant 0 : index
    %29 = vector.load %arg15[%c0_16, %c0_17] : memref<8x1xf32, #tpu.memory_space<vmem>>, vector<8x1xf32>
    %30 = arith.mulf %23, %29 : vector<8x1xf32>
    %cst_18 = arith.constant dense<0.000000e+00> : vector<8xf32>
    %31 = vector.multi_reduction <add>, %28, %cst_18 [1] : vector<8x128xf32> to vector<8xf32>
    %32 = vector.shape_cast %31 : vector<8xf32> to vector<8x1xf32>
    %33 = arith.addf %30, %32 : vector<8x1xf32>
    %c0_19 = arith.constant 0 : index
    %c0_20 = arith.constant 0 : index
    %34 = vector.load %arg15[%c0_19, %c0_20] : memref<8x1xf32, #tpu.memory_space<vmem>>, vector<8x1xf32>
    tpu.vector_store %arg15[%c0_19, %c0_20], %33 {strides = array<i32>} : memref<8x1xf32, #tpu.memory_space<vmem>>, vector<8x1xf32>,
    %c0_21 = arith.constant 0 : index
    %c0_22 = arith.constant 0 : index
    %35 = vector.load %arg11[%c0_21, %c0_22] : memref<8x128xf32, #tpu.memory_space<vmem>>, vector<8x128xf32>
    %36 = vector.broadcast %23 : vector<8x1xf32> to vector<8x128xf32>
    %37 = arith.mulf %36, %35 : vector<8x128xf32>
    %cst_23 = arith.constant dense<0.000000e+00> : vector<8x128xf32>
    %38 = tpu.matmul %28, %8, %cst_23 {dimension_numbers = #tpu.dot_dimension_numbers<[1], [0], [0], [1], [0, 0, 1, 1], [], []>} : vector<8x128xf32>, vector<128x128xf32>, vector<8x128xf32> -> vector<8x128xf32>
    %39 = arith.addf %37, %38 : vector<8x128xf32>
    %c0_24 = arith.constant 0 : index
    %c0_25 = arith.constant 0 : index
    %40 = vector.load %arg11[%c0_24, %c0_25] : memref<8x128xf32, #tpu.memory_space<vmem>>, vector<8x128xf32>
    tpu.vector_store %arg11[%c0_24, %c0_25], %39 {strides = array<i32>} : memref<8x128xf32, #tpu.memory_space<vmem>>, vector<8x128xf32>,
    %c0_26 = arith.constant 0 : index
    %c0_27 = arith.constant 0 : index
    %41 = vector.load %arg14[%c0_26, %c0_27] : memref<8x1xf32, #tpu.memory_space<vmem>>, vector<8x1xf32>
    tpu.vector_store %arg14[%c0_26, %c0_27], %21 {strides = array<i32>} : memref<8x1xf32, #tpu.memory_space<vmem>>, vector<8x1xf32>,
    %c0_i32_28 = arith.constant 0 : i32
    %42 = arith.cmpi eq, %arg1, %c0_i32_28 : i32
    %43 = arith.extui %42 : i1 to i32
    %c0_i32_29 = arith.constant 0 : i32
    %44 = arith.cmpi ne, %43, %c0_i32_29 : i32
    scf.if %44 {
      %c0_32 = arith.constant 0 : index
      %c0_33 = arith.constant 0 : index
      %50 = vector.load %arg15[%c0_32, %c0_33] : memref<8x1xf32, #tpu.memory_space<vmem>>, vector<8x1xf32>
      %cst_34 = arith.constant 0.000000e+00 : f32
      %51 = vector.broadcast %cst_34 : f32 to vector<8x1xf32>
      %52 = arith.cmpf ogt, %50, %51 : vector<8x1xf32>
      %cst_35 = arith.constant 1.000000e+00 : f32
      %53 = vector.broadcast %cst_35 : f32 to vector<8x1xf32>
      %54 = arith.select %52, %50, %53 : vector<8x1xi1>, vector<8x1xf32>
      %c0_36 = arith.constant 0 : index
      %c0_37 = arith.constant 0 : index
      %55 = vector.load %arg11[%c0_36, %c0_37] : memref<8x128xf32, #tpu.memory_space<vmem>>, vector<8x128xf32>
      %56 = tpu.reciprocal %54 {approx = true} : vector<8x1xf32> -> vector<8x1xf32>
      %57 = vector.broadcast %56 : vector<8x1xf32> to vector<8x128xf32>
      %58 = arith.mulf %55, %57 : vector<8x128xf32>
      %c0_38 = arith.constant 0 : index
      %c0_39 = arith.constant 0 : index
      %59 = vector.load %arg11[%c0_38, %c0_39] : memref<8x128xf32, #tpu.memory_space<vmem>>, vector<8x128xf32>
      tpu.vector_store %arg11[%c0_38, %c0_39], %58 {strides = array<i32>} : memref<8x128xf32, #tpu.memory_space<vmem>>, vector<8x128xf32>,
    } else {
    }
    %c2_i32 = arith.constant 2 : i32
    %45 = arith.cmpi eq, %arg0, %c2_i32 : i32
    %c0_i32_30 = arith.constant 0 : i32
    %46 = arith.cmpi eq, %arg1, %c0_i32_30 : i32
    %47 = arith.andi %45, %46 : i1
    %48 = arith.extui %47 : i1 to i32
    %c0_i32_31 = arith.constant 0 : i32
    %49 = arith.cmpi ne, %48, %c0_i32_31 : i32
    scf.if %49 {
      %c0_32 = arith.constant 0 : index
      %c0_33 = arith.constant 0 : index
      %50 = vector.load %arg10[%c0_32, %c0_33] : memref<8x128xf32, #tpu.memory_space<vmem>>, vector<8x128xf32>
      %c0_34 = arith.constant 0 : index
      %c0_35 = arith.constant 0 : index
      %51 = vector.load %arg9[%c0_34, %c0_35] : memref<8x256xf32, #tpu.memory_space<vmem>>, vector<8x128xf32>
      tpu.vector_store %arg9[%c0_34, %c0_35], %50 {strides = array<i32>} : memref<8x256xf32, #tpu.memory_space<vmem>>, vector<8x128xf32>,
      %c0_36 = arith.constant 0 : index
      %c0_37 = arith.constant 0 : index
      %52 = vector.load %arg11[%c0_36, %c0_37] : memref<8x128xf32, #tpu.memory_space<vmem>>, vector<8x128xf32>
      %c0_38 = arith.constant 0 : index
      %c128 = arith.constant 128 : index
      %53 = vector.load %arg9[%c0_38, %c128] : memref<8x256xf32, #tpu.memory_space<vmem>>, vector<8x128xf32>
      tpu.vector_store %arg9[%c0_38, %c128], %52 {strides = array<i32>} : memref<8x256xf32, #tpu.memory_space<vmem>>, vector<8x128xf32>,
    } else {
    }
    return
  }
  func.func @transform_0(%arg0: i32, %arg1: i32) -> (i32, i32) {
    %c0_i32 = arith.constant 0 : i32
    %c0_i32_0 = arith.constant 0 : i32
    %c0_i32_1 = arith.constant 0 : i32
    return %c0_i32, %c0_i32_0 : i32, i32
  }
  func.func @transform_1(%arg0: i32, %arg1: i32) -> (i32, i32) {
    %c0_i32 = arith.constant 0 : i32
    %c0_i32_0 = arith.constant 0 : i32
    %c0_i32_1 = arith.constant 0 : i32
    return %c0_i32, %c0_i32_0 : i32, i32
  }
  func.func @transform_2(%arg0: i32, %arg1: i32) -> (i32, i32) {
    %c0_i32 = arith.constant 0 : i32
    %c0_i32_0 = arith.constant 0 : i32
    %c0_i32_1 = arith.constant 0 : i32
    return %c0_i32, %c0_i32_0 : i32, i32
  }
  func.func @transform_3(%arg0: i32, %arg1: i32) -> (i32, i32) {
    %c0_i32 = arith.constant 0 : i32
    %c0_i32_0 = arith.constant 0 : i32
    %c0_i32_1 = arith.constant 0 : i32
    return %c0_i32, %c0_i32_0 : i32, i32
  }
  func.func @transform_4(%arg0: i32, %arg1: i32) -> (i32, i32) {
    %c0_i32 = arith.constant 0 : i32
    %c0_i32_0 = arith.constant 0 : i32
    %c0_i32_1 = arith.constant 0 : i32
    return %c0_i32, %c0_i32_0 : i32, i32
  }
  func.func @transform_5(%arg0: i32, %arg1: i32) -> (i32, i32) {
    %c0_i32 = arith.constant 0 : i32
    %c0_i32_0 = arith.constant 0 : i32
    %c0_i32_1 = arith.constant 0 : i32
    return %c0_i32, %c0_i32_0 : i32, i32
  }
  func.func @transform_6(%arg0: i32, %arg1: i32) -> (i32, i32) {
    %c0_i32 = arith.constant 0 : i32
    %c0_i32_0 = arith.constant 0 : i32
    %c0_i32_1 = arith.constant 0 : i32
    return %c0_i32, %c0_i32_0 : i32, i32
  }
  func.func @transform_7(%arg0: i32, %arg1: i32) -> (i32, i32) {
    %c0_i32 = arith.constant 0 : i32
    %c0_i32_0 = arith.constant 0 : i32
    %c0_i32_1 = arith.constant 0 : i32
    return %c0_i32, %c0_i32_0 : i32, i32
  }
}

</mosaic_0001>

<llo_original>
// kernel: tpu_custom_call.1
$region0: #{tpu_custom_call.1}
  #allocation0 [shape = 'u32[]', space=smem, size = 0x4, offset = 0x4, fixed_abs, tag = 'smem constant byte address 0x4 - core index']
  #allocation1 [shape = 'u32[72,128]{1,0:T(1,128)}', space=vmem, size = 0x9000, scoped, tag = 'internal scratch']
  #allocation2 [shape = 'f32[8,128]{1,0:T(8,128)}', space=vmem, size = 0x1000, scoped, tag = 'scratch operand']
  #allocation3 [shape = 'f32[8,128]{1,0:T(8,128)}', space=vmem, size = 0x1000, scoped, tag = 'scratch operand']
  #allocation4 [shape = 'f32[8,256]{1,0:T(8,128)}', space=vmem, size = 0x2000, scoped, tag = 'scratch operand']
  #allocation5 [shape = 'f32[8,256]{1,0:T(8,128)}', space=vmem, size = 0x2000, scoped, tag = 'scratch operand']
  #allocation6 [shape = 'f32[8,1]{1,0:T(8,128)}', space=vmem, size = 0x1000, scoped, tag = 'scratch operand']
  #allocation7 [shape = 'f32[8,1]{1,0:T(8,128)}', space=vmem, size = 0x1000, scoped, tag = 'scratch operand']
  %s0 = inlined_call_operand.hbm [shape: s32[1,128], index: 0, kind: input, shape index: {}]
  %s1 = inlined_call_operand.hbm [shape: f32[128,128], index: 1, kind: input, shape index: {}]
  %s2 = inlined_call_operand.hbm [shape: f32[128,128], index: 2, kind: input, shape index: {}]
  %s3 = inlined_call_operand.hbm [shape: f32[384,512], index: 3, kind: input, shape index: {}]
  %s4 = inlined_call_operand.hbm [shape: f32[1,512], index: 4, kind: input, shape index: {}]
  %s5 = inlined_call_operand.hbm [shape: f32[256,512], index: 5, kind: input, shape index: {}]
  %s6 = inlined_call_operand.vmem [shape: f32[1,512], index: 6, kind: input, shape index: {}]
  %s7 = inlined_call_operand.hbm [shape: f32[8,256], index: 7, kind: output, shape index: {}]
  %s8 = sld [smem:[#allocation0]]
  $region101: #{tpu_custom_call.1} parent=0
    _
  %s10 = ssub.s32 1, %s8
  %s11 = scalar_select 0, %s10, %s8
  $region1: #{tpu_custom_call.1} parent=0
    #allocation8 [shape = 'u8[512]{0}', space=vmem, size = 0x400, scoped, tag = 'input window, operand 0, single buffered']
    #allocation9 [shape = 's32[2]{0}', space=sflag, size = 0x8, scoped, tag = 'scoped memory for tpu_custom_call.1']
    #allocation10 [shape = 's32[2]{0}', space=sflag, size = 0x8, scoped, tag = 'scoped memory for tpu_custom_call.1']
    #allocation11 [shape = 'u8[65536]{0}', space=vmem, size = 0x10000, scoped, tag = 'input window, operand 1, single buffered']
    #allocation12 [shape = 's32[1]{0}', space=sflag, size = 0x4, scoped, tag = 'scoped memory for tpu_custom_call.1']
    #allocation13 [shape = 'u8[65536]{0}', space=vmem, size = 0x10000, scoped, tag = 'input window, operand 2, single buffered']
    #allocation14 [shape = 'u8[786432]{0}', space=vmem, size = 0xc0000, scoped, tag = 'input window, operand 3, single buffered']
    #allocation15 [shape = 's32[1]{0}', space=sflag, size = 0x4, scoped, tag = 'scoped memory for tpu_custom_call.1']
    #allocation16 [shape = 'u8[2048]{0}', space=vmem, size = 0x800, scoped, tag = 'input window, operand 4, single buffered']
    #allocation17 [shape = 'u8[524288]{0}', space=vmem, size = 0x80000, scoped, tag = 'input window, operand 5, single buffered']
    #allocation18 [shape = 's32[1]{0}', space=sflag, size = 0x4, scoped, tag = 'scoped memory for tpu_custom_call.1']
    #allocation19 [shape = 'u8[8192]{0}', space=vmem, size = 0x2000, scoped, tag = 'output window, operand 0, single buffered']
    %12 = vsyncpa [#allocation9], 0
    %13 = vsyncpa [#allocation12], 0
    %14 = vsyncpa [#allocation15], 0
    %15 = vsyncpa [#allocation18], 0
    %16 = vsyncpa [#allocation10], 0
    loop: start=0, step=1, limit=5
    $region2: #{tpu_custom_call.1} parent=1 // loop_pre_header
      _
    $region3: #{tpu_custom_call.1} parent=1 // loop_header
      %s18 = sphi 0, %s22
      %p19 = scmp.ge.s32.totalorder %s18, 5
      %s25 = sphi 0, %s37
      %s26 = sphi 0, %s33
      %s27 = sphi 0, %s25
      %s28 = sphi 0, %s26
      %s29 = sphi 0, %s27
      %s30 = sphi 0, %s28
      %s38 = sphi 0, %s38
      %s40 = sphi 0, %s38
      %s41 = sphi 0, %s40
      %s55 = sphi 0, %s41
      %s59 = sphi 0, %s59
      %s61 = sphi 0, %s59
      %s62 = sphi 0, %s61
      %s76 = sphi 0, %s62
      %s80 = sphi 0, %s80
      %s82 = sphi 0, %s80
      %s83 = sphi 0, %s82
      %s97 = sphi 0, %s83
      %s101 = sphi 0, %s101
      %s103 = sphi 0, %s101
      %s104 = sphi 0, %s103
      %s118 = sphi 0, %s104
      %s122 = sphi 0, %s122
      %s124 = sphi 0, %s122
      %s125 = sphi 0, %s124
      %s139 = sphi 0, %s125
      %s143 = sphi 0, %s143
      %s145 = sphi 0, %s143
      %s146 = sphi 0, %s145
      %s160 = sphi 0, %s146
      %s164 = sphi 0, %s164
      %s166 = sphi 0, %s164
      %s167 = sphi 0, %s166
      %s181 = sphi 0, %s167
      %s185 = sphi 0, %s185
      %s187 = sphi 0, %s185
      %s188 = sphi 0, %s187
      %s202 = sphi 0, %s188
    $region4: #{tpu_custom_call.1} parent=1 // loop_header_branch
      %21 = sbr.rel (%p19) target = $region8
    $region5: #{tpu_custom_call.1} parent=1 // loop_body
      %s23 = ssub.s32 %s18, 1
      %s24 = ssub.s32 %s18, 2
      %s31 = sadd.s32 1, %s26
      %p32 = scmp.ge.s32.totalorder %s31, 1
      %s33 = scalar_select %p32, 0, %s31
      %s34 = sadd.s32 1, %s25
      %s35 = scalar_select %p32, %s34, %s25
      %p36 = scmp.ge.s32.totalorder %s35, 3
      %s37 = scalar_select %p36, 0, %s35
      %s39 = sadd.s32 %s38, 1
      %p42 = scmp.eq.s32.totalorder %s18, 2
      %p43 = scmp.ne.s32.totalorder %s38, %s40
      %p44 = scmp.eq.s32.totalorder %s18, 0
      %p45 = por %p43, %p44
      %p46 = scmp.ne.s32.totalorder %s38, %s40
      %p47 = scmp.eq.s32.totalorder %s23, 2
      %p48 = por %p46, %p47
      %p49 = scmp.ne.s32.totalorder %s40, %s41
      %p50 = scmp.eq.s32.totalorder %s23, 0
      %p51 = por %p49, %p50
      %p52 = scmp.ne.s32.totalorder %s40, %s41
      %p53 = scmp.eq.s32.totalorder %s24, 2
      %p54 = por %p52, %p53
      %p56 = scmp.ne.s32.totalorder %s41, %s55
      %p57 = scmp.eq.s32.totalorder %s24, 0
      %p58 = por %p56, %p57
      %s60 = sadd.s32 %s59, 1
      %p63 = scmp.eq.s32.totalorder %s18, 2
      %p64 = scmp.ne.s32.totalorder %s59, %s61
      %p65 = scmp.eq.s32.totalorder %s18, 0
      %p66 = por %p64, %p65
      %p67 = scmp.ne.s32.totalorder %s59, %s61
      %p68 = scmp.eq.s32.totalorder %s23, 2
      %p69 = por %p67, %p68
      %p70 = scmp.ne.s32.totalorder %s61, %s62
      %p71 = scmp.eq.s32.totalorder %s23, 0
      %p72 = por %p70, %p71
      %p73 = scmp.ne.s32.totalorder %s61, %s62
      %p74 = scmp.eq.s32.totalorder %s24, 2
      %p75 = por %p73, %p74
      %p77 = scmp.ne.s32.totalorder %s62, %s76
      %p78 = scmp.eq.s32.totalorder %s24, 0
      %p79 = por %p77, %p78
      %s81 = sadd.s32 %s80, 1
      %p84 = scmp.eq.s32.totalorder %s18, 2
      %p85 = scmp.ne.s32.totalorder %s80, %s82
      %p86 = scmp.eq.s32.totalorder %s18, 0
      %p87 = por %p85, %p86
      %p88 = scmp.ne.s32.totalorder %s80, %s82
      %p89 = scmp.eq.s32.totalorder %s23, 2
      %p90 = por %p88, %p89
      %p91 = scmp.ne.s32.totalorder %s82, %s83
      %p92 = scmp.eq.s32.totalorder %s23, 0
      %p93 = por %p91, %p92
      %p94 = scmp.ne.s32.totalorder %s82, %s83
      %p95 = scmp.eq.s32.totalorder %s24, 2
      %p96 = por %p94, %p95
      %p98 = scmp.ne.s32.totalorder %s83, %s97
      %p99 = scmp.eq.s32.totalorder %s24, 0
      %p100 = por %p98, %p99
      %s102 = sadd.s32 %s101, 1
      %p105 = scmp.eq.s32.totalorder %s18, 2
      %p106 = scmp.ne.s32.totalorder %s101, %s103
      %p107 = scmp.eq.s32.totalorder %s18, 0
      %p108 = por %p106, %p107
      %p109 = scmp.ne.s32.totalorder %s101, %s103
      %p110 = scmp.eq.s32.totalorder %s23, 2
      %p111 = por %p109, %p110
      %p112 = scmp.ne.s32.totalorder %s103, %s104
      %p113 = scmp.eq.s32.totalorder %s23, 0
      %p114 = por %p112, %p113
      %p115 = scmp.ne.s32.totalorder %s103, %s104
      %p116 = scmp.eq.s32.totalorder %s24, 2
      %p117 = por %p115, %p116
      %p119 = scmp.ne.s32.totalorder %s104, %s118
      %p120 = scmp.eq.s32.totalorder %s24, 0
      %p121 = por %p119, %p120
      %s123 = sadd.s32 %s122, 1
      %p126 = scmp.eq.s32.totalorder %s18, 2
      %p127 = scmp.ne.s32.totalorder %s122, %s124
      %p128 = scmp.eq.s32.totalorder %s18, 0
      %p129 = por %p127, %p128
      %p130 = scmp.ne.s32.totalorder %s122, %s124
      %p131 = scmp.eq.s32.totalorder %s23, 2
      %p132 = por %p130, %p131
      %p133 = scmp.ne.s32.totalorder %s124, %s125
      %p134 = scmp.eq.s32.totalorder %s23, 0
      %p135 = por %p133, %p134
      %p136 = scmp.ne.s32.totalorder %s124, %s125
      %p137 = scmp.eq.s32.totalorder %s24, 2
      %p138 = por %p136, %p137
      %p140 = scmp.ne.s32.totalorder %s125, %s139
      %p141 = scmp.eq.s32.totalorder %s24, 0
      %p142 = por %p140, %p141
      %s144 = sadd.s32 %s143, 1
      %p147 = scmp.eq.s32.totalorder %s18, 2
      %p148 = scmp.ne.s32.totalorder %s143, %s145
      %p149 = scmp.eq.s32.totalorder %s18, 0
      %p150 = por %p148, %p149
      %p151 = scmp.ne.s32.totalorder %s143, %s145
      %p152 = scmp.eq.s32.totalorder %s23, 2
      %p153 = por %p151, %p152
      %p154 = scmp.ne.s32.totalorder %s145, %s146
      %p155 = scmp.eq.s32.totalorder %s23, 0
      %p156 = por %p154, %p155
      %p157 = scmp.ne.s32.totalorder %s145, %s146
      %p158 = scmp.eq.s32.totalorder %s24, 2
      %p159 = por %p157, %p158
      %p161 = scmp.ne.s32.totalorder %s146, %s160
      %p162 = scmp.eq.s32.totalorder %s24, 0
      %p163 = por %p161, %p162
      %s165 = sadd.s32 %s164, 1
      %p168 = scmp.eq.s32.totalorder %s18, 2
      %p169 = scmp.ne.s32.totalorder %s164, %s166
      %p170 = scmp.eq.s32.totalorder %s18, 0
      %p171 = por %p169, %p170
      %p172 = scmp.ne.s32.totalorder %s164, %s166
      %p173 = scmp.eq.s32.totalorder %s23, 2
      %p174 = por %p172, %p173
      %p175 = scmp.ne.s32.totalorder %s166, %s167
      %p176 = scmp.eq.s32.totalorder %s23, 0
      %p177 = por %p175, %p176
      %p178 = scmp.ne.s32.totalorder %s166, %s167
      %p179 = scmp.eq.s32.totalorder %s24, 2
      %p180 = por %p178, %p179
      %p182 = scmp.ne.s32.totalorder %s167, %s181
      %p183 = scmp.eq.s32.totalorder %s24, 0
      %p184 = por %p182, %p183
      %s186 = sadd.s32 %s185, 1
      %p189 = scmp.eq.s32.totalorder %s18, 2
      %p190 = scmp.ne.s32.totalorder %s185, %s187
      %p191 = scmp.eq.s32.totalorder %s18, 0
      %p192 = por %p190, %p191
      %p193 = scmp.ne.s32.totalorder %s185, %s187
      %p194 = scmp.eq.s32.totalorder %s23, 2
      %p195 = por %p193, %p194
      %p196 = scmp.ne.s32.totalorder %s187, %s188
      %p197 = scmp.eq.s32.totalorder %s23, 0
      %p198 = por %p196, %p197
      %p199 = scmp.ne.s32.totalorder %s187, %s188
      %p200 = scmp.eq.s32.totalorder %s24, 2
      %p201 = por %p199, %p200
      %p203 = scmp.ne.s32.totalorder %s188, %s202
      %p204 = scmp.eq.s32.totalorder %s24, 0
      %p205 = por %p203, %p204
      %p206 = scmp.le.s32.totalorder 1, %s18
      %p207 = scmp.lt.s32.totalorder %s18, 4
      %p208 = pnand %p206, %p207
      %p209 = pneg %p208
      // Predicated region
      $region9: #{tpu_custom_call.1} parent=5 // pred_check
        _
      $region10: #{tpu_custom_call.1} parent=5 // pred_check_branch
        %211 = sbr.rel (%p208) target = $region12
      $region11: #{tpu_custom_call.1} parent=5 // pred_region
        %s212 = ssub.s32 %s18, 1
        // Predicated region
        $region13: #{tpu_custom_call.1} parent=11 // pred_check
          %p213 = pneg %p51
        $region14: #{tpu_custom_call.1} parent=11 // pred_check_branch
          %215 = sbr.rel (%p213) target = $region16
        $region15: #{tpu_custom_call.1} parent=11 // pred_region
          %217 = vsyncadd [#allocation9], 0
          %s219 = sshll.u32 %s0, 4
          %s220 = int_to_ptr.hbm [resolvable:$true] %s219
          %s221 = sshll.u32 [#allocation8], 4
          %s222 = int_to_ptr.vmem [resolvable:$true] %s221
          %224 = dma.hbm_to_vmem [thread:$0]  %s220, 16, %s222, [#allocation9]
        $region16: #{tpu_custom_call.1} parent=11 // pred_fallthru
          _
        // Predicated region
        $region17: #{tpu_custom_call.1} parent=11 // pred_check
          %p225 = pneg %p72
        $region18: #{tpu_custom_call.1} parent=11 // pred_check_branch
          %227 = sbr.rel (%p225) target = $region20
        $region19: #{tpu_custom_call.1} parent=11 // pred_region
          %229 = vsyncadd [#allocation12], 0
          %s230 = sshll.u32 %s1, 4
          %s231 = int_to_ptr.hbm [resolvable:$true] %s230
          %s232 = sshll.u32 [#allocation11], 4
          %s233 = int_to_ptr.vmem [resolvable:$true] %s232
          %238 = dma.hbm_to_vmem [thread:$0]  %s231, 2048, %s233, [#allocation12], 128, 128, 8
        $region20: #{tpu_custom_call.1} parent=11 // pred_fallthru
          _
        // Predicated region
        $region21: #{tpu_custom_call.1} parent=11 // pred_check
          %p239 = pneg %p93
        $region22: #{tpu_custom_call.1} parent=11 // pred_check_branch
          %241 = sbr.rel (%p239) target = $region24
        $region23: #{tpu_custom_call.1} parent=11 // pred_region
          %243 = vsyncadd [#allocation12], 0
          %s244 = sshll.u32 %s2, 4
          %s245 = int_to_ptr.hbm [resolvable:$true] %s244
          %s246 = sshll.u32 [#allocation13], 4
          %s247 = int_to_ptr.vmem [resolvable:$true] %s246
          %252 = dma.hbm_to_vmem [thread:$0]  %s245, 2048, %s247, [#allocation12], 128, 128, 8
        $region24: #{tpu_custom_call.1} parent=11 // pred_fallthru
          _
        // Predicated region
        $region25: #{tpu_custom_call.1} parent=11 // pred_check
          %p253 = pneg %p114
        $region26: #{tpu_custom_call.1} parent=11 // pred_check_branch
          %255 = sbr.rel (%p253) target = $region28
        $region27: #{tpu_custom_call.1} parent=11 // pred_region
          %257 = vsyncadd [#allocation15], 0
          %s258 = sshll.u32 %s3, 4
          %s259 = int_to_ptr.hbm [resolvable:$true] %s258
          %s260 = sshll.u32 [#allocation14], 4
          %s261 = int_to_ptr.vmem [resolvable:$true] %s260
          %266 = dma.hbm_to_vmem [thread:$0]  %s259, 24576, %s261, [#allocation15], 512, 512, 32
        $region28: #{tpu_custom_call.1} parent=11 // pred_fallthru
          _
        // Predicated region
        $region29: #{tpu_custom_call.1} parent=11 // pred_check
          %p267 = pneg %p135
        $region30: #{tpu_custom_call.1} parent=11 // pred_check_branch
          %269 = sbr.rel (%p267) target = $region32
        $region31: #{tpu_custom_call.1} parent=11 // pred_region
          %271 = vsyncadd [#allocation15], 0
          %s273 = sshll.u32 %s4, 4
          %s274 = int_to_ptr.hbm [resolvable:$true] %s273
          %s275 = sshll.u32 [#allocation16], 4
          %s276 = int_to_ptr.vmem [resolvable:$true] %s275
          %278 = dma.hbm_to_vmem [thread:$0]  %s274, 64, %s276, [#allocation15]
        $region32: #{tpu_custom_call.1} parent=11 // pred_fallthru
          _
        // Predicated region
        $region33: #{tpu_custom_call.1} parent=11 // pred_check
          %p279 = pneg %p156
        $region34: #{tpu_custom_call.1} parent=11 // pred_check_branch
          %281 = sbr.rel (%p279) target = $region36
        $region35: #{tpu_custom_call.1} parent=11 // pred_region
          %283 = vsyncadd [#allocation18], 0
          %s284 = sshll.u32 %s5, 4
          %s285 = int_to_ptr.hbm [resolvable:$true] %s284
          %s286 = sshll.u32 [#allocation17], 4
          %s287 = int_to_ptr.vmem [resolvable:$true] %s286
          %292 = dma.hbm_to_vmem [thread:$0]  %s285, 16384, %s287, [#allocation18], 512, 512, 32
        $region36: #{tpu_custom_call.1} parent=11 // pred_fallthru
          _
        // Predicated region
        $region37: #{tpu_custom_call.1} parent=11 // pred_check
          %p293 = pneg %p177
        $region38: #{tpu_custom_call.1} parent=11 // pred_check_branch
          %295 = sbr.rel (%p293) target = $region40
        $region39: #{tpu_custom_call.1} parent=11 // pred_region
          _
        $region40: #{tpu_custom_call.1} parent=11 // pred_fallthru
          _
      $region12: #{tpu_custom_call.1} parent=5 // pred_fallthru
        _
      %p296 = scmp.lt.s32.totalorder %s18, 3
      // Predicated region
      $region41: #{tpu_custom_call.1} parent=5 // pred_check
        %p297 = pneg %p296
      $region42: #{tpu_custom_call.1} parent=5 // pred_check_branch
        %299 = sbr.rel (%p297) target = $region44
      $region43: #{tpu_custom_call.1} parent=5 // pred_region
        _
      $region44: #{tpu_custom_call.1} parent=5 // pred_fallthru
        _
      %p300 = scmp.le.s32.totalorder 1, %s18
      %p301 = scmp.lt.s32.totalorder %s18, 4
      %p302 = pnand %p300, %p301
      %p303 = pneg %p302
      // Predicated region
      $region45: #{tpu_custom_call.1} parent=5 // pred_check
        _
      $region46: #{tpu_custom_call.1} parent=5 // pred_check_branch
        %305 = sbr.rel (%p302) target = $region48
      $region47: #{tpu_custom_call.1} parent=5 // pred_region
        %s306 = ssub.s32 %s18, 1
        // Predicated region
        $region49: #{tpu_custom_call.1} parent=47 // pred_check
          %p307 = pneg %p51
        $region50: #{tpu_custom_call.1} parent=47 // pred_check_branch
          %309 = sbr.rel (%p307) target = $region52
        $region51: #{tpu_custom_call.1} parent=47 // pred_region
          %311 = dma.done [#allocation9], 16
        $region52: #{tpu_custom_call.1} parent=47 // pred_fallthru
          _
        // Predicated region
        $region53: #{tpu_custom_call.1} parent=47 // pred_check
          %p312 = pneg %p72
        $region54: #{tpu_custom_call.1} parent=47 // pred_check_branch
          %314 = sbr.rel (%p312) target = $region56
        $region55: #{tpu_custom_call.1} parent=47 // pred_region
          %316 = dma.done [#allocation12], 2048
        $region56: #{tpu_custom_call.1} parent=47 // pred_fallthru
          _
        // Predicated region
        $region57: #{tpu_custom_call.1} parent=47 // pred_check
          %p317 = pneg %p93
        $region58: #{tpu_custom_call.1} parent=47 // pred_check_branch
          %319 = sbr.rel (%p317) target = $region60
        $region59: #{tpu_custom_call.1} parent=47 // pred_region
          %321 = dma.done [#allocation12], 2048
        $region60: #{tpu_custom_call.1} parent=47 // pred_fallthru
          _
        // Predicated region
        $region61: #{tpu_custom_call.1} parent=47 // pred_check
          %p322 = pneg %p114
        $region62: #{tpu_custom_call.1} parent=47 // pred_check_branch
          %324 = sbr.rel (%p322) target = $region64
        $region63: #{tpu_custom_call.1} parent=47 // pred_region
          %326 = dma.done [#allocation15], 24576
        $region64: #{tpu_custom_call.1} parent=47 // pred_fallthru
          _
        // Predicated region
        $region65: #{tpu_custom_call.1} parent=47 // pred_check
          %p327 = pneg %p135
        $region66: #{tpu_custom_call.1} parent=47 // pred_check_branch
          %329 = sbr.rel (%p327) target = $region68
        $region67: #{tpu_custom_call.1} parent=47 // pred_region
          %331 = dma.done [#allocation15], 64
        $region68: #{tpu_custom_call.1} parent=47 // pred_fallthru
          _
        // Predicated region
        $region69: #{tpu_custom_call.1} parent=47 // pred_check
          %p332 = pneg %p156
        $region70: #{tpu_custom_call.1} parent=47 // pred_check_branch
          %334 = sbr.rel (%p332) target = $region72
        $region71: #{tpu_custom_call.1} parent=47 // pred_region
          %336 = dma.done [#allocation18], 16384
        $region72: #{tpu_custom_call.1} parent=47 // pred_fallthru
          _
        %p337 = pneg %p51
        %p338 = pneg %p48
        %p339 = pneg %p72
        %p340 = pneg %p69
        %p341 = pneg %p93
        %p342 = pneg %p90
        %p343 = pneg %p114
        %p344 = pneg %p111
        %p345 = pneg %p135
        %p346 = pneg %p132
        %p347 = pneg %p156
        %p348 = pneg %p153
        %p349 = pneg %p177
        %p350 = pneg %p174
        %p351 = pneg %p198
        %p352 = pneg %p195
        %p353 = scmp.eq.s32.totalorder %s27, 0
        %p354 = scmp.eq.s32.totalorder %s28, 0
        %p355 = pnand %p353, %p354
        %p356 = pneg %p355
        // Predicated region
        $region73: #{tpu_custom_call.1} parent=47 // pred_check
          _
        $region74: #{tpu_custom_call.1} parent=47 // pred_check_branch
          %358 = sbr.rel (%p355) target = $region76
        $region75: #{tpu_custom_call.1} parent=47 // pred_region
          %359 = vst [vmem:[#allocation2] sm:$0xff] 0.0
          %360 = vst [vmem:[#allocation3] sm:$0xff] 0.0
          %361 = vst [vmem:[#allocation4] sm:$0xff] 0.0
          %362 = vst [vmem:[#allocation4 + $0x8] sm:$0xff] 0.0
          %363 = vst [vmem:[#allocation5] sm:$0xff] 0.0
          %364 = vst [vmem:[#allocation5 + $0x8] sm:$0xff] 0.0
        $region76: #{tpu_custom_call.1} parent=47 // pred_fallthru
          _
        // Predicated region
        $region77: #{tpu_custom_call.1} parent=47 // pred_check
          %p365 = pneg %p354
        $region78: #{tpu_custom_call.1} parent=47 // pred_check_branch
          %367 = sbr.rel (%p365) target = $region80
        $region79: #{tpu_custom_call.1} parent=47 // pred_region
          %v368 = vld [vmem:[#allocation2] sm:$0xff]
          %v369 = vld [vmem:[#allocation3] sm:$0xff]
          %v370 = vld [vmem:[#allocation4] sm:$0xff]
          %v371 = vld [vmem:[#allocation5] sm:$0xff]
          %v372 = vld [vmem:[#allocation14] sm:$0xff]
          %v373 = vld [vmem:[#allocation14 + $0x8] sm:$0xff]
          %v374 = vld [vmem:[#allocation14 + $0x10] sm:$0xff]
          %v375 = vld [vmem:[#allocation14 + $0x18] sm:$0xff]
          %v376 = vld [vmem:[#allocation14 + $0x20] sm:$0xff]
          %v377 = vld [vmem:[#allocation14 + $0x28] sm:$0xff]
          %v378 = vld [vmem:[#allocation14 + $0x30] sm:$0xff]
          %v379 = vld [vmem:[#allocation14 + $0x38] sm:$0xff]
          %v380 = vld [vmem:[#allocation14 + $0x40] sm:$0xff]
          %v381 = vld [vmem:[#allocation14 + $0x48] sm:$0xff]
          %v382 = vld [vmem:[#allocation14 + $0x50] sm:$0xff]
          %v383 = vld [vmem:[#allocation14 + $0x58] sm:$0xff]
          %v384 = vld [vmem:[#allocation14 + $0x60] sm:$0xff]
          %v385 = vld [vmem:[#allocation14 + $0x68] sm:$0xff]
          %v386 = vld [vmem:[#allocation14 + $0x70] sm:$0xff]
          %v387 = vld [vmem:[#allocation14 + $0x78] sm:$0xff]
          %v388 = vld [vmem:[#allocation14 + $0x80] sm:$0xff]
          %v389 = vld [vmem:[#allocation14 + $0x88] sm:$0xff]
          %v390 = vld [vmem:[#allocation14 + $0x90] sm:$0xff]
          %v391 = vld [vmem:[#allocation14 + $0x98] sm:$0xff]
          %v392 = vld [vmem:[#allocation14 + $0xa0] sm:$0xff]
          %v393 = vld [vmem:[#allocation14 + $0xa8] sm:$0xff]
          %v394 = vld [vmem:[#allocation14 + $0xb0] sm:$0xff]
          %v395 = vld [vmem:[#allocation14 + $0xb8] sm:$0xff]
          %v396 = vld [vmem:[#allocation14 + $0xc0] sm:$0xff]
          %v397 = vld [vmem:[#allocation14 + $0xc8] sm:$0xff]
          %v398 = vld [vmem:[#allocation14 + $0xd0] sm:$0xff]
          %v399 = vld [vmem:[#allocation14 + $0xd8] sm:$0xff]
          %v400 = vld [vmem:[#allocation14 + $0xe0] sm:$0xff]
          %v401 = vld [vmem:[#allocation14 + $0xe8] sm:$0xff]
          %v402 = vld [vmem:[#allocation14 + $0xf0] sm:$0xff]
          %v403 = vld [vmem:[#allocation14 + $0xf8] sm:$0xff]
          %v404 = vld [vmem:[#allocation14 + $0x100] sm:$0xff]
          %v405 = vld [vmem:[#allocation14 + $0x108] sm:$0xff]
          %v406 = vld [vmem:[#allocation14 + $0x110] sm:$0xff]
          %v407 = vld [vmem:[#allocation14 + $0x118] sm:$0xff]
          %v408 = vld [vmem:[#allocation14 + $0x120] sm:$0xff]
          %v409 = vld [vmem:[#allocation14 + $0x128] sm:$0xff]
          %v410 = vld [vmem:[#allocation14 + $0x130] sm:$0xff]
          %v411 = vld [vmem:[#allocation14 + $0x138] sm:$0xff]
          %v412 = vld [vmem:[#allocation14 + $0x140] sm:$0xff]
          %v413 = vld [vmem:[#allocation14 + $0x148] sm:$0xff]
          %v414 = vld [vmem:[#allocation14 + $0x150] sm:$0xff]
          %v415 = vld [vmem:[#allocation14 + $0x158] sm:$0xff]
          %v416 = vld [vmem:[#allocation14 + $0x160] sm:$0xff]
          %v417 = vld [vmem:[#allocation14 + $0x168] sm:$0xff]
          %v418 = vld [vmem:[#allocation14 + $0x170] sm:$0xff]
          %v419 = vld [vmem:[#allocation14 + $0x178] sm:$0xff]
          %v420 = vld [vmem:[#allocation14 + $0x180] sm:$0xff]
          %v421 = vld [vmem:[#allocation14 + $0x188] sm:$0xff]
          %v422 = vld [vmem:[#allocation14 + $0x190] sm:$0xff]
          %v423 = vld [vmem:[#allocation14 + $0x198] sm:$0xff]
          %v424 = vld [vmem:[#allocation14 + $0x1a0] sm:$0xff]
          %v425 = vld [vmem:[#allocation14 + $0x1a8] sm:$0xff]
          %v426 = vld [vmem:[#allocation14 + $0x1b0] sm:$0xff]
          %v427 = vld [vmem:[#allocation14 + $0x1b8] sm:$0xff]
          %v428 = vld [vmem:[#allocation14 + $0x1c0] sm:$0xff]
          %v429 = vld [vmem:[#allocation14 + $0x1c8] sm:$0xff]
          %v430 = vld [vmem:[#allocation14 + $0x1d0] sm:$0xff]
          %v431 = vld [vmem:[#allocation14 + $0x1d8] sm:$0xff]
          %v432 = vld [vmem:[#allocation14 + $0x1e0] sm:$0xff]
          %v433 = vld [vmem:[#allocation14 + $0x1e8] sm:$0xff]
          %v434 = vld [vmem:[#allocation14 + $0x1f0] sm:$0xff]
          %v435 = vld [vmem:[#allocation14 + $0x1f8] sm:$0xff]
          %v436 = vld [vmem:[#allocation14 + $0x200] sm:$0xff]
          %v437 = vld [vmem:[#allocation14 + $0x208] sm:$0xff]
          %v438 = vld [vmem:[#allocation14 + $0x210] sm:$0xff]
          %v439 = vld [vmem:[#allocation14 + $0x218] sm:$0xff]
          %v440 = vld [vmem:[#allocation14 + $0x220] sm:$0xff]
          %v441 = vld [vmem:[#allocation14 + $0x228] sm:$0xff]
          %v442 = vld [vmem:[#allocation14 + $0x230] sm:$0xff]
          %v443 = vld [vmem:[#allocation14 + $0x238] sm:$0xff]
          %v444 = vld [vmem:[#allocation14 + $0x240] sm:$0xff]
          %v445 = vld [vmem:[#allocation14 + $0x248] sm:$0xff]
          %v446 = vld [vmem:[#allocation14 + $0x250] sm:$0xff]
          %v447 = vld [vmem:[#allocation14 + $0x258] sm:$0xff]
          %v448 = vld [vmem:[#allocation14 + $0x260] sm:$0xff]
          %v449 = vld [vmem:[#allocation14 + $0x268] sm:$0xff]
          %v450 = vld [vmem:[#allocation14 + $0x270] sm:$0xff]
          %v451 = vld [vmem:[#allocation14 + $0x278] sm:$0xff]
          %v452 = vld [vmem:[#allocation14 + $0x280] sm:$0xff]
          %v453 = vld [vmem:[#allocation14 + $0x288] sm:$0xff]
          %v454 = vld [vmem:[#allocation14 + $0x290] sm:$0xff]
          %v455 = vld [vmem:[#allocation14 + $0x298] sm:$0xff]
          %v456 = vld [vmem:[#allocation14 + $0x2a0] sm:$0xff]
          %v457 = vld [vmem:[#allocation14 + $0x2a8] sm:$0xff]
          %v458 = vld [vmem:[#allocation14 + $0x2b0] sm:$0xff]
          %v459 = vld [vmem:[#allocation14 + $0x2b8] sm:$0xff]
          %v460 = vld [vmem:[#allocation14 + $0x2c0] sm:$0xff]
          %v461 = vld [vmem:[#allocation14 + $0x2c8] sm:$0xff]
          %v462 = vld [vmem:[#allocation14 + $0x2d0] sm:$0xff]
          %v463 = vld [vmem:[#allocation14 + $0x2d8] sm:$0xff]
          %v464 = vld [vmem:[#allocation14 + $0x2e0] sm:$0xff]
          %v465 = vld [vmem:[#allocation14 + $0x2e8] sm:$0xff]
          %v466 = vld [vmem:[#allocation14 + $0x2f0] sm:$0xff]
          %v467 = vld [vmem:[#allocation14 + $0x2f8] sm:$0xff]
          %v468 = vld [vmem:[#allocation14 + $0x300] sm:$0xff]
          %v469 = vld [vmem:[#allocation14 + $0x308] sm:$0xff]
          %v470 = vld [vmem:[#allocation14 + $0x310] sm:$0xff]
          %v471 = vld [vmem:[#allocation14 + $0x318] sm:$0xff]
          %v472 = vld [vmem:[#allocation14 + $0x320] sm:$0xff]
          %v473 = vld [vmem:[#allocation14 + $0x328] sm:$0xff]
          %v474 = vld [vmem:[#allocation14 + $0x330] sm:$0xff]
          %v475 = vld [vmem:[#allocation14 + $0x338] sm:$0xff]
          %v476 = vld [vmem:[#allocation14 + $0x340] sm:$0xff]
          %v477 = vld [vmem:[#allocation14 + $0x348] sm:$0xff]
          %v478 = vld [vmem:[#allocation14 + $0x350] sm:$0xff]
          %v479 = vld [vmem:[#allocation14 + $0x358] sm:$0xff]
          %v480 = vld [vmem:[#allocation14 + $0x360] sm:$0xff]
          %v481 = vld [vmem:[#allocation14 + $0x368] sm:$0xff]
          %v482 = vld [vmem:[#allocation14 + $0x370] sm:$0xff]
          %v483 = vld [vmem:[#allocation14 + $0x378] sm:$0xff]
          %v484 = vld [vmem:[#allocation14 + $0x380] sm:$0xff]
          %v485 = vld [vmem:[#allocation14 + $0x388] sm:$0xff]
          %v486 = vld [vmem:[#allocation14 + $0x390] sm:$0xff]
          %v487 = vld [vmem:[#allocation14 + $0x398] sm:$0xff]
          %v488 = vld [vmem:[#allocation14 + $0x3a0] sm:$0xff]
          %v489 = vld [vmem:[#allocation14 + $0x3a8] sm:$0xff]
          %v490 = vld [vmem:[#allocation14 + $0x3b0] sm:$0xff]
          %v491 = vld [vmem:[#allocation14 + $0x3b8] sm:$0xff]
          %v492 = vld [vmem:[#allocation14 + $0x3c0] sm:$0xff]
          %v493 = vld [vmem:[#allocation14 + $0x3c8] sm:$0xff]
          %v494 = vld [vmem:[#allocation14 + $0x3d0] sm:$0xff]
          %v495 = vld [vmem:[#allocation14 + $0x3d8] sm:$0xff]
          %v496 = vld [vmem:[#allocation14 + $0x3e0] sm:$0xff]
          %v497 = vld [vmem:[#allocation14 + $0x3e8] sm:$0xff]
          %v498 = vld [vmem:[#allocation14 + $0x3f0] sm:$0xff]
          %v499 = vld [vmem:[#allocation14 + $0x3f8] sm:$0xff]
          %v500 = vld [vmem:[#allocation14 + $0x400] sm:$0xff]
          %v501 = vld [vmem:[#allocation14 + $0x408] sm:$0xff]
          %v502 = vld [vmem:[#allocation14 + $0x410] sm:$0xff]
          %v503 = vld [vmem:[#allocation14 + $0x418] sm:$0xff]
          %v504 = vld [vmem:[#allocation14 + $0x420] sm:$0xff]
          %v505 = vld [vmem:[#allocation14 + $0x428] sm:$0xff]
          %v506 = vld [vmem:[#allocation14 + $0x430] sm:$0xff]
          %v507 = vld [vmem:[#allocation14 + $0x438] sm:$0xff]
          %v508 = vld [vmem:[#allocation14 + $0x440] sm:$0xff]
          %v509 = vld [vmem:[#allocation14 + $0x448] sm:$0xff]
          %v510 = vld [vmem:[#allocation14 + $0x450] sm:$0xff]
          %v511 = vld [vmem:[#allocation14 + $0x458] sm:$0xff]
          %v512 = vld [vmem:[#allocation14 + $0x460] sm:$0xff]
          %v513 = vld [vmem:[#allocation14 + $0x468] sm:$0xff]
          %v514 = vld [vmem:[#allocation14 + $0x470] sm:$0xff]
          %v515 = vld [vmem:[#allocation14 + $0x478] sm:$0xff]
          %v516 = vld [vmem:[#allocation14 + $0x480] sm:$0xff]
          %v517 = vld [vmem:[#allocation14 + $0x488] sm:$0xff]
          %v518 = vld [vmem:[#allocation14 + $0x490] sm:$0xff]
          %v519 = vld [vmem:[#allocation14 + $0x498] sm:$0xff]
          %v520 = vld [vmem:[#allocation14 + $0x4a0] sm:$0xff]
          %v521 = vld [vmem:[#allocation14 + $0x4a8] sm:$0xff]
          %v522 = vld [vmem:[#allocation14 + $0x4b0] sm:$0xff]
          %v523 = vld [vmem:[#allocation14 + $0x4b8] sm:$0xff]
          %v524 = vld [vmem:[#allocation14 + $0x4c0] sm:$0xff]
          %v525 = vld [vmem:[#allocation14 + $0x4c8] sm:$0xff]
          %v526 = vld [vmem:[#allocation14 + $0x4d0] sm:$0xff]
          %v527 = vld [vmem:[#allocation14 + $0x4d8] sm:$0xff]
          %v528 = vld [vmem:[#allocation14 + $0x4e0] sm:$0xff]
          %v529 = vld [vmem:[#allocation14 + $0x4e8] sm:$0xff]
          %v530 = vld [vmem:[#allocation14 + $0x4f0] sm:$0xff]
          %v531 = vld [vmem:[#allocation14 + $0x4f8] sm:$0xff]
          %v532 = vld [vmem:[#allocation14 + $0x500] sm:$0xff]
          %v533 = vld [vmem:[#allocation14 + $0x508] sm:$0xff]
          %v534 = vld [vmem:[#allocation14 + $0x510] sm:$0xff]
          %v535 = vld [vmem:[#allocation14 + $0x518] sm:$0xff]
          %v536 = vld [vmem:[#allocation14 + $0x520] sm:$0xff]
          %v537 = vld [vmem:[#allocation14 + $0x528] sm:$0xff]
          %v538 = vld [vmem:[#allocation14 + $0x530] sm:$0xff]
          %v539 = vld [vmem:[#allocation14 + $0x538] sm:$0xff]
          %v540 = vld [vmem:[#allocation14 + $0x540] sm:$0xff]
          %v541 = vld [vmem:[#allocation14 + $0x548] sm:$0xff]
          %v542 = vld [vmem:[#allocation14 + $0x550] sm:$0xff]
          %v543 = vld [vmem:[#allocation14 + $0x558] sm:$0xff]
          %v544 = vld [vmem:[#allocation14 + $0x560] sm:$0xff]
          %v545 = vld [vmem:[#allocation14 + $0x568] sm:$0xff]
          %v546 = vld [vmem:[#allocation14 + $0x570] sm:$0xff]
          %v547 = vld [vmem:[#allocation14 + $0x578] sm:$0xff]
          %v548 = vld [vmem:[#allocation14 + $0x580] sm:$0xff]
          %v549 = vld [vmem:[#allocation14 + $0x588] sm:$0xff]
          %v550 = vld [vmem:[#allocation14 + $0x590] sm:$0xff]
          %v551 = vld [vmem:[#allocation14 + $0x598] sm:$0xff]
          %v552 = vld [vmem:[#allocation14 + $0x5a0] sm:$0xff]
          %v553 = vld [vmem:[#allocation14 + $0x5a8] sm:$0xff]
          %v554 = vld [vmem:[#allocation14 + $0x5b0] sm:$0xff]
          %v555 = vld [vmem:[#allocation14 + $0x5b8] sm:$0xff]
          %v556 = vld [vmem:[#allocation14 + $0x5c0] sm:$0xff]
          %v557 = vld [vmem:[#allocation14 + $0x5c8] sm:$0xff]
          %v558 = vld [vmem:[#allocation14 + $0x5d0] sm:$0xff]
          %v559 = vld [vmem:[#allocation14 + $0x5d8] sm:$0xff]
          %v560 = vld [vmem:[#allocation14 + $0x5e0] sm:$0xff]
          %v561 = vld [vmem:[#allocation14 + $0x5e8] sm:$0xff]
          %v562 = vld [vmem:[#allocation14 + $0x5f0] sm:$0xff]
          %v563 = vld [vmem:[#allocation14 + $0x5f8] sm:$0xff]
          %v564 = vld [vmem:[#allocation16] sm:$0xf]
          %v566 = vperm.slane %v564, 0
          %v567 = vperm.slane %v564, 1
          %v568 = vperm.slane %v564, 2
          %v569 = vperm.slane %v564, 3
          %574 = vmatpush.msra.mxu0 %v432
          %575 = vmatpush.msra.mxu0 %v428
          %576 = vmatpush.msra.mxu0 %v424
          %577 = vmatpush.msra.mxu0 %v420
          %578 = vmatpush.msra.mxu0 %v416
          %579 = vmatpush.msra.mxu0 %v412
          %580 = vmatpush.msra.mxu0 %v408
          %581 = vmatpush.msra.mxu0 %v404
          %582 = vmatpush.msra.mxu0 %v400
          %583 = vmatpush.msra.mxu0 %v396
          %584 = vmatpush.msra.mxu0 %v392
          %585 = vmatpush.msra.mxu0 %v388
          %586 = vmatpush.msra.mxu0 %v384
          %587 = vmatpush.msra.mxu0 %v380
          %588 = vmatpush.msra.mxu0 %v376
          %589 = vmatpush.msra.mxu0 %v372
          %590 = vmatmul.f32.gmra.mxu0 %v368
          %v591 = vpop.f32.mrf.mxu0
          %v592 = vadd.f32 %v566, %v591
          %593 = vdwg.mxu0
          %594 = vmatpush.msra.mxu0 %v496
          %595 = vmatpush.msra.mxu0 %v492
          %596 = vmatpush.msra.mxu0 %v488
          %597 = vmatpush.msra.mxu0 %v484
          %598 = vmatpush.msra.mxu0 %v480
          %599 = vmatpush.msra.mxu0 %v476
          %600 = vmatpush.msra.mxu0 %v472
          %601 = vmatpush.msra.mxu0 %v468
          %602 = vmatpush.msra.mxu0 %v464
          %603 = vmatpush.msra.mxu0 %v460
          %604 = vmatpush.msra.mxu0 %v456
          %605 = vmatpush.msra.mxu0 %v452
          %606 = vmatpush.msra.mxu0 %v448
          %607 = vmatpush.msra.mxu0 %v444
          %608 = vmatpush.msra.mxu0 %v440
          %609 = vmatpush.msra.mxu0 %v436
          %610 = vmatmul.f32.gmra.mxu0 %v369
          %v611 = vpop.f32.mrf.mxu0
          %v612 = vadd.f32 %v592, %v611
          %613 = vdwg.mxu0
          %614 = vmatpush.msra.mxu0 %v560
          %615 = vmatpush.msra.mxu0 %v556
          %616 = vmatpush.msra.mxu0 %v552
          %617 = vmatpush.msra.mxu0 %v548
          %618 = vmatpush.msra.mxu0 %v544
          %619 = vmatpush.msra.mxu0 %v540
          %620 = vmatpush.msra.mxu0 %v536
          %621 = vmatpush.msra.mxu0 %v532
          %622 = vmatpush.msra.mxu0 %v528
          %623 = vmatpush.msra.mxu0 %v524
          %624 = vmatpush.msra.mxu0 %v520
          %625 = vmatpush.msra.mxu0 %v516
          %626 = vmatpush.msra.mxu0 %v512
          %627 = vmatpush.msra.mxu0 %v508
          %628 = vmatpush.msra.mxu0 %v504
          %629 = vmatpush.msra.mxu0 %v500
          %630 = vmatmul.f32.gmra.mxu0 %v370
          %v631 = vpop.f32.mrf.mxu0
          %v632 = vadd.f32 %v612, %v631
          %633 = vdwg.mxu0
          %634 = vmatpush.msra.mxu0 %v433
          %635 = vmatpush.msra.mxu0 %v429
          %636 = vmatpush.msra.mxu0 %v425
          %637 = vmatpush.msra.mxu0 %v421
          %638 = vmatpush.msra.mxu0 %v417
          %639 = vmatpush.msra.mxu0 %v413
          %640 = vmatpush.msra.mxu0 %v409
          %641 = vmatpush.msra.mxu0 %v405
          %642 = vmatpush.msra.mxu0 %v401
          %643 = vmatpush.msra.mxu0 %v397
          %644 = vmatpush.msra.mxu0 %v393
          %645 = vmatpush.msra.mxu0 %v389
          %646 = vmatpush.msra.mxu0 %v385
          %647 = vmatpush.msra.mxu0 %v381
          %648 = vmatpush.msra.mxu0 %v377
          %649 = vmatpush.msra.mxu0 %v373
          %650 = vmatmul.f32.gmra.mxu0 %v368
          %v651 = vpop.f32.mrf.mxu0
          %v652 = vadd.f32 %v567, %v651
          %653 = vdwg.mxu0
          %654 = vmatpush.msra.mxu0 %v497
          %655 = vmatpush.msra.mxu0 %v493
          %656 = vmatpush.msra.mxu0 %v489
          %657 = vmatpush.msra.mxu0 %v485
          %658 = vmatpush.msra.mxu0 %v481
          %659 = vmatpush.msra.mxu0 %v477
          %660 = vmatpush.msra.mxu0 %v473
          %661 = vmatpush.msra.mxu0 %v469
          %662 = vmatpush.msra.mxu0 %v465
          %663 = vmatpush.msra.mxu0 %v461
          %664 = vmatpush.msra.mxu0 %v457
          %665 = vmatpush.msra.mxu0 %v453
          %666 = vmatpush.msra.mxu0 %v449
          %667 = vmatpush.msra.mxu0 %v445
          %668 = vmatpush.msra.mxu0 %v441
          %669 = vmatpush.msra.mxu0 %v437
          %670 = vmatmul.f32.gmra.mxu0 %v369
          %v671 = vpop.f32.mrf.mxu0
          %v672 = vadd.f32 %v652, %v671
          %673 = vdwg.mxu0
          %674 = vmatpush.msra.mxu0 %v561
          %675 = vmatpush.msra.mxu0 %v557
          %676 = vmatpush.msra.mxu0 %v553
          %677 = vmatpush.msra.mxu0 %v549
          %678 = vmatpush.msra.mxu0 %v545
          %679 = vmatpush.msra.mxu0 %v541
          %680 = vmatpush.msra.mxu0 %v537
          %681 = vmatpush.msra.mxu0 %v533
          %682 = vmatpush.msra.mxu0 %v529
          %683 = vmatpush.msra.mxu0 %v525
          %684 = vmatpush.msra.mxu0 %v521
          %685 = vmatpush.msra.mxu0 %v517
          %686 = vmatpush.msra.mxu0 %v513
          %687 = vmatpush.msra.mxu0 %v509
          %688 = vmatpush.msra.mxu0 %v505
          %689 = vmatpush.msra.mxu0 %v501
          %690 = vmatmul.f32.gmra.mxu0 %v370
          %v691 = vpop.f32.mrf.mxu0
          %v692 = vadd.f32 %v672, %v691
          %693 = vdwg.mxu0
          %694 = vmatpush.msra.mxu0 %v434
          %695 = vmatpush.msra.mxu0 %v430
          %696 = vmatpush.msra.mxu0 %v426
          %697 = vmatpush.msra.mxu0 %v422
          %698 = vmatpush.msra.mxu0 %v418
          %699 = vmatpush.msra.mxu0 %v414
          %700 = vmatpush.msra.mxu0 %v410
          %701 = vmatpush.msra.mxu0 %v406
          %702 = vmatpush.msra.mxu0 %v402
          %703 = vmatpush.msra.mxu0 %v398
          %704 = vmatpush.msra.mxu0 %v394
          %705 = vmatpush.msra.mxu0 %v390
          %706 = vmatpush.msra.mxu0 %v386
          %707 = vmatpush.msra.mxu0 %v382
          %708 = vmatpush.msra.mxu0 %v378
          %709 = vmatpush.msra.mxu0 %v374
          %710 = vmatmul.f32.gmra.mxu0 %v368
          %v711 = vpop.f32.mrf.mxu0
          %v712 = vadd.f32 %v568, %v711
          %713 = vdwg.mxu0
          %714 = vmatpush.msra.mxu0 %v498
          %715 = vmatpush.msra.mxu0 %v494
          %716 = vmatpush.msra.mxu0 %v490
          %717 = vmatpush.msra.mxu0 %v486
          %718 = vmatpush.msra.mxu0 %v482
          %719 = vmatpush.msra.mxu0 %v478
          %720 = vmatpush.msra.mxu0 %v474
          %721 = vmatpush.msra.mxu0 %v470
          %722 = vmatpush.msra.mxu0 %v466
          %723 = vmatpush.msra.mxu0 %v462
          %724 = vmatpush.msra.mxu0 %v458
          %725 = vmatpush.msra.mxu0 %v454
          %726 = vmatpush.msra.mxu0 %v450
          %727 = vmatpush.msra.mxu0 %v446
          %728 = vmatpush.msra.mxu0 %v442
          %729 = vmatpush.msra.mxu0 %v438
          %730 = vmatmul.f32.gmra.mxu0 %v369
          %v731 = vpop.f32.mrf.mxu0
          %v732 = vadd.f32 %v712, %v731
          %733 = vdwg.mxu0
          %734 = vmatpush.msra.mxu0 %v562
          %735 = vmatpush.msra.mxu0 %v558
          %736 = vmatpush.msra.mxu0 %v554
          %737 = vmatpush.msra.mxu0 %v550
          %738 = vmatpush.msra.mxu0 %v546
          %739 = vmatpush.msra.mxu0 %v542
          %740 = vmatpush.msra.mxu0 %v538
          %741 = vmatpush.msra.mxu0 %v534
          %742 = vmatpush.msra.mxu0 %v530
          %743 = vmatpush.msra.mxu0 %v526
          %744 = vmatpush.msra.mxu0 %v522
          %745 = vmatpush.msra.mxu0 %v518
          %746 = vmatpush.msra.mxu0 %v514
          %747 = vmatpush.msra.mxu0 %v510
          %748 = vmatpush.msra.mxu0 %v506
          %749 = vmatpush.msra.mxu0 %v502
          %750 = vmatmul.f32.gmra.mxu0 %v370
          %v751 = vpop.f32.mrf.mxu0
          %v752 = vadd.f32 %v732, %v751
          %753 = vdwg.mxu0
          %754 = vmatpush.msra.mxu0 %v435
          %755 = vmatpush.msra.mxu0 %v431
          %756 = vmatpush.msra.mxu0 %v427
          %757 = vmatpush.msra.mxu0 %v423
          %758 = vmatpush.msra.mxu0 %v419
          %759 = vmatpush.msra.mxu0 %v415
          %760 = vmatpush.msra.mxu0 %v411
          %761 = vmatpush.msra.mxu0 %v407
          %762 = vmatpush.msra.mxu0 %v403
          %763 = vmatpush.msra.mxu0 %v399
          %764 = vmatpush.msra.mxu0 %v395
          %765 = vmatpush.msra.mxu0 %v391
          %766 = vmatpush.msra.mxu0 %v387
          %767 = vmatpush.msra.mxu0 %v383
          %768 = vmatpush.msra.mxu0 %v379
          %769 = vmatpush.msra.mxu0 %v375
          %770 = vmatmul.f32.gmra.mxu0 %v368
          %v771 = vpop.f32.mrf.mxu0
          %v772 = vadd.f32 %v569, %v771
          %773 = vdwg.mxu0
          %774 = vmatpush.msra.mxu0 %v499
          %775 = vmatpush.msra.mxu0 %v495
          %776 = vmatpush.msra.mxu0 %v491
          %777 = vmatpush.msra.mxu0 %v487
          %778 = vmatpush.msra.mxu0 %v483
          %779 = vmatpush.msra.mxu0 %v479
          %780 = vmatpush.msra.mxu0 %v475
          %781 = vmatpush.msra.mxu0 %v471
          %782 = vmatpush.msra.mxu0 %v467
          %783 = vmatpush.msra.mxu0 %v463
          %784 = vmatpush.msra.mxu0 %v459
          %785 = vmatpush.msra.mxu0 %v455
          %786 = vmatpush.msra.mxu0 %v451
          %787 = vmatpush.msra.mxu0 %v447
          %788 = vmatpush.msra.mxu0 %v443
          %789 = vmatpush.msra.mxu0 %v439
          %790 = vmatmul.f32.gmra.mxu0 %v369
          %v791 = vpop.f32.mrf.mxu0
          %v792 = vadd.f32 %v772, %v791
          %793 = vdwg.mxu0
          %794 = vmatpush.msra.mxu0 %v563
          %795 = vmatpush.msra.mxu0 %v559
          %796 = vmatpush.msra.mxu0 %v555
          %797 = vmatpush.msra.mxu0 %v551
          %798 = vmatpush.msra.mxu0 %v547
          %799 = vmatpush.msra.mxu0 %v543
          %800 = vmatpush.msra.mxu0 %v539
          %801 = vmatpush.msra.mxu0 %v535
          %802 = vmatpush.msra.mxu0 %v531
          %803 = vmatpush.msra.mxu0 %v527
          %804 = vmatpush.msra.mxu0 %v523
          %805 = vmatpush.msra.mxu0 %v519
          %806 = vmatpush.msra.mxu0 %v515
          %807 = vmatpush.msra.mxu0 %v511
          %808 = vmatpush.msra.mxu0 %v507
          %809 = vmatpush.msra.mxu0 %v503
          %810 = vmatmul.f32.gmra.mxu0 %v370
          %v811 = vpop.f32.mrf.mxu0
          %v812 = vadd.f32 %v792, %v811
          %813 = vdwg.mxu0
          %v814 = vxor.u32 %v632, 2147483648
          %v815 = vmul.f32 %v814, 1.442695
          %v816 = vpow.pop %v815
          %v817 = vadd.f32 %v816, 1.0
          %v818 = vrcp.pop %v817
          %v819 = vmul.f32 %v817, %v818
          %v820 = vsub.f32 1.0, %v819
          %v821 = vmul.f32 %v818, %v820
          %v822 = vadd.f32 %v818, %v821
          %vm823 = vweird.f32 %v817
          %vm824 = vweird.f32 %v818
          %vm825 = vmor %vm823, %vm824
          %v826 = vsel %vm825, %v818, %v822
          %v827 = vand.u32 2147483647, %v817
          %vm828 = vcmp.eq.f32.partialorder %v827, 8.507059e+37
          %v829 = vand.u32 %v817, 2147483648
          %v830 = vor.u32 1.1754944e-38, %v829
          %v831 = vsel %vm828, %v830, %v826
          %v832 = vmul.f32 1.0, %v831
          %v833 = vxor.u32 %v692, 2147483648
          %v834 = vmul.f32 %v833, 1.442695
          %v835 = vpow.pop %v834
          %v836 = vadd.f32 %v835, 1.0
          %v837 = vrcp.pop %v836
          %v838 = vmul.f32 %v836, %v837
          %v839 = vsub.f32 1.0, %v838
          %v840 = vmul.f32 %v837, %v839
          %v841 = vadd.f32 %v837, %v840
          %vm842 = vweird.f32 %v836
          %vm843 = vweird.f32 %v837
          %vm844 = vmor %vm842, %vm843
          %v845 = vsel %vm844, %v837, %v841
          %v846 = vand.u32 2147483647, %v836
          %vm847 = vcmp.eq.f32.partialorder %v846, 8.507059e+37
          %v848 = vand.u32 %v836, 2147483648
          %v849 = vor.u32 1.1754944e-38, %v848
          %v850 = vsel %vm847, %v849, %v845
          %v851 = vmul.f32 1.0, %v850
          %v852 = vtanh.pop %v752
          %v853 = vxor.u32 %v812, 2147483648
          %v854 = vmul.f32 %v853, 1.442695
          %v855 = vpow.pop %v854
          %v856 = vadd.f32 %v855, 1.0
          %v857 = vrcp.pop %v856
          %v858 = vmul.f32 %v856, %v857
          %v859 = vsub.f32 1.0, %v858
          %v860 = vmul.f32 %v857, %v859
          %v861 = vadd.f32 %v857, %v860
          %vm862 = vweird.f32 %v856
          %vm863 = vweird.f32 %v857
          %vm864 = vmor %vm862, %vm863
          %v865 = vsel %vm864, %v857, %v861
          %v866 = vand.u32 2147483647, %v856
          %vm867 = vcmp.eq.f32.partialorder %v866, 8.507059e+37
          %v868 = vand.u32 %v856, 2147483648
          %v869 = vor.u32 1.1754944e-38, %v868
          %v870 = vsel %vm867, %v869, %v865
          %v871 = vmul.f32 1.0, %v870
          %v872 = vmul.f32 %v851, %v371
          %v873 = vmul.f32 %v832, %v852
          %v874 = vadd.f32 %v872, %v873
          %v875 = vtanh.pop %v874
          %v876 = vmul.f32 %v871, %v875
          %877 = vst [vmem:[#allocation5] sm:$0xff] %v874
          %878 = vst [vmem:[#allocation4] sm:$0xff] %v876
          %v879 = vld [vmem:[#allocation4 + $0x8] sm:$0xff]
          %v880 = vld [vmem:[#allocation5 + $0x8] sm:$0xff]
          %v881 = vld [vmem:[#allocation17] sm:$0xff]
          %v882 = vld [vmem:[#allocation17 + $0x8] sm:$0xff]
          %v883 = vld [vmem:[#allocation17 + $0x10] sm:$0xff]
          %v884 = vld [vmem:[#allocation17 + $0x18] sm:$0xff]
          %v885 = vld [vmem:[#allocation17 + $0x20] sm:$0xff]
          %v886 = vld [vmem:[#allocation17 + $0x28] sm:$0xff]
          %v887 = vld [vmem:[#allocation17 + $0x30] sm:$0xff]
          %v888 = vld [vmem:[#allocation17 + $0x38] sm:$0xff]
          %v889 = vld [vmem:[#allocation17 + $0x40] sm:$0xff]
          %v890 = vld [vmem:[#allocation17 + $0x48] sm:$0xff]
          %v891 = vld [vmem:[#allocation17 + $0x50] sm:$0xff]
          %v892 = vld [vmem:[#allocation17 + $0x58] sm:$0xff]
          %v893 = vld [vmem:[#allocation17 + $0x60] sm:$0xff]
          %v894 = vld [vmem:[#allocation17 + $0x68] sm:$0xff]
          %v895 = vld [vmem:[#allocation17 + $0x70] sm:$0xff]
          %v896 = vld [vmem:[#allocation17 + $0x78] sm:$0xff]
          %v897 = vld [vmem:[#allocation17 + $0x80] sm:$0xff]
          %v898 = vld [vmem:[#allocation17 + $0x88] sm:$0xff]
          %v899 = vld [vmem:[#allocation17 + $0x90] sm:$0xff]
          %v900 = vld [vmem:[#allocation17 + $0x98] sm:$0xff]
          %v901 = vld [vmem:[#allocation17 + $0xa0] sm:$0xff]
          %v902 = vld [vmem:[#allocation17 + $0xa8] sm:$0xff]
          %v903 = vld [vmem:[#allocation17 + $0xb0] sm:$0xff]
          %v904 = vld [vmem:[#allocation17 + $0xb8] sm:$0xff]
          %v905 = vld [vmem:[#allocation17 + $0xc0] sm:$0xff]
          %v906 = vld [vmem:[#allocation17 + $0xc8] sm:$0xff]
          %v907 = vld [vmem:[#allocation17 + $0xd0] sm:$0xff]
          %v908 = vld [vmem:[#allocation17 + $0xd8] sm:$0xff]
          %v909 = vld [vmem:[#allocation17 + $0xe0] sm:$0xff]
          %v910 = vld [vmem:[#allocation17 + $0xe8] sm:$0xff]
          %v911 = vld [vmem:[#allocation17 + $0xf0] sm:$0xff]
          %v912 = vld [vmem:[#allocation17 + $0xf8] sm:$0xff]
          %v913 = vld [vmem:[#allocation17 + $0x100] sm:$0xff]
          %v914 = vld [vmem:[#allocation17 + $0x108] sm:$0xff]
          %v915 = vld [vmem:[#allocation17 + $0x110] sm:$0xff]
          %v916 = vld [vmem:[#allocation17 + $0x118] sm:$0xff]
          %v917 = vld [vmem:[#allocation17 + $0x120] sm:$0xff]
          %v918 = vld [vmem:[#allocation17 + $0x128] sm:$0xff]
          %v919 = vld [vmem:[#allocation17 + $0x130] sm:$0xff]
          %v920 = vld [vmem:[#allocation17 + $0x138] sm:$0xff]
          %v921 = vld [vmem:[#allocation17 + $0x140] sm:$0xff]
          %v922 = vld [vmem:[#allocation17 + $0x148] sm:$0xff]
          %v923 = vld [vmem:[#allocation17 + $0x150] sm:$0xff]
          %v924 = vld [vmem:[#allocation17 + $0x158] sm:$0xff]
          %v925 = vld [vmem:[#allocation17 + $0x160] sm:$0xff]
          %v926 = vld [vmem:[#allocation17 + $0x168] sm:$0xff]
          %v927 = vld [vmem:[#allocation17 + $0x170] sm:$0xff]
          %v928 = vld [vmem:[#allocation17 + $0x178] sm:$0xff]
          %v929 = vld [vmem:[#allocation17 + $0x180] sm:$0xff]
          %v930 = vld [vmem:[#allocation17 + $0x188] sm:$0xff]
          %v931 = vld [vmem:[#allocation17 + $0x190] sm:$0xff]
          %v932 = vld [vmem:[#allocation17 + $0x198] sm:$0xff]
          %v933 = vld [vmem:[#allocation17 + $0x1a0] sm:$0xff]
          %v934 = vld [vmem:[#allocation17 + $0x1a8] sm:$0xff]
          %v935 = vld [vmem:[#allocation17 + $0x1b0] sm:$0xff]
          %v936 = vld [vmem:[#allocation17 + $0x1b8] sm:$0xff]
          %v937 = vld [vmem:[#allocation17 + $0x1c0] sm:$0xff]
          %v938 = vld [vmem:[#allocation17 + $0x1c8] sm:$0xff]
          %v939 = vld [vmem:[#allocation17 + $0x1d0] sm:$0xff]
          %v940 = vld [vmem:[#allocation17 + $0x1d8] sm:$0xff]
          %v941 = vld [vmem:[#allocation17 + $0x1e0] sm:$0xff]
          %v942 = vld [vmem:[#allocation17 + $0x1e8] sm:$0xff]
          %v943 = vld [vmem:[#allocation17 + $0x1f0] sm:$0xff]
          %v944 = vld [vmem:[#allocation17 + $0x1f8] sm:$0xff]
          %v945 = vld [vmem:[#allocation17 + $0x200] sm:$0xff]
          %v946 = vld [vmem:[#allocation17 + $0x208] sm:$0xff]
          %v947 = vld [vmem:[#allocation17 + $0x210] sm:$0xff]
          %v948 = vld [vmem:[#allocation17 + $0x218] sm:$0xff]
          %v949 = vld [vmem:[#allocation17 + $0x220] sm:$0xff]
          %v950 = vld [vmem:[#allocation17 + $0x228] sm:$0xff]
          %v951 = vld [vmem:[#allocation17 + $0x230] sm:$0xff]
          %v952 = vld [vmem:[#allocation17 + $0x238] sm:$0xff]
          %v953 = vld [vmem:[#allocation17 + $0x240] sm:$0xff]
          %v954 = vld [vmem:[#allocation17 + $0x248] sm:$0xff]
          %v955 = vld [vmem:[#allocation17 + $0x250] sm:$0xff]
          %v956 = vld [vmem:[#allocation17 + $0x258] sm:$0xff]
          %v957 = vld [vmem:[#allocation17 + $0x260] sm:$0xff]
          %v958 = vld [vmem:[#allocation17 + $0x268] sm:$0xff]
          %v959 = vld [vmem:[#allocation17 + $0x270] sm:$0xff]
          %v960 = vld [vmem:[#allocation17 + $0x278] sm:$0xff]
          %v961 = vld [vmem:[#allocation17 + $0x280] sm:$0xff]
          %v962 = vld [vmem:[#allocation17 + $0x288] sm:$0xff]
          %v963 = vld [vmem:[#allocation17 + $0x290] sm:$0xff]
          %v964 = vld [vmem:[#allocation17 + $0x298] sm:$0xff]
          %v965 = vld [vmem:[#allocation17 + $0x2a0] sm:$0xff]
          %v966 = vld [vmem:[#allocation17 + $0x2a8] sm:$0xff]
          %v967 = vld [vmem:[#allocation17 + $0x2b0] sm:$0xff]
          %v968 = vld [vmem:[#allocation17 + $0x2b8] sm:$0xff]
          %v969 = vld [vmem:[#allocation17 + $0x2c0] sm:$0xff]
          %v970 = vld [vmem:[#allocation17 + $0x2c8] sm:$0xff]
          %v971 = vld [vmem:[#allocation17 + $0x2d0] sm:$0xff]
          %v972 = vld [vmem:[#allocation17 + $0x2d8] sm:$0xff]
          %v973 = vld [vmem:[#allocation17 + $0x2e0] sm:$0xff]
          %v974 = vld [vmem:[#allocation17 + $0x2e8] sm:$0xff]
          %v975 = vld [vmem:[#allocation17 + $0x2f0] sm:$0xff]
          %v976 = vld [vmem:[#allocation17 + $0x2f8] sm:$0xff]
          %v977 = vld [vmem:[#allocation17 + $0x300] sm:$0xff]
          %v978 = vld [vmem:[#allocation17 + $0x308] sm:$0xff]
          %v979 = vld [vmem:[#allocation17 + $0x310] sm:$0xff]
          %v980 = vld [vmem:[#allocation17 + $0x318] sm:$0xff]
          %v981 = vld [vmem:[#allocation17 + $0x320] sm:$0xff]
          %v982 = vld [vmem:[#allocation17 + $0x328] sm:$0xff]
          %v983 = vld [vmem:[#allocation17 + $0x330] sm:$0xff]
          %v984 = vld [vmem:[#allocation17 + $0x338] sm:$0xff]
          %v985 = vld [vmem:[#allocation17 + $0x340] sm:$0xff]
          %v986 = vld [vmem:[#allocation17 + $0x348] sm:$0xff]
          %v987 = vld [vmem:[#allocation17 + $0x350] sm:$0xff]
          %v988 = vld [vmem:[#allocation17 + $0x358] sm:$0xff]
          %v989 = vld [vmem:[#allocation17 + $0x360] sm:$0xff]
          %v990 = vld [vmem:[#allocation17 + $0x368] sm:$0xff]
          %v991 = vld [vmem:[#allocation17 + $0x370] sm:$0xff]
          %v992 = vld [vmem:[#allocation17 + $0x378] sm:$0xff]
          %v993 = vld [vmem:[#allocation17 + $0x380] sm:$0xff]
          %v994 = vld [vmem:[#allocation17 + $0x388] sm:$0xff]
          %v995 = vld [vmem:[#allocation17 + $0x390] sm:$0xff]
          %v996 = vld [vmem:[#allocation17 + $0x398] sm:$0xff]
          %v997 = vld [vmem:[#allocation17 + $0x3a0] sm:$0xff]
          %v998 = vld [vmem:[#allocation17 + $0x3a8] sm:$0xff]
          %v999 = vld [vmem:[#allocation17 + $0x3b0] sm:$0xff]
          %v1000 = vld [vmem:[#allocation17 + $0x3b8] sm:$0xff]
          %v1001 = vld [vmem:[#allocation17 + $0x3c0] sm:$0xff]
          %v1002 = vld [vmem:[#allocation17 + $0x3c8] sm:$0xff]
          %v1003 = vld [vmem:[#allocation17 + $0x3d0] sm:$0xff]
          %v1004 = vld [vmem:[#allocation17 + $0x3d8] sm:$0xff]
          %v1005 = vld [vmem:[#allocation17 + $0x3e0] sm:$0xff]
          %v1006 = vld [vmem:[#allocation17 + $0x3e8] sm:$0xff]
          %v1007 = vld [vmem:[#allocation17 + $0x3f0] sm:$0xff]
          %v1008 = vld [vmem:[#allocation17 + $0x3f8] sm:$0xff]
          %v1009 = vld [vmem:[%s6] sm:$0xf]
          %v1011 = vperm.slane %v1009, 0
          %v1012 = vperm.slane %v1009, 1
          %v1013 = vperm.slane %v1009, 2
          %v1014 = vperm.slane %v1009, 3
          %1019 = vmatpush.msra.mxu0 %v941
          %1020 = vmatpush.msra.mxu0 %v937
          %1021 = vmatpush.msra.mxu0 %v933
          %1022 = vmatpush.msra.mxu0 %v929
          %1023 = vmatpush.msra.mxu0 %v925
          %1024 = vmatpush.msra.mxu0 %v921
          %1025 = vmatpush.msra.mxu0 %v917
          %1026 = vmatpush.msra.mxu0 %v913
          %1027 = vmatpush.msra.mxu0 %v909
          %1028 = vmatpush.msra.mxu0 %v905
          %1029 = vmatpush.msra.mxu0 %v901
          %1030 = vmatpush.msra.mxu0 %v897
          %1031 = vmatpush.msra.mxu0 %v893
          %1032 = vmatpush.msra.mxu0 %v889
          %1033 = vmatpush.msra.mxu0 %v885
          %1034 = vmatpush.msra.mxu0 %v881
          %1035 = vmatmul.f32.gmra.mxu0 %v876
          %v1036 = vpop.f32.mrf.mxu0
          %v1037 = vadd.f32 %v1011, %v1036
          %1038 = vdwg.mxu0
          %1039 = vmatpush.msra.mxu0 %v1005
          %1040 = vmatpush.msra.mxu0 %v1001
          %1041 = vmatpush.msra.mxu0 %v997
          %1042 = vmatpush.msra.mxu0 %v993
          %1043 = vmatpush.msra.mxu0 %v989
          %1044 = vmatpush.msra.mxu0 %v985
          %1045 = vmatpush.msra.mxu0 %v981
          %1046 = vmatpush.msra.mxu0 %v977
          %1047 = vmatpush.msra.mxu0 %v973
          %1048 = vmatpush.msra.mxu0 %v969
          %1049 = vmatpush.msra.mxu0 %v965
          %1050 = vmatpush.msra.mxu0 %v961
          %1051 = vmatpush.msra.mxu0 %v957
          %1052 = vmatpush.msra.mxu0 %v953
          %1053 = vmatpush.msra.mxu0 %v949
          %1054 = vmatpush.msra.mxu0 %v945
          %1055 = vmatmul.f32.gmra.mxu0 %v879
          %v1056 = vpop.f32.mrf.mxu0
          %v1057 = vadd.f32 %v1037, %v1056
          %1058 = vdwg.mxu0
          %1059 = vmatpush.msra.mxu0 %v942
          %1060 = vmatpush.msra.mxu0 %v938
          %1061 = vmatpush.msra.mxu0 %v934
          %1062 = vmatpush.msra.mxu0 %v930
          %1063 = vmatpush.msra.mxu0 %v926
          %1064 = vmatpush.msra.mxu0 %v922
          %1065 = vmatpush.msra.mxu0 %v918
          %1066 = vmatpush.msra.mxu0 %v914
          %1067 = vmatpush.msra.mxu0 %v910
          %1068 = vmatpush.msra.mxu0 %v906
          %1069 = vmatpush.msra.mxu0 %v902
          %1070 = vmatpush.msra.mxu0 %v898
          %1071 = vmatpush.msra.mxu0 %v894
          %1072 = vmatpush.msra.mxu0 %v890
          %1073 = vmatpush.msra.mxu0 %v886
          %1074 = vmatpush.msra.mxu0 %v882
          %1075 = vmatmul.f32.gmra.mxu0 %v876
          %v1076 = vpop.f32.mrf.mxu0
          %v1077 = vadd.f32 %v1012, %v1076
          %1078 = vdwg.mxu0
          %1079 = vmatpush.msra.mxu0 %v1006
          %1080 = vmatpush.msra.mxu0 %v1002
          %1081 = vmatpush.msra.mxu0 %v998
          %1082 = vmatpush.msra.mxu0 %v994
          %1083 = vmatpush.msra.mxu0 %v990
          %1084 = vmatpush.msra.mxu0 %v986
          %1085 = vmatpush.msra.mxu0 %v982
          %1086 = vmatpush.msra.mxu0 %v978
          %1087 = vmatpush.msra.mxu0 %v974
          %1088 = vmatpush.msra.mxu0 %v970
          %1089 = vmatpush.msra.mxu0 %v966
          %1090 = vmatpush.msra.mxu0 %v962
          %1091 = vmatpush.msra.mxu0 %v958
          %1092 = vmatpush.msra.mxu0 %v954
          %1093 = vmatpush.msra.mxu0 %v950
          %1094 = vmatpush.msra.mxu0 %v946
          %1095 = vmatmul.f32.gmra.mxu0 %v879
          %v1096 = vpop.f32.mrf.mxu0
          %v1097 = vadd.f32 %v1077, %v1096
          %1098 = vdwg.mxu0
          %1099 = vmatpush.msra.mxu0 %v943
          %1100 = vmatpush.msra.mxu0 %v939
          %1101 = vmatpush.msra.mxu0 %v935
          %1102 = vmatpush.msra.mxu0 %v931
          %1103 = vmatpush.msra.mxu0 %v927
          %1104 = vmatpush.msra.mxu0 %v923
          %1105 = vmatpush.msra.mxu0 %v919
          %1106 = vmatpush.msra.mxu0 %v915
          %1107 = vmatpush.msra.mxu0 %v911
          %1108 = vmatpush.msra.mxu0 %v907
          %1109 = vmatpush.msra.mxu0 %v903
          %1110 = vmatpush.msra.mxu0 %v899
          %1111 = vmatpush.msra.mxu0 %v895
          %1112 = vmatpush.msra.mxu0 %v891
          %1113 = vmatpush.msra.mxu0 %v887
          %1114 = vmatpush.msra.mxu0 %v883
          %1115 = vmatmul.f32.gmra.mxu0 %v876
          %v1116 = vpop.f32.mrf.mxu0
          %v1117 = vadd.f32 %v1013, %v1116
          %1118 = vdwg.mxu0
          %1119 = vmatpush.msra.mxu0 %v1007
          %1120 = vmatpush.msra.mxu0 %v1003
          %1121 = vmatpush.msra.mxu0 %v999
          %1122 = vmatpush.msra.mxu0 %v995
          %1123 = vmatpush.msra.mxu0 %v991
          %1124 = vmatpush.msra.mxu0 %v987
          %1125 = vmatpush.msra.mxu0 %v983
          %1126 = vmatpush.msra.mxu0 %v979
          %1127 = vmatpush.msra.mxu0 %v975
          %1128 = vmatpush.msra.mxu0 %v971
          %1129 = vmatpush.msra.mxu0 %v967
          %1130 = vmatpush.msra.mxu0 %v963
          %1131 = vmatpush.msra.mxu0 %v959
          %1132 = vmatpush.msra.mxu0 %v955
          %1133 = vmatpush.msra.mxu0 %v951
          %1134 = vmatpush.msra.mxu0 %v947
          %1135 = vmatmul.f32.gmra.mxu0 %v879
          %v1136 = vpop.f32.mrf.mxu0
          %v1137 = vadd.f32 %v1117, %v1136
          %1138 = vdwg.mxu0
          %1139 = vmatpush.msra.mxu0 %v944
          %1140 = vmatpush.msra.mxu0 %v940
          %1141 = vmatpush.msra.mxu0 %v936
          %1142 = vmatpush.msra.mxu0 %v932
          %1143 = vmatpush.msra.mxu0 %v928
          %1144 = vmatpush.msra.mxu0 %v924
          %1145 = vmatpush.msra.mxu0 %v920
          %1146 = vmatpush.msra.mxu0 %v916
          %1147 = vmatpush.msra.mxu0 %v912
          %1148 = vmatpush.msra.mxu0 %v908
          %1149 = vmatpush.msra.mxu0 %v904
          %1150 = vmatpush.msra.mxu0 %v900
          %1151 = vmatpush.msra.mxu0 %v896
          %1152 = vmatpush.msra.mxu0 %v892
          %1153 = vmatpush.msra.mxu0 %v888
          %1154 = vmatpush.msra.mxu0 %v884
          %1155 = vmatmul.f32.gmra.mxu0 %v876
          %v1156 = vpop.f32.mrf.mxu0
          %v1157 = vadd.f32 %v1014, %v1156
          %1158 = vdwg.mxu0
          %1159 = vmatpush.msra.mxu0 %v1008
          %1160 = vmatpush.msra.mxu0 %v1004
          %1161 = vmatpush.msra.mxu0 %v1000
          %1162 = vmatpush.msra.mxu0 %v996
          %1163 = vmatpush.msra.mxu0 %v992
          %1164 = vmatpush.msra.mxu0 %v988
          %1165 = vmatpush.msra.mxu0 %v984
          %1166 = vmatpush.msra.mxu0 %v980
          %1167 = vmatpush.msra.mxu0 %v976
          %1168 = vmatpush.msra.mxu0 %v972
          %1169 = vmatpush.msra.mxu0 %v968
          %1170 = vmatpush.msra.mxu0 %v964
          %1171 = vmatpush.msra.mxu0 %v960
          %1172 = vmatpush.msra.mxu0 %v956
          %1173 = vmatpush.msra.mxu0 %v952
          %1174 = vmatpush.msra.mxu0 %v948
          %1175 = vmatmul.f32.gmra.mxu0 %v879
          %v1176 = vpop.f32.mrf.mxu0
          %v1177 = vadd.f32 %v1157, %v1176
          %1178 = vdwg.mxu0
          %v1179 = vxor.u32 %v1057, 2147483648
          %v1180 = vmul.f32 %v1179, 1.442695
          %v1181 = vpow.pop %v1180
          %v1182 = vadd.f32 %v1181, 1.0
          %v1183 = vrcp.pop %v1182
          %v1184 = vmul.f32 %v1182, %v1183
          %v1185 = vsub.f32 1.0, %v1184
          %v1186 = vmul.f32 %v1183, %v1185
          %v1187 = vadd.f32 %v1183, %v1186
          %vm1188 = vweird.f32 %v1182
          %vm1189 = vweird.f32 %v1183
          %vm1190 = vmor %vm1188, %vm1189
          %v1191 = vsel %vm1190, %v1183, %v1187
          %v1192 = vand.u32 2147483647, %v1182
          %vm1193 = vcmp.eq.f32.partialorder %v1192, 8.507059e+37
          %v1194 = vand.u32 %v1182, 2147483648
          %v1195 = vor.u32 1.1754944e-38, %v1194
          %v1196 = vsel %vm1193, %v1195, %v1191
          %v1197 = vmul.f32 1.0, %v1196
          %v1198 = vxor.u32 %v1097, 2147483648
          %v1199 = vmul.f32 %v1198, 1.442695
          %v1200 = vpow.pop %v1199
          %v1201 = vadd.f32 %v1200, 1.0
          %v1202 = vrcp.pop %v1201
          %v1203 = vmul.f32 %v1201, %v1202
          %v1204 = vsub.f32 1.0, %v1203
          %v1205 = vmul.f32 %v1202, %v1204
          %v1206 = vadd.f32 %v1202, %v1205
          %vm1207 = vweird.f32 %v1201
          %vm1208 = vweird.f32 %v1202
          %vm1209 = vmor %vm1207, %vm1208
          %v1210 = vsel %vm1209, %v1202, %v1206
          %v1211 = vand.u32 2147483647, %v1201
          %vm1212 = vcmp.eq.f32.partialorder %v1211, 8.507059e+37
          %v1213 = vand.u32 %v1201, 2147483648
          %v1214 = vor.u32 1.1754944e-38, %v1213
          %v1215 = vsel %vm1212, %v1214, %v1210
          %v1216 = vmul.f32 1.0, %v1215
          %v1217 = vtanh.pop %v1137
          %v1218 = vxor.u32 %v1177, 2147483648
          %v1219 = vmul.f32 %v1218, 1.442695
          %v1220 = vpow.pop %v1219
          %v1221 = vadd.f32 %v1220, 1.0
          %v1222 = vrcp.pop %v1221
          %v1223 = vmul.f32 %v1221, %v1222
          %v1224 = vsub.f32 1.0, %v1223
          %v1225 = vmul.f32 %v1222, %v1224
          %v1226 = vadd.f32 %v1222, %v1225
          %vm1227 = vweird.f32 %v1221
          %vm1228 = vweird.f32 %v1222
          %vm1229 = vmor %vm1227, %vm1228
          %v1230 = vsel %vm1229, %v1222, %v1226
          %v1231 = vand.u32 2147483647, %v1221
          %vm1232 = vcmp.eq.f32.partialorder %v1231, 8.507059e+37
          %v1233 = vand.u32 %v1221, 2147483648
          %v1234 = vor.u32 1.1754944e-38, %v1233
          %v1235 = vsel %vm1232, %v1234, %v1230
          %v1236 = vmul.f32 1.0, %v1235
          %v1237 = vmul.f32 %v1216, %v880
          %v1238 = vmul.f32 %v1197, %v1217
          %v1239 = vadd.f32 %v1237, %v1238
          %v1240 = vtanh.pop %v1239
          %v1241 = vmul.f32 %v1236, %v1240
          %1242 = vst [vmem:[#allocation5 + $0x8] sm:$0xff] %v1239
          %1243 = vst [vmem:[#allocation4 + $0x8] sm:$0xff] %v1241
          %1244 = vst [vmem:[#allocation2] sm:$0xff] %v1241
          %1245 = vst [vmem:[#allocation3] sm:$0xff] 0.0
          %vm1246 = vcmask 7168
          %1247 = vst.msk [vmem:[#allocation6] sm:$0xff] %vm1246, -1e+30
          %1248 = vst.msk [vmem:[#allocation7] sm:$0xff] %vm1246, 0.0
        $region80: #{tpu_custom_call.1} parent=47 // pred_fallthru
          _
        %v1249 = vld [vmem:[#allocation11] sm:$0xff]
        %v1250 = vld [vmem:[#allocation11 + $0x8] sm:$0xff]
        %v1251 = vld [vmem:[#allocation11 + $0x10] sm:$0xff]
        %v1252 = vld [vmem:[#allocation11 + $0x18] sm:$0xff]
        %v1253 = vld [vmem:[#allocation11 + $0x20] sm:$0xff]
        %v1254 = vld [vmem:[#allocation11 + $0x28] sm:$0xff]
        %v1255 = vld [vmem:[#allocation11 + $0x30] sm:$0xff]
        %v1256 = vld [vmem:[#allocation11 + $0x38] sm:$0xff]
        %v1257 = vld [vmem:[#allocation11 + $0x40] sm:$0xff]
        %v1258 = vld [vmem:[#allocation11 + $0x48] sm:$0xff]
        %v1259 = vld [vmem:[#allocation11 + $0x50] sm:$0xff]
        %v1260 = vld [vmem:[#allocation11 + $0x58] sm:$0xff]
        %v1261 = vld [vmem:[#allocation11 + $0x60] sm:$0xff]
        %v1262 = vld [vmem:[#allocation11 + $0x68] sm:$0xff]
        %v1263 = vld [vmem:[#allocation11 + $0x70] sm:$0xff]
        %v1264 = vld [vmem:[#allocation11 + $0x78] sm:$0xff]
        %v1265 = vld [vmem:[#allocation8] sm:$0x1]
        %v1266 = vld [vmem:[#allocation2] sm:$0xff]
        %v1267 = vlaneseq
        %v1268 = vshrl.u32 %v1267, 7
        %v1269 = vperm.slane %v1265, 0
        %vm1270 = vcmp.eq.s32.totalorder %v1268, %v1269
        %v1271 = vld [vmem:[#allocation13] sm:$0xff]
        %v1272 = vld [vmem:[#allocation13 + $0x8] sm:$0xff]
        %v1273 = vld [vmem:[#allocation13 + $0x10] sm:$0xff]
        %v1274 = vld [vmem:[#allocation13 + $0x18] sm:$0xff]
        %v1275 = vld [vmem:[#allocation13 + $0x20] sm:$0xff]
        %v1276 = vld [vmem:[#allocation13 + $0x28] sm:$0xff]
        %v1277 = vld [vmem:[#allocation13 + $0x30] sm:$0xff]
        %v1278 = vld [vmem:[#allocation13 + $0x38] sm:$0xff]
        %v1279 = vld [vmem:[#allocation13 + $0x40] sm:$0xff]
        %v1280 = vld [vmem:[#allocation13 + $0x48] sm:$0xff]
        %v1281 = vld [vmem:[#allocation13 + $0x50] sm:$0xff]
        %v1282 = vld [vmem:[#allocation13 + $0x58] sm:$0xff]
        %v1283 = vld [vmem:[#allocation13 + $0x60] sm:$0xff]
        %v1284 = vld [vmem:[#allocation13 + $0x68] sm:$0xff]
        %v1285 = vld [vmem:[#allocation13 + $0x70] sm:$0xff]
        %v1286 = vld [vmem:[#allocation13 + $0x78] sm:$0xff]
        %1287 = vmatpush.msra.mxu0 %v1286
        %1288 = vmatpush.msra.mxu0 %v1285
        %1289 = vmatpush.msra.mxu0 %v1284
        %1290 = vmatpush.msra.mxu0 %v1283
        %1291 = vmatpush.msra.mxu0 %v1282
        %1292 = vmatpush.msra.mxu0 %v1281
        %1293 = vmatpush.msra.mxu0 %v1280
        %1294 = vmatpush.msra.mxu0 %v1279
        %1295 = vmatpush.msra.mxu0 %v1278
        %1296 = vmatpush.msra.mxu0 %v1277
        %1297 = vmatpush.msra.mxu0 %v1276
        %1298 = vmatpush.msra.mxu0 %v1275
        %1299 = vmatpush.msra.mxu0 %v1274
        %1300 = vmatpush.msra.mxu0 %v1273
        %1301 = vmatpush.msra.mxu0 %v1272
        %1302 = vmatpush.msra.mxu0 %v1271
        %1303 = vmatmul.f32.gmra.mxu0 %v1266
        %v1304 = vpop.f32.mrf.mxu0
        %v1305 = vadd.f32 0.0, %v1304
        %1306 = vdwg.mxu0
        %v1307 = vsel %vm1270, %v1305, -1e+30
        %v1308 = vld [vmem:[#allocation6] sm:$0xff]
        %1309 = vmax.xlane.f32.xlu0 %v1307
        %v1310 = vpop.xlane.xlu0 %1309
        %v1311 = vmax.f32 %v1308, %v1310
        %v1312 = vsub.f32 %v1308, %v1311
        %v1313 = vmul.f32 %v1312, 1.442695
        %v1314 = vpow.pop %v1313
        %1316 = vset.pattern.permute.xlu0 0
        %1317 = vperm.xlu0 %1316, %v1311
        %v1318 = vpop.permute.xlu0 %1317
        %v1320 = vsub.f32 %v1307, %v1318
        %v1321 = vmul.f32 %v1320, 1.442695
        %v1322 = vpow.pop %v1321
        %v1323 = vsel %vm1270, %v1322, 0.0
        %v1324 = vld [vmem:[#allocation7] sm:$0xff]
        %v1325 = vmul.f32 %v1314, %v1324
        %1326 = vadd.xlane.f32.xlu0 %v1323
        %v1327 = vpop.xlane.xlu0 %1326
        %v1328 = vadd.f32 %v1325, %v1327
        %vm1329 = vcmask 7168
        %1330 = vst.msk [vmem:[#allocation7] sm:$0xff] %vm1329, %v1328
        %v1331 = vld [vmem:[#allocation3] sm:$0xff]
        %1333 = vset.pattern.permute.xlu0 0
        %1334 = vperm.xlu0 %1333, %v1314
        %v1335 = vpop.permute.xlu0 %1334
        %v1337 = vmul.f32 %v1335, %v1331
        %1338 = vmatpush.msra.mxu0 %v1264
        %1339 = vmatpush.msra.mxu0 %v1263
        %1340 = vmatpush.msra.mxu0 %v1262
        %1341 = vmatpush.msra.mxu0 %v1261
        %1342 = vmatpush.msra.mxu0 %v1260
        %1343 = vmatpush.msra.mxu0 %v1259
        %1344 = vmatpush.msra.mxu0 %v1258
        %1345 = vmatpush.msra.mxu0 %v1257
        %1346 = vmatpush.msra.mxu0 %v1256
        %1347 = vmatpush.msra.mxu0 %v1255
        %1348 = vmatpush.msra.mxu0 %v1254
        %1349 = vmatpush.msra.mxu0 %v1253
        %1350 = vmatpush.msra.mxu0 %v1252
        %1351 = vmatpush.msra.mxu0 %v1251
        %1352 = vmatpush.msra.mxu0 %v1250
        %1353 = vmatpush.msra.mxu0 %v1249
        %1354 = vmatmul.f32.gmra.mxu0 %v1323
        %v1355 = vpop.f32.mrf.mxu0
        %v1356 = vadd.f32 0.0, %v1355
        %1357 = vdwg.mxu0
        %v1358 = vadd.f32 %v1337, %v1356
        %1359 = vst [vmem:[#allocation3] sm:$0xff] %v1358
        %1360 = vst.msk [vmem:[#allocation6] sm:$0xff] %vm1329, %v1311
        // Predicated region
        $region81: #{tpu_custom_call.1} parent=47 // pred_check
          %p1361 = pneg %p354
        $region82: #{tpu_custom_call.1} parent=47 // pred_check_branch
          %1363 = sbr.rel (%p1361) target = $region84
        $region83: #{tpu_custom_call.1} parent=47 // pred_region
          %v1364 = vld [vmem:[#allocation7] sm:$0xff]
          %vm1365 = vcmp.gt.f32.partialorder %v1364, 0.0
          %v1366 = vsel %vm1365, %v1364, 1.0
          %v1367 = vld [vmem:[#allocation3] sm:$0xff]
          %v1368 = vrcp.pop %v1366
          %1370 = vset.pattern.permute.xlu0 0
          %1371 = vperm.xlu0 %1370, %v1368
          %v1372 = vpop.permute.xlu0 %1371
          %v1374 = vmul.f32 %v1367, %v1372
          %1375 = vst [vmem:[#allocation3] sm:$0xff] %v1374
        $region84: #{tpu_custom_call.1} parent=47 // pred_fallthru
          _
        %p1376 = scmp.eq.s32.totalorder %s27, 2
        %p1377 = pnand %p1376, %p354
        %p1378 = pneg %p1377
        // Predicated region
        $region85: #{tpu_custom_call.1} parent=47 // pred_check
          _
        $region86: #{tpu_custom_call.1} parent=47 // pred_check_branch
          %1380 = sbr.rel (%p1377) target = $region88
        $region87: #{tpu_custom_call.1} parent=47 // pred_region
          %v1381 = vld [vmem:[#allocation2] sm:$0xff]
          %1382 = vst [vmem:[#allocation19] sm:$0xff] %v1381
          %v1383 = vld [vmem:[#allocation3] sm:$0xff]
          %1384 = vst [vmem:[#allocation19 + $0x8] sm:$0xff] %v1383
        $region88: #{tpu_custom_call.1} parent=47 // pred_fallthru
          _
        // Predicated region
        $region89: #{tpu_custom_call.1} parent=47 // pred_check
          %p1385 = pneg %p195
        $region90: #{tpu_custom_call.1} parent=47 // pred_check_branch
          %1387 = sbr.rel (%p1385) target = $region92
        $region91: #{tpu_custom_call.1} parent=47 // pred_region
          %1389 = vsyncadd [#allocation10], 0
          %s1391 = sshll.u32 [#allocation19], 4
          %s1392 = int_to_ptr.vmem [resolvable:$true] %s1391
          %s1393 = sshll.u32 %s7, 4
          %s1394 = int_to_ptr.hbm [resolvable:$true] %s1393
          %1396 = dma.vmem_to_hbm [thread:$0]  %s1392, 256, %s1394, [#allocation10]
        $region92: #{tpu_custom_call.1} parent=47 // pred_fallthru
          _
        // Predicated region
        $region93: #{tpu_custom_call.1} parent=47 // pred_check
          %p1397 = pneg %p195
        $region94: #{tpu_custom_call.1} parent=47 // pred_check_branch
          %1399 = sbr.rel (%p1397) target = $region96
        $region95: #{tpu_custom_call.1} parent=47 // pred_region
          %1401 = dma.done [#allocation10], 256
        $region96: #{tpu_custom_call.1} parent=47 // pred_fallthru
          _
      $region48: #{tpu_custom_call.1} parent=5 // pred_fallthru
        _
      %p1402 = scmp.le.s32.totalorder 2, %s18
      // Predicated region
      $region97: #{tpu_custom_call.1} parent=5 // pred_check
        %p1403 = pneg %p1402
      $region98: #{tpu_custom_call.1} parent=5 // pred_check_branch
        %1405 = sbr.rel (%p1403) target = $region100
      $region99: #{tpu_custom_call.1} parent=5 // pred_region
        %s1406 = ssub.s32 %s18, 2
      $region100: #{tpu_custom_call.1} parent=5 // pred_fallthru
        _
    $region6: #{tpu_custom_call.1} parent=1 // loop_footer
      %s22 = sadd.s32 1, %s18
    $region7: #{tpu_custom_call.1} parent=1 // loop_footer_branch
      %17 = sbr.rel target = $region3
    $region8: #{tpu_custom_call.1} parent=1 // loop_exit
      _
    %1407 = vsyncpa [#allocation9], 1
    %s1408 = scalar_lea.sflag [#allocation9], 1
    %1409 = vsyncpa %s1408, 1
    %1410 = vsyncpa [#allocation12], 1
    %1411 = vsyncpa [#allocation15], 1
    %1412 = vsyncpa [#allocation18], 1
    %1413 = vsyncpa [#allocation10], 1
    %s1414 = scalar_lea.sflag [#allocation10], 1
    %1415 = vsyncpa %s1414, 1

// kernel: tpu_custom_call.1
$region0: #{tpu_custom_call.1}
  #allocation0 [shape = 'u32[]', space=smem, size = 0x4, offset = 0x4, fixed_abs, tag = 'smem constant byte address 0x4 - core index']
  #allocation1 [shape = 'u32[72,128]{1,0:T(1,128)}', space=vmem, size = 0x9000, scoped, tag = 'internal scratch']
  #allocation2 [shape = 'f32[8,128]{1,0:T(8,128)}', space=vmem, size = 0x1000, scoped, tag = 'scratch operand']
  #allocation3 [shape = 'f32[8,128]{1,0:T(8,128)}', space=vmem, size = 0x1000, scoped, tag = 'scratch operand']
  #allocation4 [shape = 'f32[8,256]{1,0:T(8,128)}', space=vmem, size = 0x2000, scoped, tag = 'scratch operand']
  #allocation5 [shape = 'f32[8,256]{1,0:T(8,128)}', space=vmem, size = 0x2000, scoped, tag = 'scratch operand']
  #allocation6 [shape = 'f32[8,1]{1,0:T(8,128)}', space=vmem, size = 0x1000, scoped, tag = 'scratch operand']
  #allocation7 [shape = 'f32[8,1]{1,0:T(8,128)}', space=vmem, size = 0x1000, scoped, tag = 'scratch operand']
  %s0 = inlined_call_operand.hbm [shape: s32[1,128], index: 0, kind: input, shape index: {}]
  %s1 = inlined_call_operand.hbm [shape: f32[128,128], index: 1, kind: input, shape index: {}]
  %s2 = inlined_call_operand.hbm [shape: f32[128,128], index: 2, kind: input, shape index: {}]
  %s3 = inlined_call_operand.hbm [shape: f32[384,512], index: 3, kind: input, shape index: {}]
  %s4 = inlined_call_operand.hbm [shape: f32[1,512], index: 4, kind: input, shape index: {}]
  %s5 = inlined_call_operand.hbm [shape: f32[256,512], index: 5, kind: input, shape index: {}]
  %s6 = inlined_call_operand.vmem [shape: f32[1,512], index: 6, kind: input, shape index: {}]
  %s7 = inlined_call_operand.hbm [shape: f32[8,256], index: 7, kind: output, shape index: {}]
  %s8 = sld [smem:[#allocation0]]
  $region101: #{tpu_custom_call.1} parent=0
    _
  %s10 = ssub.s32 1, %s8
  %s11 = scalar_select 0, %s10, %s8
  $region1: #{tpu_custom_call.1} parent=0
    #allocation8 [shape = 'u8[512]{0}', space=vmem, size = 0x400, scoped, tag = 'input window, operand 0, single buffered']
    #allocation9 [shape = 's32[2]{0}', space=sflag, size = 0x8, scoped, tag = 'scoped memory for tpu_custom_call.1']
    #allocation10 [shape = 's32[2]{0}', space=sflag, size = 0x8, scoped, tag = 'scoped memory for tpu_custom_call.1']
    #allocation11 [shape = 'u8[65536]{0}', space=vmem, size = 0x10000, scoped, tag = 'input window, operand 1, single buffered']
    #allocation12 [shape = 's32[1]{0}', space=sflag, size = 0x4, scoped, tag = 'scoped memory for tpu_custom_call.1']
    #allocation13 [shape = 'u8[65536]{0}', space=vmem, size = 0x10000, scoped, tag = 'input window, operand 2, single buffered']
    #allocation14 [shape = 'u8[786432]{0}', space=vmem, size = 0xc0000, scoped, tag = 'input window, operand 3, single buffered']
    #allocation15 [shape = 's32[1]{0}', space=sflag, size = 0x4, scoped, tag = 'scoped memory for tpu_custom_call.1']
    #allocation16 [shape = 'u8[2048]{0}', space=vmem, size = 0x800, scoped, tag = 'input window, operand 4, single buffered']
    #allocation17 [shape = 'u8[524288]{0}', space=vmem, size = 0x80000, scoped, tag = 'input window, operand 5, single buffered']
    #allocation18 [shape = 's32[1]{0}', space=sflag, size = 0x4, scoped, tag = 'scoped memory for tpu_custom_call.1']
    #allocation19 [shape = 'u8[8192]{0}', space=vmem, size = 0x2000, scoped, tag = 'output window, operand 0, single buffered']
    %12 = vsyncpa [#allocation9], 0
    %13 = vsyncpa [#allocation12], 0
    %14 = vsyncpa [#allocation15], 0
    %15 = vsyncpa [#allocation18], 0
    %16 = vsyncpa [#allocation10], 0
    loop: start=0, step=1, limit=5
    $region2: #{tpu_custom_call.1} parent=1 // loop_pre_header
      _
    $region3: #{tpu_custom_call.1} parent=1 // loop_header
      %s18 = sphi 0, %s22
      %p19 = scmp.ge.s32.totalorder %s18, 5
      %s25 = sphi 0, %s37
      %s26 = sphi 0, %s33
      %s27 = sphi 0, %s25
      %s28 = sphi 0, %s26
      %s29 = sphi 0, %s27
      %s30 = sphi 0, %s28
      %s38 = sphi 0, %s38
      %s40 = sphi 0, %s38
      %s41 = sphi 0, %s40
      %s55 = sphi 0, %s41
      %s59 = sphi 0, %s59
      %s61 = sphi 0, %s59
      %s62 = sphi 0, %s61
      %s76 = sphi 0, %s62
      %s80 = sphi 0, %s80
      %s82 = sphi 0, %s80
      %s83 = sphi 0, %s82
      %s97 = sphi 0, %s83
      %s101 = sphi 0, %s101
      %s103 = sphi 0, %s101
      %s104 = sphi 0, %s103
      %s118 = sphi 0, %s104
      %s122 = sphi 0, %s122
      %s124 = sphi 0, %s122
      %s125 = sphi 0, %s124
      %s139 = sphi 0, %s125
      %s143 = sphi 0, %s143
      %s145 = sphi 0, %s143
      %s146 = sphi 0, %s145
      %s160 = sphi 0, %s146
      %s164 = sphi 0, %s164
      %s166 = sphi 0, %s164
      %s167 = sphi 0, %s166
      %s181 = sphi 0, %s167
      %s185 = sphi 0, %s185
      %s187 = sphi 0, %s185
      %s188 = sphi 0, %s187
      %s202 = sphi 0, %s188
    $region4: #{tpu_custom_call.1} parent=1 // loop_header_branch
      %21 = sbr.rel (%p19) target = $region8
    $region5: #{tpu_custom_call.1} parent=1 // loop_body
      %s23 = ssub.s32 %s18, 1
      %s24 = ssub.s32 %s18, 2
      %s31 = sadd.s32 1, %s26
      %p32 = scmp.ge.s32.totalorder %s31, 1
      %s33 = scalar_select %p32, 0, %s31
      %s34 = sadd.s32 1, %s25
      %s35 = scalar_select %p32, %s34, %s25
      %p36 = scmp.ge.s32.totalorder %s35, 3
      %s37 = scalar_select %p36, 0, %s35
      %s39 = sadd.s32 %s38, 1
      %p42 = scmp.eq.s32.totalorder %s18, 2
      %p43 = scmp.ne.s32.totalorder %s38, %s40
      %p44 = scmp.eq.s32.totalorder %s18, 0
      %p45 = por %p43, %p44
      %p46 = scmp.ne.s32.totalorder %s38, %s40
      %p47 = scmp.eq.s32.totalorder %s23, 2
      %p48 = por %p46, %p47
      %p49 = scmp.ne.s32.totalorder %s40, %s41
      %p50 = scmp.eq.s32.totalorder %s23, 0
      %p51 = por %p49, %p50
      %p52 = scmp.ne.s32.totalorder %s40, %s41
      %p53 = scmp.eq.s32.totalorder %s24, 2
      %p54 = por %p52, %p53
      %p56 = scmp.ne.s32.totalorder %s41, %s55
      %p57 = scmp.eq.s32.totalorder %s24, 0
      %p58 = por %p56, %p57
      %s60 = sadd.s32 %s59, 1
      %p63 = scmp.eq.s32.totalorder %s18, 2
      %p64 = scmp.ne.s32.totalorder %s59, %s61
      %p65 = scmp.eq.s32.totalorder %s18, 0
      %p66 = por %p64, %p65
      %p67 = scmp.ne.s32.totalorder %s59, %s61
      %p68 = scmp.eq.s32.totalorder %s23, 2
      %p69 = por %p67, %p68
      %p70 = scmp.ne.s32.totalorder %s61, %s62
      %p71 = scmp.eq.s32.totalorder %s23, 0
      %p72 = por %p70, %p71
      %p73 = scmp.ne.s32.totalorder %s61, %s62
      %p74 = scmp.eq.s32.totalorder %s24, 2
      %p75 = por %p73, %p74
      %p77 = scmp.ne.s32.totalorder %s62, %s76
      %p78 = scmp.eq.s32.totalorder %s24, 0
      %p79 = por %p77, %p78
      %s81 = sadd.s32 %s80, 1
      %p84 = scmp.eq.s32.totalorder %s18, 2
      %p85 = scmp.ne.s32.totalorder %s80, %s82
      %p86 = scmp.eq.s32.totalorder %s18, 0
      %p87 = por %p85, %p86
      %p88 = scmp.ne.s32.totalorder %s80, %s82
      %p89 = scmp.eq.s32.totalorder %s23, 2
      %p90 = por %p88, %p89
      %p91 = scmp.ne.s32.totalorder %s82, %s83
      %p92 = scmp.eq.s32.totalorder %s23, 0
      %p93 = por %p91, %p92
      %p94 = scmp.ne.s32.totalorder %s82, %s83
      %p95 = scmp.eq.s32.totalorder %s24, 2
      %p96 = por %p94, %p95
      %p98 = scmp.ne.s32.totalorder %s83, %s97
      %p99 = scmp.eq.s32.totalorder %s24, 0
      %p100 = por %p98, %p99
      %s102 = sadd.s32 %s101, 1
      %p105 = scmp.eq.s32.totalorder %s18, 2
      %p106 = scmp.ne.s32.totalorder %s101, %s103
      %p107 = scmp.eq.s32.totalorder %s18, 0
      %p108 = por %p106, %p107
      %p109 = scmp.ne.s32.totalorder %s101, %s103
      %p110 = scmp.eq.s32.totalorder %s23, 2
      %p111 = por %p109, %p110
      %p112 = scmp.ne.s32.totalorder %s103, %s104
      %p113 = scmp.eq.s32.totalorder %s23, 0
      %p114 = por %p112, %p113
      %p115 = scmp.ne.s32.totalorder %s103, %s104
      %p116 = scmp.eq.s32.totalorder %s24, 2
      %p117 = por %p115, %p116
      %p119 = scmp.ne.s32.totalorder %s104, %s118
      %p120 = scmp.eq.s32.totalorder %s24, 0
      %p121 = por %p119, %p120
      %s123 = sadd.s32 %s122, 1
      %p126 = scmp.eq.s32.totalorder %s18, 2
      %p127 = scmp.ne.s32.totalorder %s122, %s124
      %p128 = scmp.eq.s32.totalorder %s18, 0
      %p129 = por %p127, %p128
      %p130 = scmp.ne.s32.totalorder %s122, %s124
      %p131 = scmp.eq.s32.totalorder %s23, 2
      %p132 = por %p130, %p131
      %p133 = scmp.ne.s32.totalorder %s124, %s125
      %p134 = scmp.eq.s32.totalorder %s23, 0
      %p135 = por %p133, %p134
      %p136 = scmp.ne.s32.totalorder %s124, %s125
      %p137 = scmp.eq.s32.totalorder %s24, 2
      %p138 = por %p136, %p137
      %p140 = scmp.ne.s32.totalorder %s125, %s139
      %p141 = scmp.eq.s32.totalorder %s24, 0
      %p142 = por %p140, %p141
      %s144 = sadd.s32 %s143, 1
      %p147 = scmp.eq.s32.totalorder %s18, 2
      %p148 = scmp.ne.s32.totalorder %s143, %s145
      %p149 = scmp.eq.s32.totalorder %s18, 0
      %p150 = por %p148, %p149
      %p151 = scmp.ne.s32.totalorder %s143, %s145
      %p152 = scmp.eq.s32.totalorder %s23, 2
      %p153 = por %p151, %p152
      %p154 = scmp.ne.s32.totalorder %s145, %s146
      %p155 = scmp.eq.s32.totalorder %s23, 0
      %p156 = por %p154, %p155
      %p157 = scmp.ne.s32.totalorder %s145, %s146
      %p158 = scmp.eq.s32.totalorder %s24, 2
      %p159 = por %p157, %p158
      %p161 = scmp.ne.s32.totalorder %s146, %s160
      %p162 = scmp.eq.s32.totalorder %s24, 0
      %p163 = por %p161, %p162
      %s165 = sadd.s32 %s164, 1
      %p168 = scmp.eq.s32.totalorder %s18, 2
      %p169 = scmp.ne.s32.totalorder %s164, %s166
      %p170 = scmp.eq.s32.totalorder %s18, 0
      %p171 = por %p169, %p170
      %p172 = scmp.ne.s32.totalorder %s164, %s166
      %p173 = scmp.eq.s32.totalorder %s23, 2
      %p174 = por %p172, %p173
      %p175 = scmp.ne.s32.totalorder %s166, %s167
      %p176 = scmp.eq.s32.totalorder %s23, 0
      %p177 = por %p175, %p176
      %p178 = scmp.ne.s32.totalorder %s166, %s167
      %p179 = scmp.eq.s32.totalorder %s24, 2
      %p180 = por %p178, %p179
      %p182 = scmp.ne.s32.totalorder %s167, %s181
      %p183 = scmp.eq.s32.totalorder %s24, 0
      %p184 = por %p182, %p183
      %s186 = sadd.s32 %s185, 1
      %p189 = scmp.eq.s32.totalorder %s18, 2
      %p190 = scmp.ne.s32.totalorder %s185, %s187
      %p191 = scmp.eq.s32.totalorder %s18, 0
      %p192 = por %p190, %p191
      %p193 = scmp.ne.s32.totalorder %s185, %s187
      %p194 = scmp.eq.s32.totalorder %s23, 2
      %p195 = por %p193, %p194
      %p196 = scmp.ne.s32.totalorder %s187, %s188
      %p197 = scmp.eq.s32.totalorder %s23, 0
      %p198 = por %p196, %p197
      %p199 = scmp.ne.s32.totalorder %s187, %s188
      %p200 = scmp.eq.s32.totalorder %s24, 2
      %p201 = por %p199, %p200
      %p203 = scmp.ne.s32.totalorder %s188, %s202
      %p204 = scmp.eq.s32.totalorder %s24, 0
      %p205 = por %p203, %p204
      %p206 = scmp.le.s32.totalorder 1, %s18
      %p207 = scmp.lt.s32.totalorder %s18, 4
      %p208 = pnand %p206, %p207
      %p209 = pneg %p208
      // Predicated region
      $region9: #{tpu_custom_call.1} parent=5 // pred_check
        _
      $region10: #{tpu_custom_call.1} parent=5 // pred_check_branch
        %211 = sbr.rel (%p208) target = $region12
      $region11: #{tpu_custom_call.1} parent=5 // pred_region
        %s212 = ssub.s32 %s18, 1
        // Predicated region
        $region13: #{tpu_custom_call.1} parent=11 // pred_check
          %p213 = pneg %p51
        $region14: #{tpu_custom_call.1} parent=11 // pred_check_branch
          %215 = sbr.rel (%p213) target = $region16
        $region15: #{tpu_custom_call.1} parent=11 // pred_region
          %217 = vsyncadd [#allocation9], 0
          %s219 = sshll.u32 %s0, 4
          %s220 = int_to_ptr.hbm [resolvable:$true] %s219
          %s221 = sshll.u32 [#allocation8], 4
          %s222 = int_to_ptr.vmem [resolvable:$true] %s221
          %224 = dma.hbm_to_vmem [thread:$0]  %s220, 16, %s222, [#allocation9]
        $region16: #{tpu_custom_call.1} parent=11 // pred_fallthru
          _
        // Predicated region
        $region17: #{tpu_custom_call.1} parent=11 // pred_check
          %p225 = pneg %p72
        $region18: #{tpu_custom_call.1} parent=11 // pred_check_branch
          %227 = sbr.rel (%p225) target = $region20
        $region19: #{tpu_custom_call.1} parent=11 // pred_region
          %229 = vsyncadd [#allocation12], 0
          %s230 = sshll.u32 %s1, 4
          %s231 = int_to_ptr.hbm [resolvable:$true] %s230
          %s232 = sshll.u32 [#allocation11], 4
          %s233 = int_to_ptr.vmem [resolvable:$true] %s232
          %238 = dma.hbm_to_vmem [thread:$0]  %s231, 2048, %s233, [#allocation12], 128, 128, 8
        $region20: #{tpu_custom_call.1} parent=11 // pred_fallthru
          _
        // Predicated region
        $region21: #{tpu_custom_call.1} parent=11 // pred_check
          %p239 = pneg %p93
        $region22: #{tpu_custom_call.1} parent=11 // pred_check_branch
          %241 = sbr.rel (%p239) target = $region24
        $region23: #{tpu_custom_call.1} parent=11 // pred_region
          %243 = vsyncadd [#allocation12], 0
          %s244 = sshll.u32 %s2, 4
          %s245 = int_to_ptr.hbm [resolvable:$true] %s244
          %s246 = sshll.u32 [#allocation13], 4
          %s247 = int_to_ptr.vmem [resolvable:$true] %s246
          %252 = dma.hbm_to_vmem [thread:$0]  %s245, 2048, %s247, [#allocation12], 128, 128, 8
        $region24: #{tpu_custom_call.1} parent=11 // pred_fallthru
          _
        // Predicated region
        $region25: #{tpu_custom_call.1} parent=11 // pred_check
          %p253 = pneg %p114
        $region26: #{tpu_custom_call.1} parent=11 // pred_check_branch
          %255 = sbr.rel (%p253) target = $region28
        $region27: #{tpu_custom_call.1} parent=11 // pred_region
          %257 = vsyncadd [#allocation15], 0
          %s258 = sshll.u32 %s3, 4
          %s259 = int_to_ptr.hbm [resolvable:$true] %s258
          %s260 = sshll.u32 [#allocation14], 4
          %s261 = int_to_ptr.vmem [resolvable:$true] %s260
          %266 = dma.hbm_to_vmem [thread:$0]  %s259, 24576, %s261, [#allocation15], 512, 512, 32
        $region28: #{tpu_custom_call.1} parent=11 // pred_fallthru
          _
        // Predicated region
        $region29: #{tpu_custom_call.1} parent=11 // pred_check
          %p267 = pneg %p135
        $region30: #{tpu_custom_call.1} parent=11 // pred_check_branch
          %269 = sbr.rel (%p267) target = $region32
        $region31: #{tpu_custom_call.1} parent=11 // pred_region
          %271 = vsyncadd [#allocation15], 0
          %s273 = sshll.u32 %s4, 4
          %s274 = int_to_ptr.hbm [resolvable:$true] %s273
          %s275 = sshll.u32 [#allocation16], 4
          %s276 = int_to_ptr.vmem [resolvable:$true] %s275
          %278 = dma.hbm_to_vmem [thread:$0]  %s274, 64, %s276, [#allocation15]
        $region32: #{tpu_custom_call.1} parent=11 // pred_fallthru
          _
        // Predicated region
        $region33: #{tpu_custom_call.1} parent=11 // pred_check
          %p279 = pneg %p156
        $region34: #{tpu_custom_call.1} parent=11 // pred_check_branch
          %281 = sbr.rel (%p279) target = $region36
        $region35: #{tpu_custom_call.1} parent=11 // pred_region
          %283 = vsyncadd [#allocation18], 0
          %s284 = sshll.u32 %s5, 4
          %s285 = int_to_ptr.hbm [resolvable:$true] %s284
          %s286 = sshll.u32 [#allocation17], 4
          %s287 = int_to_ptr.vmem [resolvable:$true] %s286
          %292 = dma.hbm_to_vmem [thread:$0]  %s285, 16384, %s287, [#allocation18], 512, 512, 32
        $region36: #{tpu_custom_call.1} parent=11 // pred_fallthru
          _
        // Predicated region
        $region37: #{tpu_custom_call.1} parent=11 // pred_check
          %p293 = pneg %p177
        $region38: #{tpu_custom_call.1} parent=11 // pred_check_branch
          %295 = sbr.rel (%p293) target = $region40
        $region39: #{tpu_custom_call.1} parent=11 // pred_region
          _
        $region40: #{tpu_custom_call.1} parent=11 // pred_fallthru
          _
      $region12: #{tpu_custom_call.1} parent=5 // pred_fallthru
        _
      %p296 = scmp.lt.s32.totalorder %s18, 3
      // Predicated region
      $region41: #{tpu_custom_call.1} parent=5 // pred_check
        %p297 = pneg %p296
      $region42: #{tpu_custom_call.1} parent=5 // pred_check_branch
        %299 = sbr.rel (%p297) target = $region44
      $region43: #{tpu_custom_call.1} parent=5 // pred_region
        _
      $region44: #{tpu_custom_call.1} parent=5 // pred_fallthru
        _
      %p300 = scmp.le.s32.totalorder 1, %s18
      %p301 = scmp.lt.s32.totalorder %s18, 4
      %p302 = pnand %p300, %p301
      %p303 = pneg %p302
      // Predicated region
      $region45: #{tpu_custom_call.1} parent=5 // pred_check
        _
      $region46: #{tpu_custom_call.1} parent=5 // pred_check_branch
        %305 = sbr.rel (%p302) target = $region48
      $region47: #{tpu_custom_call.1} parent=5 // pred_region
        %s306 = ssub.s32 %s18, 1
        // Predicated region
        $region49: #{tpu_custom_call.1} parent=47 // pred_check
          %p307 = pneg %p51
        $region50: #{tpu_custom_call.1} parent=47 // pred_check_branch
          %309 = sbr.rel (%p307) target = $region52
        $region51: #{tpu_custom_call.1} parent=47 // pred_region
          %311 = dma.done [#allocation9], 16
        $region52: #{tpu_custom_call.1} parent=47 // pred_fallthru
          _
        // Predicated region
        $region53: #{tpu_custom_call.1} parent=47 // pred_check
          %p312 = pneg %p72
        $region54: #{tpu_custom_call.1} parent=47 // pred_check_branch
          %314 = sbr.rel (%p312) target = $region56
        $region55: #{tpu_custom_call.1} parent=47 // pred_region
          %316 = dma.done [#allocation12], 2048
        $region56: #{tpu_custom_call.1} parent=47 // pred_fallthru
          _
        // Predicated region
        $region57: #{tpu_custom_call.1} parent=47 // pred_check
          %p317 = pneg %p93
        $region58: #{tpu_custom_call.1} parent=47 // pred_check_branch
          %319 = sbr.rel (%p317) target = $region60
        $region59: #{tpu_custom_call.1} parent=47 // pred_region
          %321 = dma.done [#allocation12], 2048
        $region60: #{tpu_custom_call.1} parent=47 // pred_fallthru
          _
        // Predicated region
        $region61: #{tpu_custom_call.1} parent=47 // pred_check
          %p322 = pneg %p114
        $region62: #{tpu_custom_call.1} parent=47 // pred_check_branch
          %324 = sbr.rel (%p322) target = $region64
        $region63: #{tpu_custom_call.1} parent=47 // pred_region
          %326 = dma.done [#allocation15], 24576
        $region64: #{tpu_custom_call.1} parent=47 // pred_fallthru
          _
        // Predicated region
        $region65: #{tpu_custom_call.1} parent=47 // pred_check
          %p327 = pneg %p135
        $region66: #{tpu_custom_call.1} parent=47 // pred_check_branch
          %329 = sbr.rel (%p327) target = $region68
        $region67: #{tpu_custom_call.1} parent=47 // pred_region
          %331 = dma.done [#allocation15], 64
        $region68: #{tpu_custom_call.1} parent=47 // pred_fallthru
          _
        // Predicated region
        $region69: #{tpu_custom_call.1} parent=47 // pred_check
          %p332 = pneg %p156
        $region70: #{tpu_custom_call.1} parent=47 // pred_check_branch
          %334 = sbr.rel (%p332) target = $region72
        $region71: #{tpu_custom_call.1} parent=47 // pred_region
          %336 = dma.done [#allocation18], 16384
        $region72: #{tpu_custom_call.1} parent=47 // pred_fallthru
          _
        %p337 = pneg %p51
        %p338 = pneg %p48
        %p339 = pneg %p72
        %p340 = pneg %p69
        %p341 = pneg %p93
        %p342 = pneg %p90
        %p343 = pneg %p114
        %p344 = pneg %p111
        %p345 = pneg %p135
        %p346 = pneg %p132
        %p347 = pneg %p156
        %p348 = pneg %p153
        %p349 = pneg %p177
        %p350 = pneg %p174
        %p351 = pneg %p198
        %p352 = pneg %p195
        %p353 = scmp.eq.s32.totalorder %s27, 0
        %p354 = scmp.eq.s32.totalorder %s28, 0
        %p355 = pnand %p353, %p354
        %p356 = pneg %p355
        // Predicated region
        $region73: #{tpu_custom_call.1} parent=47 // pred_check
          _
        $region74: #{tpu_custom_call.1} parent=47 // pred_check_branch
          %358 = sbr.rel (%p355) target = $region76
        $region75: #{tpu_custom_call.1} parent=47 // pred_region
          %359 = vst [vmem:[#allocation2] sm:$0xff] 0.0
          %360 = vst [vmem:[#allocation3] sm:$0xff] 0.0
          %361 = vst [vmem:[#allocation4] sm:$0xff] 0.0
          %362 = vst [vmem:[#allocation4 + $0x8] sm:$0xff] 0.0
          %363 = vst [vmem:[#allocation5] sm:$0xff] 0.0
          %364 = vst [vmem:[#allocation5 + $0x8] sm:$0xff] 0.0
        $region76: #{tpu_custom_call.1} parent=47 // pred_fallthru
          _
        // Predicated region
        $region77: #{tpu_custom_call.1} parent=47 // pred_check
          %p365 = pneg %p354
        $region78: #{tpu_custom_call.1} parent=47 // pred_check_branch
          %367 = sbr.rel (%p365) target = $region80
        $region79: #{tpu_custom_call.1} parent=47 // pred_region
          %v368 = vld [vmem:[#allocation2] sm:$0xff]
          %v369 = vld [vmem:[#allocation3] sm:$0xff]
          %v370 = vld [vmem:[#allocation4] sm:$0xff]
          %v371 = vld [vmem:[#allocation5] sm:$0xff]
          %v372 = vld [vmem:[#allocation14] sm:$0xff]
          %v373 = vld [vmem:[#allocation14 + $0x8] sm:$0xff]
          %v374 = vld [vmem:[#allocation14 + $0x10] sm:$0xff]
          %v375 = vld [vmem:[#allocation14 + $0x18] sm:$0xff]
          %v376 = vld [vmem:[#allocation14 + $0x20] sm:$0xff]
          %v377 = vld [vmem:[#allocation14 + $0x28] sm:$0xff]
          %v378 = vld [vmem:[#allocation14 + $0x30] sm:$0xff]
          %v379 = vld [vmem:[#allocation14 + $0x38] sm:$0xff]
          %v380 = vld [vmem:[#allocation14 + $0x40] sm:$0xff]
          %v381 = vld [vmem:[#allocation14 + $0x48] sm:$0xff]
          %v382 = vld [vmem:[#allocation14 + $0x50] sm:$0xff]
          %v383 = vld [vmem:[#allocation14 + $0x58] sm:$0xff]
          %v384 = vld [vmem:[#allocation14 + $0x60] sm:$0xff]
          %v385 = vld [vmem:[#allocation14 + $0x68] sm:$0xff]
          %v386 = vld [vmem:[#allocation14 + $0x70] sm:$0xff]
          %v387 = vld [vmem:[#allocation14 + $0x78] sm:$0xff]
          %v388 = vld [vmem:[#allocation14 + $0x80] sm:$0xff]
          %v389 = vld [vmem:[#allocation14 + $0x88] sm:$0xff]
          %v390 = vld [vmem:[#allocation14 + $0x90] sm:$0xff]
          %v391 = vld [vmem:[#allocation14 + $0x98] sm:$0xff]
          %v392 = vld [vmem:[#allocation14 + $0xa0] sm:$0xff]
          %v393 = vld [vmem:[#allocation14 + $0xa8] sm:$0xff]
          %v394 = vld [vmem:[#allocation14 + $0xb0] sm:$0xff]
          %v395 = vld [vmem:[#allocation14 + $0xb8] sm:$0xff]
          %v396 = vld [vmem:[#allocation14 + $0xc0] sm:$0xff]
          %v397 = vld [vmem:[#allocation14 + $0xc8] sm:$0xff]
          %v398 = vld [vmem:[#allocation14 + $0xd0] sm:$0xff]
          %v399 = vld [vmem:[#allocation14 + $0xd8] sm:$0xff]
          %v400 = vld [vmem:[#allocation14 + $0xe0] sm:$0xff]
          %v401 = vld [vmem:[#allocation14 + $0xe8] sm:$0xff]
          %v402 = vld [vmem:[#allocation14 + $0xf0] sm:$0xff]
          %v403 = vld [vmem:[#allocation14 + $0xf8] sm:$0xff]
          %v404 = vld [vmem:[#allocation14 + $0x100] sm:$0xff]
          %v405 = vld [vmem:[#allocation14 + $0x108] sm:$0xff]
          %v406 = vld [vmem:[#allocation14 + $0x110] sm:$0xff]
          %v407 = vld [vmem:[#allocation14 + $0x118] sm:$0xff]
          %v408 = vld [vmem:[#allocation14 + $0x120] sm:$0xff]
          %v409 = vld [vmem:[#allocation14 + $0x128] sm:$0xff]
          %v410 = vld [vmem:[#allocation14 + $0x130] sm:$0xff]
          %v411 = vld [vmem:[#allocation14 + $0x138] sm:$0xff]
          %v412 = vld [vmem:[#allocation14 + $0x140] sm:$0xff]
          %v413 = vld [vmem:[#allocation14 + $0x148] sm:$0xff]
          %v414 = vld [vmem:[#allocation14 + $0x150] sm:$0xff]
          %v415 = vld [vmem:[#allocation14 + $0x158] sm:$0xff]
          %v416 = vld [vmem:[#allocation14 + $0x160] sm:$0xff]
          %v417 = vld [vmem:[#allocation14 + $0x168] sm:$0xff]
          %v418 = vld [vmem:[#allocation14 + $0x170] sm:$0xff]
          %v419 = vld [vmem:[#allocation14 + $0x178] sm:$0xff]
          %v420 = vld [vmem:[#allocation14 + $0x180] sm:$0xff]
          %v421 = vld [vmem:[#allocation14 + $0x188] sm:$0xff]
          %v422 = vld [vmem:[#allocation14 + $0x190] sm:$0xff]
          %v423 = vld [vmem:[#allocation14 + $0x198] sm:$0xff]
          %v424 = vld [vmem:[#allocation14 + $0x1a0] sm:$0xff]
          %v425 = vld [vmem:[#allocation14 + $0x1a8] sm:$0xff]
          %v426 = vld [vmem:[#allocation14 + $0x1b0] sm:$0xff]
          %v427 = vld [vmem:[#allocation14 + $0x1b8] sm:$0xff]
          %v428 = vld [vmem:[#allocation14 + $0x1c0] sm:$0xff]
          %v429 = vld [vmem:[#allocation14 + $0x1c8] sm:$0xff]
          %v430 = vld [vmem:[#allocation14 + $0x1d0] sm:$0xff]
          %v431 = vld [vmem:[#allocation14 + $0x1d8] sm:$0xff]
          %v432 = vld [vmem:[#allocation14 + $0x1e0] sm:$0xff]
          %v433 = vld [vmem:[#allocation14 + $0x1e8] sm:$0xff]
          %v434 = vld [vmem:[#allocation14 + $0x1f0] sm:$0xff]
          %v435 = vld [vmem:[#allocation14 + $0x1f8] sm:$0xff]
          %v436 = vld [vmem:[#allocation14 + $0x200] sm:$0xff]
          %v437 = vld [vmem:[#allocation14 + $0x208] sm:$0xff]
          %v438 = vld [vmem:[#allocation14 + $0x210] sm:$0xff]
          %v439 = vld [vmem:[#allocation14 + $0x218] sm:$0xff]
          %v440 = vld [vmem:[#allocation14 + $0x220] sm:$0xff]
          %v441 = vld [vmem:[#allocation14 + $0x228] sm:$0xff]
          %v442 = vld [vmem:[#allocation14 + $0x230] sm:$0xff]
          %v443 = vld [vmem:[#allocation14 + $0x238] sm:$0xff]
          %v444 = vld [vmem:[#allocation14 + $0x240] sm:$0xff]
          %v445 = vld [vmem:[#allocation14 + $0x248] sm:$0xff]
          %v446 = vld [vmem:[#allocation14 + $0x250] sm:$0xff]
          %v447 = vld [vmem:[#allocation14 + $0x258] sm:$0xff]
          %v448 = vld [vmem:[#allocation14 + $0x260] sm:$0xff]
          %v449 = vld [vmem:[#allocation14 + $0x268] sm:$0xff]
          %v450 = vld [vmem:[#allocation14 + $0x270] sm:$0xff]
          %v451 = vld [vmem:[#allocation14 + $0x278] sm:$0xff]
          %v452 = vld [vmem:[#allocation14 + $0x280] sm:$0xff]
          %v453 = vld [vmem:[#allocation14 + $0x288] sm:$0xff]
          %v454 = vld [vmem:[#allocation14 + $0x290] sm:$0xff]
          %v455 = vld [vmem:[#allocation14 + $0x298] sm:$0xff]
          %v456 = vld [vmem:[#allocation14 + $0x2a0] sm:$0xff]
          %v457 = vld [vmem:[#allocation14 + $0x2a8] sm:$0xff]
          %v458 = vld [vmem:[#allocation14 + $0x2b0] sm:$0xff]
          %v459 = vld [vmem:[#allocation14 + $0x2b8] sm:$0xff]
          %v460 = vld [vmem:[#allocation14 + $0x2c0] sm:$0xff]
          %v461 = vld [vmem:[#allocation14 + $0x2c8] sm:$0xff]
          %v462 = vld [vmem:[#allocation14 + $0x2d0] sm:$0xff]
          %v463 = vld [vmem:[#allocation14 + $0x2d8] sm:$0xff]
          %v464 = vld [vmem:[#allocation14 + $0x2e0] sm:$0xff]
          %v465 = vld [vmem:[#allocation14 + $0x2e8] sm:$0xff]
          %v466 = vld [vmem:[#allocation14 + $0x2f0] sm:$0xff]
          %v467 = vld [vmem:[#allocation14 + $0x2f8] sm:$0xff]
          %v468 = vld [vmem:[#allocation14 + $0x300] sm:$0xff]
          %v469 = vld [vmem:[#allocation14 + $0x308] sm:$0xff]
          %v470 = vld [vmem:[#allocation14 + $0x310] sm:$0xff]
          %v471 = vld [vmem:[#allocation14 + $0x318] sm:$0xff]
          %v472 = vld [vmem:[#allocation14 + $0x320] sm:$0xff]
          %v473 = vld [vmem:[#allocation14 + $0x328] sm:$0xff]
          %v474 = vld [vmem:[#allocation14 + $0x330] sm:$0xff]
          %v475 = vld [vmem:[#allocation14 + $0x338] sm:$0xff]
          %v476 = vld [vmem:[#allocation14 + $0x340] sm:$0xff]
          %v477 = vld [vmem:[#allocation14 + $0x348] sm:$0xff]
          %v478 = vld [vmem:[#allocation14 + $0x350] sm:$0xff]
          %v479 = vld [vmem:[#allocation14 + $0x358] sm:$0xff]
          %v480 = vld [vmem:[#allocation14 + $0x360] sm:$0xff]
          %v481 = vld [vmem:[#allocation14 + $0x368] sm:$0xff]
          %v482 = vld [vmem:[#allocation14 + $0x370] sm:$0xff]
          %v483 = vld [vmem:[#allocation14 + $0x378] sm:$0xff]
          %v484 = vld [vmem:[#allocation14 + $0x380] sm:$0xff]
          %v485 = vld [vmem:[#allocation14 + $0x388] sm:$0xff]
          %v486 = vld [vmem:[#allocation14 + $0x390] sm:$0xff]
          %v487 = vld [vmem:[#allocation14 + $0x398] sm:$0xff]
          %v488 = vld [vmem:[#allocation14 + $0x3a0] sm:$0xff]
          %v489 = vld [vmem:[#allocation14 + $0x3a8] sm:$0xff]
          %v490 = vld [vmem:[#allocation14 + $0x3b0] sm:$0xff]
          %v491 = vld [vmem:[#allocation14 + $0x3b8] sm:$0xff]
          %v492 = vld [vmem:[#allocation14 + $0x3c0] sm:$0xff]
          %v493 = vld [vmem:[#allocation14 + $0x3c8] sm:$0xff]
          %v494 = vld [vmem:[#allocation14 + $0x3d0] sm:$0xff]
          %v495 = vld [vmem:[#allocation14 + $0x3d8] sm:$0xff]
          %v496 = vld [vmem:[#allocation14 + $0x3e0] sm:$0xff]
          %v497 = vld [vmem:[#allocation14 + $0x3e8] sm:$0xff]
          %v498 = vld [vmem:[#allocation14 + $0x3f0] sm:$0xff]
          %v499 = vld [vmem:[#allocation14 + $0x3f8] sm:$0xff]
          %v500 = vld [vmem:[#allocation14 + $0x400] sm:$0xff]
          %v501 = vld [vmem:[#allocation14 + $0x408] sm:$0xff]
          %v502 = vld [vmem:[#allocation14 + $0x410] sm:$0xff]
          %v503 = vld [vmem:[#allocation14 + $0x418] sm:$0xff]
          %v504 = vld [vmem:[#allocation14 + $0x420] sm:$0xff]
          %v505 = vld [vmem:[#allocation14 + $0x428] sm:$0xff]
          %v506 = vld [vmem:[#allocation14 + $0x430] sm:$0xff]
          %v507 = vld [vmem:[#allocation14 + $0x438] sm:$0xff]
          %v508 = vld [vmem:[#allocation14 + $0x440] sm:$0xff]
          %v509 = vld [vmem:[#allocation14 + $0x448] sm:$0xff]
          %v510 = vld [vmem:[#allocation14 + $0x450] sm:$0xff]
          %v511 = vld [vmem:[#allocation14 + $0x458] sm:$0xff]
          %v512 = vld [vmem:[#allocation14 + $0x460] sm:$0xff]
          %v513 = vld [vmem:[#allocation14 + $0x468] sm:$0xff]
          %v514 = vld [vmem:[#allocation14 + $0x470] sm:$0xff]
          %v515 = vld [vmem:[#allocation14 + $0x478] sm:$0xff]
          %v516 = vld [vmem:[#allocation14 + $0x480] sm:$0xff]
          %v517 = vld [vmem:[#allocation14 + $0x488] sm:$0xff]
          %v518 = vld [vmem:[#allocation14 + $0x490] sm:$0xff]
          %v519 = vld [vmem:[#allocation14 + $0x498] sm:$0xff]
          %v520 = vld [vmem:[#allocation14 + $0x4a0] sm:$0xff]
          %v521 = vld [vmem:[#allocation14 + $0x4a8] sm:$0xff]
          %v522 = vld [vmem:[#allocation14 + $0x4b0] sm:$0xff]
          %v523 = vld [vmem:[#allocation14 + $0x4b8] sm:$0xff]
          %v524 = vld [vmem:[#allocation14 + $0x4c0] sm:$0xff]
          %v525 = vld [vmem:[#allocation14 + $0x4c8] sm:$0xff]
          %v526 = vld [vmem:[#allocation14 + $0x4d0] sm:$0xff]
          %v527 = vld [vmem:[#allocation14 + $0x4d8] sm:$0xff]
          %v528 = vld [vmem:[#allocation14 + $0x4e0] sm:$0xff]
          %v529 = vld [vmem:[#allocation14 + $0x4e8] sm:$0xff]
          %v530 = vld [vmem:[#allocation14 + $0x4f0] sm:$0xff]
          %v531 = vld [vmem:[#allocation14 + $0x4f8] sm:$0xff]
          %v532 = vld [vmem:[#allocation14 + $0x500] sm:$0xff]
          %v533 = vld [vmem:[#allocation14 + $0x508] sm:$0xff]
          %v534 = vld [vmem:[#allocation14 + $0x510] sm:$0xff]
          %v535 = vld [vmem:[#allocation14 + $0x518] sm:$0xff]
          %v536 = vld [vmem:[#allocation14 + $0x520] sm:$0xff]
          %v537 = vld [vmem:[#allocation14 + $0x528] sm:$0xff]
          %v538 = vld [vmem:[#allocation14 + $0x530] sm:$0xff]
          %v539 = vld [vmem:[#allocation14 + $0x538] sm:$0xff]
          %v540 = vld [vmem:[#allocation14 + $0x540] sm:$0xff]
          %v541 = vld [vmem:[#allocation14 + $0x548] sm:$0xff]
          %v542 = vld [vmem:[#allocation14 + $0x550] sm:$0xff]
          %v543 = vld [vmem:[#allocation14 + $0x558] sm:$0xff]
          %v544 = vld [vmem:[#allocation14 + $0x560] sm:$0xff]
          %v545 = vld [vmem:[#allocation14 + $0x568] sm:$0xff]
          %v546 = vld [vmem:[#allocation14 + $0x570] sm:$0xff]
          %v547 = vld [vmem:[#allocation14 + $0x578] sm:$0xff]
          %v548 = vld [vmem:[#allocation14 + $0x580] sm:$0xff]
          %v549 = vld [vmem:[#allocation14 + $0x588] sm:$0xff]
          %v550 = vld [vmem:[#allocation14 + $0x590] sm:$0xff]
          %v551 = vld [vmem:[#allocation14 + $0x598] sm:$0xff]
          %v552 = vld [vmem:[#allocation14 + $0x5a0] sm:$0xff]
          %v553 = vld [vmem:[#allocation14 + $0x5a8] sm:$0xff]
          %v554 = vld [vmem:[#allocation14 + $0x5b0] sm:$0xff]
          %v555 = vld [vmem:[#allocation14 + $0x5b8] sm:$0xff]
          %v556 = vld [vmem:[#allocation14 + $0x5c0] sm:$0xff]
          %v557 = vld [vmem:[#allocation14 + $0x5c8] sm:$0xff]
          %v558 = vld [vmem:[#allocation14 + $0x5d0] sm:$0xff]
          %v559 = vld [vmem:[#allocation14 + $0x5d8] sm:$0xff]
          %v560 = vld [vmem:[#allocation14 + $0x5e0] sm:$0xff]
          %v561 = vld [vmem:[#allocation14 + $0x5e8] sm:$0xff]
          %v562 = vld [vmem:[#allocation14 + $0x5f0] sm:$0xff]
          %v563 = vld [vmem:[#allocation14 + $0x5f8] sm:$0xff]
          %v564 = vld [vmem:[#allocation16] sm:$0xf]
          %v566 = vperm.slane %v564, 0
          %v567 = vperm.slane %v564, 1
          %v568 = vperm.slane %v564, 2
          %v569 = vperm.slane %v564, 3
          %574 = vmatpush.msra.mxu0 %v432
          %575 = vmatpush.msra.mxu0 %v428
          %576 = vmatpush.msra.mxu0 %v424
          %577 = vmatpush.msra.mxu0 %v420
          %578 = vmatpush.msra.mxu0 %v416
          %579 = vmatpush.msra.mxu0 %v412
          %580 = vmatpush.msra.mxu0 %v408
          %581 = vmatpush.msra.mxu0 %v404
          %582 = vmatpush.msra.mxu0 %v400
          %583 = vmatpush.msra.mxu0 %v396
          %584 = vmatpush.msra.mxu0 %v392
          %585 = vmatpush.msra.mxu0 %v388
          %586 = vmatpush.msra.mxu0 %v384
          %587 = vmatpush.msra.mxu0 %v380
          %588 = vmatpush.msra.mxu0 %v376
          %589 = vmatpush.msra.mxu0 %v372
          %590 = vmatmul.f32.gmra.mxu0 %v368
          %v591 = vpop.f32.mrf.mxu0
          %v592 = vadd.f32 %v566, %v591
          %593 = vdwg.mxu0
          %594 = vmatpush.msra.mxu0 %v496
          %595 = vmatpush.msra.mxu0 %v492
          %596 = vmatpush.msra.mxu0 %v488
          %597 = vmatpush.msra.mxu0 %v484
          %598 = vmatpush.msra.mxu0 %v480
          %599 = vmatpush.msra.mxu0 %v476
          %600 = vmatpush.msra.mxu0 %v472
          %601 = vmatpush.msra.mxu0 %v468
          %602 = vmatpush.msra.mxu0 %v464
          %603 = vmatpush.msra.mxu0 %v460
          %604 = vmatpush.msra.mxu0 %v456
          %605 = vmatpush.msra.mxu0 %v452
          %606 = vmatpush.msra.mxu0 %v448
          %607 = vmatpush.msra.mxu0 %v444
          %608 = vmatpush.msra.mxu0 %v440
          %609 = vmatpush.msra.mxu0 %v436
          %610 = vmatmul.f32.gmra.mxu0 %v369
          %v611 = vpop.f32.mrf.mxu0
          %v612 = vadd.f32 %v592, %v611
          %613 = vdwg.mxu0
          %614 = vmatpush.msra.mxu0 %v560
          %615 = vmatpush.msra.mxu0 %v556
          %616 = vmatpush.msra.mxu0 %v552
          %617 = vmatpush.msra.mxu0 %v548
          %618 = vmatpush.msra.mxu0 %v544
          %619 = vmatpush.msra.mxu0 %v540
          %620 = vmatpush.msra.mxu0 %v536
          %621 = vmatpush.msra.mxu0 %v532
          %622 = vmatpush.msra.mxu0 %v528
          %623 = vmatpush.msra.mxu0 %v524
          %624 = vmatpush.msra.mxu0 %v520
          %625 = vmatpush.msra.mxu0 %v516
          %626 = vmatpush.msra.mxu0 %v512
          %627 = vmatpush.msra.mxu0 %v508
          %628 = vmatpush.msra.mxu0 %v504
          %629 = vmatpush.msra.mxu0 %v500
          %630 = vmatmul.f32.gmra.mxu0 %v370
          %v631 = vpop.f32.mrf.mxu0
          %v632 = vadd.f32 %v612, %v631
          %633 = vdwg.mxu0
          %634 = vmatpush.msra.mxu0 %v433
          %635 = vmatpush.msra.mxu0 %v429
          %636 = vmatpush.msra.mxu0 %v425
          %637 = vmatpush.msra.mxu0 %v421
          %638 = vmatpush.msra.mxu0 %v417
          %639 = vmatpush.msra.mxu0 %v413
          %640 = vmatpush.msra.mxu0 %v409
          %641 = vmatpush.msra.mxu0 %v405
          %642 = vmatpush.msra.mxu0 %v401
          %643 = vmatpush.msra.mxu0 %v397
          %644 = vmatpush.msra.mxu0 %v393
          %645 = vmatpush.msra.mxu0 %v389
          %646 = vmatpush.msra.mxu0 %v385
          %647 = vmatpush.msra.mxu0 %v381
          %648 = vmatpush.msra.mxu0 %v377
          %649 = vmatpush.msra.mxu0 %v373
          %650 = vmatmul.f32.gmra.mxu0 %v368
          %v651 = vpop.f32.mrf.mxu0
          %v652 = vadd.f32 %v567, %v651
          %653 = vdwg.mxu0
          %654 = vmatpush.msra.mxu0 %v497
          %655 = vmatpush.msra.mxu0 %v493
          %656 = vmatpush.msra.mxu0 %v489
          %657 = vmatpush.msra.mxu0 %v485
          %658 = vmatpush.msra.mxu0 %v481
          %659 = vmatpush.msra.mxu0 %v477
          %660 = vmatpush.msra.mxu0 %v473
          %661 = vmatpush.msra.mxu0 %v469
          %662 = vmatpush.msra.mxu0 %v465
          %663 = vmatpush.msra.mxu0 %v461
          %664 = vmatpush.msra.mxu0 %v457
          %665 = vmatpush.msra.mxu0 %v453
          %666 = vmatpush.msra.mxu0 %v449
          %667 = vmatpush.msra.mxu0 %v445
          %668 = vmatpush.msra.mxu0 %v441
          %669 = vmatpush.msra.mxu0 %v437
          %670 = vmatmul.f32.gmra.mxu0 %v369
          %v671 = vpop.f32.mrf.mxu0
          %v672 = vadd.f32 %v652, %v671
          %673 = vdwg.mxu0
          %674 = vmatpush.msra.mxu0 %v561
          %675 = vmatpush.msra.mxu0 %v557
          %676 = vmatpush.msra.mxu0 %v553
          %677 = vmatpush.msra.mxu0 %v549
          %678 = vmatpush.msra.mxu0 %v545
          %679 = vmatpush.msra.mxu0 %v541
          %680 = vmatpush.msra.mxu0 %v537
          %681 = vmatpush.msra.mxu0 %v533
          %682 = vmatpush.msra.mxu0 %v529
          %683 = vmatpush.msra.mxu0 %v525
          %684 = vmatpush.msra.mxu0 %v521
          %685 = vmatpush.msra.mxu0 %v517
          %686 = vmatpush.msra.mxu0 %v513
          %687 = vmatpush.msra.mxu0 %v509
          %688 = vmatpush.msra.mxu0 %v505
          %689 = vmatpush.msra.mxu0 %v501
          %690 = vmatmul.f32.gmra.mxu0 %v370
          %v691 = vpop.f32.mrf.mxu0
          %v692 = vadd.f32 %v672, %v691
          %693 = vdwg.mxu0
          %694 = vmatpush.msra.mxu0 %v434
          %695 = vmatpush.msra.mxu0 %v430
          %696 = vmatpush.msra.mxu0 %v426
          %697 = vmatpush.msra.mxu0 %v422
          %698 = vmatpush.msra.mxu0 %v418
          %699 = vmatpush.msra.mxu0 %v414
          %700 = vmatpush.msra.mxu0 %v410
          %701 = vmatpush.msra.mxu0 %v406
          %702 = vmatpush.msra.mxu0 %v402
          %703 = vmatpush.msra.mxu0 %v398
          %704 = vmatpush.msra.mxu0 %v394
          %705 = vmatpush.msra.mxu0 %v390
          %706 = vmatpush.msra.mxu0 %v386
          %707 = vmatpush.msra.mxu0 %v382
          %708 = vmatpush.msra.mxu0 %v378
          %709 = vmatpush.msra.mxu0 %v374
          %710 = vmatmul.f32.gmra.mxu0 %v368
          %v711 = vpop.f32.mrf.mxu0
          %v712 = vadd.f32 %v568, %v711
          %713 = vdwg.mxu0
          %714 = vmatpush.msra.mxu0 %v498
          %715 = vmatpush.msra.mxu0 %v494
          %716 = vmatpush.msra.mxu0 %v490
          %717 = vmatpush.msra.mxu0 %v486
          %718 = vmatpush.msra.mxu0 %v482
          %719 = vmatpush.msra.mxu0 %v478
          %720 = vmatpush.msra.mxu0 %v474
          %721 = vmatpush.msra.mxu0 %v470
          %722 = vmatpush.msra.mxu0 %v466
          %723 = vmatpush.msra.mxu0 %v462
          %724 = vmatpush.msra.mxu0 %v458
          %725 = vmatpush.msra.mxu0 %v454
          %726 = vmatpush.msra.mxu0 %v450
          %727 = vmatpush.msra.mxu0 %v446
          %728 = vmatpush.msra.mxu0 %v442
          %729 = vmatpush.msra.mxu0 %v438
          %730 = vmatmul.f32.gmra.mxu0 %v369
          %v731 = vpop.f32.mrf.mxu0
          %v732 = vadd.f32 %v712, %v731
          %733 = vdwg.mxu0
          %734 = vmatpush.msra.mxu0 %v562
          %735 = vmatpush.msra.mxu0 %v558
          %736 = vmatpush.msra.mxu0 %v554
          %737 = vmatpush.msra.mxu0 %v550
          %738 = vmatpush.msra.mxu0 %v546
          %739 = vmatpush.msra.mxu0 %v542
          %740 = vmatpush.msra.mxu0 %v538
          %741 = vmatpush.msra.mxu0 %v534
          %742 = vmatpush.msra.mxu0 %v530
          %743 = vmatpush.msra.mxu0 %v526
          %744 = vmatpush.msra.mxu0 %v522
          %745 = vmatpush.msra.mxu0 %v518
          %746 = vmatpush.msra.mxu0 %v514
          %747 = vmatpush.msra.mxu0 %v510
          %748 = vmatpush.msra.mxu0 %v506
          %749 = vmatpush.msra.mxu0 %v502
          %750 = vmatmul.f32.gmra.mxu0 %v370
          %v751 = vpop.f32.mrf.mxu0
          %v752 = vadd.f32 %v732, %v751
          %753 = vdwg.mxu0
          %754 = vmatpush.msra.mxu0 %v435
          %755 = vmatpush.msra.mxu0 %v431
          %756 = vmatpush.msra.mxu0 %v427
          %757 = vmatpush.msra.mxu0 %v423
          %758 = vmatpush.msra.mxu0 %v419
          %759 = vmatpush.msra.mxu0 %v415
          %760 = vmatpush.msra.mxu0 %v411
          %761 = vmatpush.msra.mxu0 %v407
          %762 = vmatpush.msra.mxu0 %v403
          %763 = vmatpush.msra.mxu0 %v399
          %764 = vmatpush.msra.mxu0 %v395
          %765 = vmatpush.msra.mxu0 %v391
          %766 = vmatpush.msra.mxu0 %v387
          %767 = vmatpush.msra.mxu0 %v383
          %768 = vmatpush.msra.mxu0 %v379
          %769 = vmatpush.msra.mxu0 %v375
          %770 = vmatmul.f32.gmra.mxu0 %v368
          %v771 = vpop.f32.mrf.mxu0
          %v772 = vadd.f32 %v569, %v771
          %773 = vdwg.mxu0
          %774 = vmatpush.msra.mxu0 %v499
          %775 = vmatpush.msra.mxu0 %v495
          %776 = vmatpush.msra.mxu0 %v491
          %777 = vmatpush.msra.mxu0 %v487
          %778 = vmatpush.msra.mxu0 %v483
          %779 = vmatpush.msra.mxu0 %v479
          %780 = vmatpush.msra.mxu0 %v475
          %781 = vmatpush.msra.mxu0 %v471
          %782 = vmatpush.msra.mxu0 %v467
          %783 = vmatpush.msra.mxu0 %v463
          %784 = vmatpush.msra.mxu0 %v459
          %785 = vmatpush.msra.mxu0 %v455
          %786 = vmatpush.msra.mxu0 %v451
          %787 = vmatpush.msra.mxu0 %v447
          %788 = vmatpush.msra.mxu0 %v443
          %789 = vmatpush.msra.mxu0 %v439
          %790 = vmatmul.f32.gmra.mxu0 %v369
          %v791 = vpop.f32.mrf.mxu0
          %v792 = vadd.f32 %v772, %v791
          %793 = vdwg.mxu0
          %794 = vmatpush.msra.mxu0 %v563
          %795 = vmatpush.msra.mxu0 %v559
          %796 = vmatpush.msra.mxu0 %v555
          %797 = vmatpush.msra.mxu0 %v551
          %798 = vmatpush.msra.mxu0 %v547
          %799 = vmatpush.msra.mxu0 %v543
          %800 = vmatpush.msra.mxu0 %v539
          %801 = vmatpush.msra.mxu0 %v535
          %802 = vmatpush.msra.mxu0 %v531
          %803 = vmatpush.msra.mxu0 %v527
          %804 = vmatpush.msra.mxu0 %v523
          %805 = vmatpush.msra.mxu0 %v519
          %806 = vmatpush.msra.mxu0 %v515
          %807 = vmatpush.msra.mxu0 %v511
          %808 = vmatpush.msra.mxu0 %v507
          %809 = vmatpush.msra.mxu0 %v503
          %810 = vmatmul.f32.gmra.mxu0 %v370
          %v811 = vpop.f32.mrf.mxu0
          %v812 = vadd.f32 %v792, %v811
          %813 = vdwg.mxu0
          %v814 = vxor.u32 %v632, 2147483648
          %v815 = vmul.f32 %v814, 1.442695
          %v816 = vpow.pop %v815
          %v817 = vadd.f32 %v816, 1.0
          %v818 = vrcp.pop %v817
          %v819 = vmul.f32 %v817, %v818
          %v820 = vsub.f32 1.0, %v819
          %v821 = vmul.f32 %v818, %v820
          %v822 = vadd.f32 %v818, %v821
          %vm823 = vweird.f32 %v817
          %vm824 = vweird.f32 %v818
          %vm825 = vmor %vm823, %vm824
          %v826 = vsel %vm825, %v818, %v822
          %v827 = vand.u32 2147483647, %v817
          %vm828 = vcmp.eq.f32.partialorder %v827, 8.507059e+37
          %v829 = vand.u32 %v817, 2147483648
          %v830 = vor.u32 1.1754944e-38, %v829
          %v831 = vsel %vm828, %v830, %v826
          %v832 = vmul.f32 1.0, %v831
          %v833 = vxor.u32 %v692, 2147483648
          %v834 = vmul.f32 %v833, 1.442695
          %v835 = vpow.pop %v834
          %v836 = vadd.f32 %v835, 1.0
          %v837 = vrcp.pop %v836
          %v838 = vmul.f32 %v836, %v837
          %v839 = vsub.f32 1.0, %v838
          %v840 = vmul.f32 %v837, %v839
          %v841 = vadd.f32 %v837, %v840
          %vm842 = vweird.f32 %v836
          %vm843 = vweird.f32 %v837
          %vm844 = vmor %vm842, %vm843
          %v845 = vsel %vm844, %v837, %v841
          %v846 = vand.u32 2147483647, %v836
          %vm847 = vcmp.eq.f32.partialorder %v846, 8.507059e+37
          %v848 = vand.u32 %v836, 2147483648
          %v849 = vor.u32 1.1754944e-38, %v848
          %v850 = vsel %vm847, %v849, %v845
          %v851 = vmul.f32 1.0, %v850
          %v852 = vtanh.pop %v752
          %v853 = vxor.u32 %v812, 2147483648
          %v854 = vmul.f32 %v853, 1.442695
          %v855 = vpow.pop %v854
          %v856 = vadd.f32 %v855, 1.0
          %v857 = vrcp.pop %v856
          %v858 = vmul.f32 %v856, %v857
          %v859 = vsub.f32 1.0, %v858
          %v860 = vmul.f32 %v857, %v859
          %v861 = vadd.f32 %v857, %v860
          %vm862 = vweird.f32 %v856
          %vm863 = vweird.f32 %v857
          %vm864 = vmor %vm862, %vm863
          %v865 = vsel %vm864, %v857, %v861
          %v866 = vand.u32 2147483647, %v856
          %vm867 = vcmp.eq.f32.partialorder %v866, 8.507059e+37
          %v868 = vand.u32 %v856, 2147483648
          %v869 = vor.u32 1.1754944e-38, %v868
          %v870 = vsel %vm867, %v869, %v865
          %v871 = vmul.f32 1.0, %v870
          %v872 = vmul.f32 %v851, %v371
          %v873 = vmul.f32 %v832, %v852
          %v874 = vadd.f32 %v872, %v873
          %v875 = vtanh.pop %v874
          %v876 = vmul.f32 %v871, %v875
          %877 = vst [vmem:[#allocation5] sm:$0xff] %v874
          %878 = vst [vmem:[#allocation4] sm:$0xff] %v876
          %v879 = vld [vmem:[#allocation4 + $0x8] sm:$0xff]
          %v880 = vld [vmem:[#allocation5 + $0x8] sm:$0xff]
          %v881 = vld [vmem:[#allocation17] sm:$0xff]
          %v882 = vld [vmem:[#allocation17 + $0x8] sm:$0xff]
          %v883 = vld [vmem:[#allocation17 + $0x10] sm:$0xff]
          %v884 = vld [vmem:[#allocation17 + $0x18] sm:$0xff]
          %v885 = vld [vmem:[#allocation17 + $0x20] sm:$0xff]
          %v886 = vld [vmem:[#allocation17 + $0x28] sm:$0xff]
          %v887 = vld [vmem:[#allocation17 + $0x30] sm:$0xff]
          %v888 = vld [vmem:[#allocation17 + $0x38] sm:$0xff]
          %v889 = vld [vmem:[#allocation17 + $0x40] sm:$0xff]
          %v890 = vld [vmem:[#allocation17 + $0x48] sm:$0xff]
          %v891 = vld [vmem:[#allocation17 + $0x50] sm:$0xff]
          %v892 = vld [vmem:[#allocation17 + $0x58] sm:$0xff]
          %v893 = vld [vmem:[#allocation17 + $0x60] sm:$0xff]
          %v894 = vld [vmem:[#allocation17 + $0x68] sm:$0xff]
          %v895 = vld [vmem:[#allocation17 + $0x70] sm:$0xff]
          %v896 = vld [vmem:[#allocation17 + $0x78] sm:$0xff]
          %v897 = vld [vmem:[#allocation17 + $0x80] sm:$0xff]
          %v898 = vld [vmem:[#allocation17 + $0x88] sm:$0xff]
          %v899 = vld [vmem:[#allocation17 + $0x90] sm:$0xff]
          %v900 = vld [vmem:[#allocation17 + $0x98] sm:$0xff]
          %v901 = vld [vmem:[#allocation17 + $0xa0] sm:$0xff]
          %v902 = vld [vmem:[#allocation17 + $0xa8] sm:$0xff]
          %v903 = vld [vmem:[#allocation17 + $0xb0] sm:$0xff]
          %v904 = vld [vmem:[#allocation17 + $0xb8] sm:$0xff]
          %v905 = vld [vmem:[#allocation17 + $0xc0] sm:$0xff]
          %v906 = vld [vmem:[#allocation17 + $0xc8] sm:$0xff]
          %v907 = vld [vmem:[#allocation17 + $0xd0] sm:$0xff]
          %v908 = vld [vmem:[#allocation17 + $0xd8] sm:$0xff]
          %v909 = vld [vmem:[#allocation17 + $0xe0] sm:$0xff]
          %v910 = vld [vmem:[#allocation17 + $0xe8] sm:$0xff]
          %v911 = vld [vmem:[#allocation17 + $0xf0] sm:$0xff]
          %v912 = vld [vmem:[#allocation17 + $0xf8] sm:$0xff]
          %v913 = vld [vmem:[#allocation17 + $0x100] sm:$0xff]
          %v914 = vld [vmem:[#allocation17 + $0x108] sm:$0xff]
          %v915 = vld [vmem:[#allocation17 + $0x110] sm:$0xff]
          %v916 = vld [vmem:[#allocation17 + $0x118] sm:$0xff]
          %v917 = vld [vmem:[#allocation17 + $0x120] sm:$0xff]
          %v918 = vld [vmem:[#allocation17 + $0x128] sm:$0xff]
          %v919 = vld [vmem:[#allocation17 + $0x130] sm:$0xff]
          %v920 = vld [vmem:[#allocation17 + $0x138] sm:$0xff]
          %v921 = vld [vmem:[#allocation17 + $0x140] sm:$0xff]
          %v922 = vld [vmem:[#allocation17 + $0x148] sm:$0xff]
          %v923 = vld [vmem:[#allocation17 + $0x150] sm:$0xff]
          %v924 = vld [vmem:[#allocation17 + $0x158] sm:$0xff]
          %v925 = vld [vmem:[#allocation17 + $0x160] sm:$0xff]
          %v926 = vld [vmem:[#allocation17 + $0x168] sm:$0xff]
          %v927 = vld [vmem:[#allocation17 + $0x170] sm:$0xff]
          %v928 = vld [vmem:[#allocation17 + $0x178] sm:$0xff]
          %v929 = vld [vmem:[#allocation17 + $0x180] sm:$0xff]
          %v930 = vld [vmem:[#allocation17 + $0x188] sm:$0xff]
          %v931 = vld [vmem:[#allocation17 + $0x190] sm:$0xff]
          %v932 = vld [vmem:[#allocation17 + $0x198] sm:$0xff]
          %v933 = vld [vmem:[#allocation17 + $0x1a0] sm:$0xff]
          %v934 = vld [vmem:[#allocation17 + $0x1a8] sm:$0xff]
          %v935 = vld [vmem:[#allocation17 + $0x1b0] sm:$0xff]
          %v936 = vld [vmem:[#allocation17 + $0x1b8] sm:$0xff]
          %v937 = vld [vmem:[#allocation17 + $0x1c0] sm:$0xff]
          %v938 = vld [vmem:[#allocation17 + $0x1c8] sm:$0xff]
          %v939 = vld [vmem:[#allocation17 + $0x1d0] sm:$0xff]
          %v940 = vld [vmem:[#allocation17 + $0x1d8] sm:$0xff]
          %v941 = vld [vmem:[#allocation17 + $0x1e0] sm:$0xff]
          %v942 = vld [vmem:[#allocation17 + $0x1e8] sm:$0xff]
          %v943 = vld [vmem:[#allocation17 + $0x1f0] sm:$0xff]
          %v944 = vld [vmem:[#allocation17 + $0x1f8] sm:$0xff]
          %v945 = vld [vmem:[#allocation17 + $0x200] sm:$0xff]
          %v946 = vld [vmem:[#allocation17 + $0x208] sm:$0xff]
          %v947 = vld [vmem:[#allocation17 + $0x210] sm:$0xff]
          %v948 = vld [vmem:[#allocation17 + $0x218] sm:$0xff]
          %v949 = vld [vmem:[#allocation17 + $0x220] sm:$0xff]
          %v950 = vld [vmem:[#allocation17 + $0x228] sm:$0xff]
          %v951 = vld [vmem:[#allocation17 + $0x230] sm:$0xff]
          %v952 = vld [vmem:[#allocation17 + $0x238] sm:$0xff]
          %v953 = vld [vmem:[#allocation17 + $0x240] sm:$0xff]
          %v954 = vld [vmem:[#allocation17 + $0x248] sm:$0xff]
          %v955 = vld [vmem:[#allocation17 + $0x250] sm:$0xff]
          %v956 = vld [vmem:[#allocation17 + $0x258] sm:$0xff]
          %v957 = vld [vmem:[#allocation17 + $0x260] sm:$0xff]
          %v958 = vld [vmem:[#allocation17 + $0x268] sm:$0xff]
          %v959 = vld [vmem:[#allocation17 + $0x270] sm:$0xff]
          %v960 = vld [vmem:[#allocation17 + $0x278] sm:$0xff]
          %v961 = vld [vmem:[#allocation17 + $0x280] sm:$0xff]
          %v962 = vld [vmem:[#allocation17 + $0x288] sm:$0xff]
          %v963 = vld [vmem:[#allocation17 + $0x290] sm:$0xff]
          %v964 = vld [vmem:[#allocation17 + $0x298] sm:$0xff]
          %v965 = vld [vmem:[#allocation17 + $0x2a0] sm:$0xff]
          %v966 = vld [vmem:[#allocation17 + $0x2a8] sm:$0xff]
          %v967 = vld [vmem:[#allocation17 + $0x2b0] sm:$0xff]
          %v968 = vld [vmem:[#allocation17 + $0x2b8] sm:$0xff]
          %v969 = vld [vmem:[#allocation17 + $0x2c0] sm:$0xff]
          %v970 = vld [vmem:[#allocation17 + $0x2c8] sm:$0xff]
          %v971 = vld [vmem:[#allocation17 + $0x2d0] sm:$0xff]
          %v972 = vld [vmem:[#allocation17 + $0x2d8] sm:$0xff]
          %v973 = vld [vmem:[#allocation17 + $0x2e0] sm:$0xff]
          %v974 = vld [vmem:[#allocation17 + $0x2e8] sm:$0xff]
          %v975 = vld [vmem:[#allocation17 + $0x2f0] sm:$0xff]
          %v976 = vld [vmem:[#allocation17 + $0x2f8] sm:$0xff]
          %v977 = vld [vmem:[#allocation17 + $0x300] sm:$0xff]
          %v978 = vld [vmem:[#allocation17 + $0x308] sm:$0xff]
          %v979 = vld [vmem:[#allocation17 + $0x310] sm:$0xff]
          %v980 = vld [vmem:[#allocation17 + $0x318] sm:$0xff]
          %v981 = vld [vmem:[#allocation17 + $0x320] sm:$0xff]
          %v982 = vld [vmem:[#allocation17 + $0x328] sm:$0xff]
          %v983 = vld [vmem:[#allocation17 + $0x330] sm:$0xff]
          %v984 = vld [vmem:[#allocation17 + $0x338] sm:$0xff]
          %v985 = vld [vmem:[#allocation17 + $0x340] sm:$0xff]
          %v986 = vld [vmem:[#allocation17 + $0x348] sm:$0xff]
          %v987 = vld [vmem:[#allocation17 + $0x350] sm:$0xff]
          %v988 = vld [vmem:[#allocation17 + $0x358] sm:$0xff]
          %v989 = vld [vmem:[#allocation17 + $0x360] sm:$0xff]
          %v990 = vld [vmem:[#allocation17 + $0x368] sm:$0xff]
          %v991 = vld [vmem:[#allocation17 + $0x370] sm:$0xff]
          %v992 = vld [vmem:[#allocation17 + $0x378] sm:$0xff]
          %v993 = vld [vmem:[#allocation17 + $0x380] sm:$0xff]
          %v994 = vld [vmem:[#allocation17 + $0x388] sm:$0xff]
          %v995 = vld [vmem:[#allocation17 + $0x390] sm:$0xff]
          %v996 = vld [vmem:[#allocation17 + $0x398] sm:$0xff]
          %v997 = vld [vmem:[#allocation17 + $0x3a0] sm:$0xff]
          %v998 = vld [vmem:[#allocation17 + $0x3a8] sm:$0xff]
          %v999 = vld [vmem:[#allocation17 + $0x3b0] sm:$0xff]
          %v1000 = vld [vmem:[#allocation17 + $0x3b8] sm:$0xff]
          %v1001 = vld [vmem:[#allocation17 + $0x3c0] sm:$0xff]
          %v1002 = vld [vmem:[#allocation17 + $0x3c8] sm:$0xff]
          %v1003 = vld [vmem:[#allocation17 + $0x3d0] sm:$0xff]
          %v1004 = vld [vmem:[#allocation17 + $0x3d8] sm:$0xff]
          %v1005 = vld [vmem:[#allocation17 + $0x3e0] sm:$0xff]
          %v1006 = vld [vmem:[#allocation17 + $0x3e8] sm:$0xff]
          %v1007 = vld [vmem:[#allocation17 + $0x3f0] sm:$0xff]
          %v1008 = vld [vmem:[#allocation17 + $0x3f8] sm:$0xff]
          %v1009 = vld [vmem:[%s6] sm:$0xf]
          %v1011 = vperm.slane %v1009, 0
          %v1012 = vperm.slane %v1009, 1
          %v1013 = vperm.slane %v1009, 2
          %v1014 = vperm.slane %v1009, 3
          %1019 = vmatpush.msra.mxu0 %v941
          %1020 = vmatpush.msra.mxu0 %v937
          %1021 = vmatpush.msra.mxu0 %v933
          %1022 = vmatpush.msra.mxu0 %v929
          %1023 = vmatpush.msra.mxu0 %v925
          %1024 = vmatpush.msra.mxu0 %v921
          %1025 = vmatpush.msra.mxu0 %v917
          %1026 = vmatpush.msra.mxu0 %v913
          %1027 = vmatpush.msra.mxu0 %v909
          %1028 = vmatpush.msra.mxu0 %v905
          %1029 = vmatpush.msra.mxu0 %v901
          %1030 = vmatpush.msra.mxu0 %v897
          %1031 = vmatpush.msra.mxu0 %v893
          %1032 = vmatpush.msra.mxu0 %v889
          %1033 = vmatpush.msra.mxu0 %v885
          %1034 = vmatpush.msra.mxu0 %v881
          %1035 = vmatmul.f32.gmra.mxu0 %v876
          %v1036 = vpop.f32.mrf.mxu0
          %v1037 = vadd.f32 %v1011, %v1036
          %1038 = vdwg.mxu0
          %1039 = vmatpush.msra.mxu0 %v1005
          %1040 = vmatpush.msra.mxu0 %v1001
          %1041 = vmatpush.msra.mxu0 %v997
          %1042 = vmatpush.msra.mxu0 %v993
          %1043 = vmatpush.msra.mxu0 %v989
          %1044 = vmatpush.msra.mxu0 %v985
          %1045 = vmatpush.msra.mxu0 %v981
          %1046 = vmatpush.msra.mxu0 %v977
          %1047 = vmatpush.msra.mxu0 %v973
          %1048 = vmatpush.msra.mxu0 %v969
          %1049 = vmatpush.msra.mxu0 %v965
          %1050 = vmatpush.msra.mxu0 %v961
          %1051 = vmatpush.msra.mxu0 %v957
          %1052 = vmatpush.msra.mxu0 %v953
          %1053 = vmatpush.msra.mxu0 %v949
          %1054 = vmatpush.msra.mxu0 %v945
          %1055 = vmatmul.f32.gmra.mxu0 %v879
          %v1056 = vpop.f32.mrf.mxu0
          %v1057 = vadd.f32 %v1037, %v1056
          %1058 = vdwg.mxu0
          %1059 = vmatpush.msra.mxu0 %v942
          %1060 = vmatpush.msra.mxu0 %v938
          %1061 = vmatpush.msra.mxu0 %v934
          %1062 = vmatpush.msra.mxu0 %v930
          %1063 = vmatpush.msra.mxu0 %v926
          %1064 = vmatpush.msra.mxu0 %v922
          %1065 = vmatpush.msra.mxu0 %v918
          %1066 = vmatpush.msra.mxu0 %v914
          %1067 = vmatpush.msra.mxu0 %v910
          %1068 = vmatpush.msra.mxu0 %v906
          %1069 = vmatpush.msra.mxu0 %v902
          %1070 = vmatpush.msra.mxu0 %v898
          %1071 = vmatpush.msra.mxu0 %v894
          %1072 = vmatpush.msra.mxu0 %v890
          %1073 = vmatpush.msra.mxu0 %v886
          %1074 = vmatpush.msra.mxu0 %v882
          %1075 = vmatmul.f32.gmra.mxu0 %v876
          %v1076 = vpop.f32.mrf.mxu0
          %v1077 = vadd.f32 %v1012, %v1076
          %1078 = vdwg.mxu0
          %1079 = vmatpush.msra.mxu0 %v1006
          %1080 = vmatpush.msra.mxu0 %v1002
          %1081 = vmatpush.msra.mxu0 %v998
          %1082 = vmatpush.msra.mxu0 %v994
          %1083 = vmatpush.msra.mxu0 %v990
          %1084 = vmatpush.msra.mxu0 %v986
          %1085 = vmatpush.msra.mxu0 %v982
          %1086 = vmatpush.msra.mxu0 %v978
          %1087 = vmatpush.msra.mxu0 %v974
          %1088 = vmatpush.msra.mxu0 %v970
          %1089 = vmatpush.msra.mxu0 %v966
          %1090 = vmatpush.msra.mxu0 %v962
          %1091 = vmatpush.msra.mxu0 %v958
          %1092 = vmatpush.msra.mxu0 %v954
          %1093 = vmatpush.msra.mxu0 %v950
          %1094 = vmatpush.msra.mxu0 %v946
          %1095 = vmatmul.f32.gmra.mxu0 %v879
          %v1096 = vpop.f32.mrf.mxu0
          %v1097 = vadd.f32 %v1077, %v1096
          %1098 = vdwg.mxu0
          %1099 = vmatpush.msra.mxu0 %v943
          %1100 = vmatpush.msra.mxu0 %v939
          %1101 = vmatpush.msra.mxu0 %v935
          %1102 = vmatpush.msra.mxu0 %v931
          %1103 = vmatpush.msra.mxu0 %v927
          %1104 = vmatpush.msra.mxu0 %v923
          %1105 = vmatpush.msra.mxu0 %v919
          %1106 = vmatpush.msra.mxu0 %v915
          %1107 = vmatpush.msra.mxu0 %v911
          %1108 = vmatpush.msra.mxu0 %v907
          %1109 = vmatpush.msra.mxu0 %v903
          %1110 = vmatpush.msra.mxu0 %v899
          %1111 = vmatpush.msra.mxu0 %v895
          %1112 = vmatpush.msra.mxu0 %v891
          %1113 = vmatpush.msra.mxu0 %v887
          %1114 = vmatpush.msra.mxu0 %v883
          %1115 = vmatmul.f32.gmra.mxu0 %v876
          %v1116 = vpop.f32.mrf.mxu0
          %v1117 = vadd.f32 %v1013, %v1116
          %1118 = vdwg.mxu0
          %1119 = vmatpush.msra.mxu0 %v1007
          %1120 = vmatpush.msra.mxu0 %v1003
          %1121 = vmatpush.msra.mxu0 %v999
          %1122 = vmatpush.msra.mxu0 %v995
          %1123 = vmatpush.msra.mxu0 %v991
          %1124 = vmatpush.msra.mxu0 %v987
          %1125 = vmatpush.msra.mxu0 %v983
          %1126 = vmatpush.msra.mxu0 %v979
          %1127 = vmatpush.msra.mxu0 %v975
          %1128 = vmatpush.msra.mxu0 %v971
          %1129 = vmatpush.msra.mxu0 %v967
          %1130 = vmatpush.msra.mxu0 %v963
          %1131 = vmatpush.msra.mxu0 %v959
          %1132 = vmatpush.msra.mxu0 %v955
          %1133 = vmatpush.msra.mxu0 %v951
          %1134 = vmatpush.msra.mxu0 %v947
          %1135 = vmatmul.f32.gmra.mxu0 %v879
          %v1136 = vpop.f32.mrf.mxu0
          %v1137 = vadd.f32 %v1117, %v1136
          %1138 = vdwg.mxu0
          %1139 = vmatpush.msra.mxu0 %v944
          %1140 = vmatpush.msra.mxu0 %v940
          %1141 = vmatpush.msra.mxu0 %v936
          %1142 = vmatpush.msra.mxu0 %v932
          %1143 = vmatpush.msra.mxu0 %v928
          %1144 = vmatpush.msra.mxu0 %v924
          %1145 = vmatpush.msra.mxu0 %v920
          %1146 = vmatpush.msra.mxu0 %v916
          %1147 = vmatpush.msra.mxu0 %v912
          %1148 = vmatpush.msra.mxu0 %v908
          %1149 = vmatpush.msra.mxu0 %v904
          %1150 = vmatpush.msra.mxu0 %v900
          %1151 = vmatpush.msra.mxu0 %v896
          %1152 = vmatpush.msra.mxu0 %v892
          %1153 = vmatpush.msra.mxu0 %v888
          %1154 = vmatpush.msra.mxu0 %v884
          %1155 = vmatmul.f32.gmra.mxu0 %v876
          %v1156 = vpop.f32.mrf.mxu0
          %v1157 = vadd.f32 %v1014, %v1156
          %1158 = vdwg.mxu0
          %1159 = vmatpush.msra.mxu0 %v1008
          %1160 = vmatpush.msra.mxu0 %v1004
          %1161 = vmatpush.msra.mxu0 %v1000
          %1162 = vmatpush.msra.mxu0 %v996
          %1163 = vmatpush.msra.mxu0 %v992
          %1164 = vmatpush.msra.mxu0 %v988
          %1165 = vmatpush.msra.mxu0 %v984
          %1166 = vmatpush.msra.mxu0 %v980
          %1167 = vmatpush.msra.mxu0 %v976
          %1168 = vmatpush.msra.mxu0 %v972
          %1169 = vmatpush.msra.mxu0 %v968
          %1170 = vmatpush.msra.mxu0 %v964
          %1171 = vmatpush.msra.mxu0 %v960
          %1172 = vmatpush.msra.mxu0 %v956
          %1173 = vmatpush.msra.mxu0 %v952
          %1174 = vmatpush.msra.mxu0 %v948
          %1175 = vmatmul.f32.gmra.mxu0 %v879
          %v1176 = vpop.f32.mrf.mxu0
          %v1177 = vadd.f32 %v1157, %v1176
          %1178 = vdwg.mxu0
          %v1179 = vxor.u32 %v1057, 2147483648
          %v1180 = vmul.f32 %v1179, 1.442695
          %v1181 = vpow.pop %v1180
          %v1182 = vadd.f32 %v1181, 1.0
          %v1183 = vrcp.pop %v1182
          %v1184 = vmul.f32 %v1182, %v1183
          %v1185 = vsub.f32 1.0, %v1184
          %v1186 = vmul.f32 %v1183, %v1185
          %v1187 = vadd.f32 %v1183, %v1186
          %vm1188 = vweird.f32 %v1182
          %vm1189 = vweird.f32 %v1183
          %vm1190 = vmor %vm1188, %vm1189
          %v1191 = vsel %vm1190, %v1183, %v1187
          %v1192 = vand.u32 2147483647, %v1182
          %vm1193 = vcmp.eq.f32.partialorder %v1192, 8.507059e+37
          %v1194 = vand.u32 %v1182, 2147483648
          %v1195 = vor.u32 1.1754944e-38, %v1194
          %v1196 = vsel %vm1193, %v1195, %v1191
          %v1197 = vmul.f32 1.0, %v1196
          %v1198 = vxor.u32 %v1097, 2147483648
          %v1199 = vmul.f32 %v1198, 1.442695
          %v1200 = vpow.pop %v1199
          %v1201 = vadd.f32 %v1200, 1.0
          %v1202 = vrcp.pop %v1201
          %v1203 = vmul.f32 %v1201, %v1202
          %v1204 = vsub.f32 1.0, %v1203
          %v1205 = vmul.f32 %v1202, %v1204
          %v1206 = vadd.f32 %v1202, %v1205
          %vm1207 = vweird.f32 %v1201
          %vm1208 = vweird.f32 %v1202
          %vm1209 = vmor %vm1207, %vm1208
          %v1210 = vsel %vm1209, %v1202, %v1206
          %v1211 = vand.u32 2147483647, %v1201
          %vm1212 = vcmp.eq.f32.partialorder %v1211, 8.507059e+37
          %v1213 = vand.u32 %v1201, 2147483648
          %v1214 = vor.u32 1.1754944e-38, %v1213
          %v1215 = vsel %vm1212, %v1214, %v1210
          %v1216 = vmul.f32 1.0, %v1215
          %v1217 = vtanh.pop %v1137
          %v1218 = vxor.u32 %v1177, 2147483648
          %v1219 = vmul.f32 %v1218, 1.442695
          %v1220 = vpow.pop %v1219
          %v1221 = vadd.f32 %v1220, 1.0
          %v1222 = vrcp.pop %v1221
          %v1223 = vmul.f32 %v1221, %v1222
          %v1224 = vsub.f32 1.0, %v1223
          %v1225 = vmul.f32 %v1222, %v1224
          %v1226 = vadd.f32 %v1222, %v1225
          %vm1227 = vweird.f32 %v1221
          %vm1228 = vweird.f32 %v1222
          %vm1229 = vmor %vm1227, %vm1228
          %v1230 = vsel %vm1229, %v1222, %v1226
          %v1231 = vand.u32 2147483647, %v1221
          %vm1232 = vcmp.eq.f32.partialorder %v1231, 8.507059e+37
          %v1233 = vand.u32 %v1221, 2147483648
          %v1234 = vor.u32 1.1754944e-38, %v1233
          %v1235 = vsel %vm1232, %v1234, %v1230
          %v1236 = vmul.f32 1.0, %v1235
          %v1237 = vmul.f32 %v1216, %v880
          %v1238 = vmul.f32 %v1197, %v1217
          %v1239 = vadd.f32 %v1237, %v1238
          %v1240 = vtanh.pop %v1239
          %v1241 = vmul.f32 %v1236, %v1240
          %1242 = vst [vmem:[#allocation5 + $0x8] sm:$0xff] %v1239
          %1243 = vst [vmem:[#allocation4 + $0x8] sm:$0xff] %v1241
          %1244 = vst [vmem:[#allocation2] sm:$0xff] %v1241
          %1245 = vst [vmem:[#allocation3] sm:$0xff] 0.0
          %vm1246 = vcmask 7168
          %1247 = vst.msk [vmem:[#allocation6] sm:$0xff] %vm1246, -1e+30
          %1248 = vst.msk [vmem:[#allocation7] sm:$0xff] %vm1246, 0.0
        $region80: #{tpu_custom_call.1} parent=47 // pred_fallthru
          _
        %v1249 = vld [vmem:[#allocation11] sm:$0xff]
        %v1250 = vld [vmem:[#allocation11 + $0x8] sm:$0xff]
        %v1251 = vld [vmem:[#allocation11 + $0x10] sm:$0xff]
        %v1252 = vld [vmem:[#allocation11 + $0x18] sm:$0xff]
        %v1253 = vld [vmem:[#allocation11 + $0x20] sm:$0xff]
        %v1254 = vld [vmem:[#allocation11 + $0x28] sm:$0xff]
        %v1255 = vld [vmem:[#allocation11 + $0x30] sm:$0xff]
        %v1256 = vld [vmem:[#allocation11 + $0x38] sm:$0xff]
        %v1257 = vld [vmem:[#allocation11 + $0x40] sm:$0xff]
        %v1258 = vld [vmem:[#allocation11 + $0x48] sm:$0xff]
        %v1259 = vld [vmem:[#allocation11 + $0x50] sm:$0xff]
        %v1260 = vld [vmem:[#allocation11 + $0x58] sm:$0xff]
        %v1261 = vld [vmem:[#allocation11 + $0x60] sm:$0xff]
        %v1262 = vld [vmem:[#allocation11 + $0x68] sm:$0xff]
        %v1263 = vld [vmem:[#allocation11 + $0x70] sm:$0xff]
        %v1264 = vld [vmem:[#allocation11 + $0x78] sm:$0xff]
        %v1265 = vld [vmem:[#allocation8] sm:$0x1]
        %v1266 = vld [vmem:[#allocation2] sm:$0xff]
        %v1267 = vlaneseq
        %v1268 = vshrl.u32 %v1267, 7
        %v1269 = vperm.slane %v1265, 0
        %vm1270 = vcmp.eq.s32.totalorder %v1268, %v1269
        %v1271 = vld [vmem:[#allocation13] sm:$0xff]
        %v1272 = vld [vmem:[#allocation13 + $0x8] sm:$0xff]
        %v1273 = vld [vmem:[#allocation13 + $0x10] sm:$0xff]
        %v1274 = vld [vmem:[#allocation13 + $0x18] sm:$0xff]
        %v1275 = vld [vmem:[#allocation13 + $0x20] sm:$0xff]
        %v1276 = vld [vmem:[#allocation13 + $0x28] sm:$0xff]
        %v1277 = vld [vmem:[#allocation13 + $0x30] sm:$0xff]
        %v1278 = vld [vmem:[#allocation13 + $0x38] sm:$0xff]
        %v1279 = vld [vmem:[#allocation13 + $0x40] sm:$0xff]
        %v1280 = vld [vmem:[#allocation13 + $0x48] sm:$0xff]
        %v1281 = vld [vmem:[#allocation13 + $0x50] sm:$0xff]
        %v1282 = vld [vmem:[#allocation13 + $0x58] sm:$0xff]
        %v1283 = vld [vmem:[#allocation13 + $0x60] sm:$0xff]
        %v1284 = vld [vmem:[#allocation13 + $0x68] sm:$0xff]
        %v1285 = vld [vmem:[#allocation13 + $0x70] sm:$0xff]
        %v1286 = vld [vmem:[#allocation13 + $0x78] sm:$0xff]
        %1287 = vmatpush.msra.mxu0 %v1286
        %1288 = vmatpush.msra.mxu0 %v1285
        %1289 = vmatpush.msra.mxu0 %v1284
        %1290 = vmatpush.msra.mxu0 %v1283
        %1291 = vmatpush.msra.mxu0 %v1282
        %1292 = vmatpush.msra.mxu0 %v1281
        %1293 = vmatpush.msra.mxu0 %v1280
        %1294 = vmatpush.msra.mxu0 %v1279
        %1295 = vmatpush.msra.mxu0 %v1278
        %1296 = vmatpush.msra.mxu0 %v1277
        %1297 = vmatpush.msra.mxu0 %v1276
        %1298 = vmatpush.msra.mxu0 %v1275
        %1299 = vmatpush.msra.mxu0 %v1274
        %1300 = vmatpush.msra.mxu0 %v1273
        %1301 = vmatpush.msra.mxu0 %v1272
        %1302 = vmatpush.msra.mxu0 %v1271
        %1303 = vmatmul.f32.gmra.mxu0 %v1266
        %v1304 = vpop.f32.mrf.mxu0
        %v1305 = vadd.f32 0.0, %v1304
        %1306 = vdwg.mxu0
        %v1307 = vsel %vm1270, %v1305, -1e+30
        %v1308 = vld [vmem:[#allocation6] sm:$0xff]
        %1309 = vmax.xlane.f32.xlu0 %v1307
        %v1310 = vpop.xlane.xlu0 %1309
        %v1311 = vmax.f32 %v1308, %v1310
        %v1312 = vsub.f32 %v1308, %v1311
        %v1313 = vmul.f32 %v1312, 1.442695
        %v1314 = vpow.pop %v1313
        %1316 = vset.pattern.permute.xlu0 0
        %1317 = vperm.xlu0 %1316, %v1311
        %v1318 = vpop.permute.xlu0 %1317
        %v1320 = vsub.f32 %v1307, %v1318
        %v1321 = vmul.f32 %v1320, 1.442695
        %v1322 = vpow.pop %v1321
        %v1323 = vsel %vm1270, %v1322, 0.0
        %v1324 = vld [vmem:[#allocation7] sm:$0xff]
        %v1325 = vmul.f32 %v1314, %v1324
        %1326 = vadd.xlane.f32.xlu0 %v1323
        %v1327 = vpop.xlane.xlu0 %1326
        %v1328 = vadd.f32 %v1325, %v1327
        %vm1329 = vcmask 7168
        %1330 = vst.msk [vmem:[#allocation7] sm:$0xff] %vm1329, %v1328
        %v1331 = vld [vmem:[#allocation3] sm:$0xff]
        %1333 = vset.pattern.permute.xlu0 0
        %1334 = vperm.xlu0 %1333, %v1314
        %v1335 = vpop.permute.xlu0 %1334
        %v1337 = vmul.f32 %v1335, %v1331
        %1338 = vmatpush.msra.mxu0 %v1264
        %1339 = vmatpush.msra.mxu0 %v1263
        %1340 = vmatpush.msra.mxu0 %v1262
        %1341 = vmatpush.msra.mxu0 %v1261
        %1342 = vmatpush.msra.mxu0 %v1260
        %1343 = vmatpush.msra.mxu0 %v1259
        %1344 = vmatpush.msra.mxu0 %v1258
        %1345 = vmatpush.msra.mxu0 %v1257
        %1346 = vmatpush.msra.mxu0 %v1256
        %1347 = vmatpush.msra.mxu0 %v1255
        %1348 = vmatpush.msra.mxu0 %v1254
        %1349 = vmatpush.msra.mxu0 %v1253
        %1350 = vmatpush.msra.mxu0 %v1252
        %1351 = vmatpush.msra.mxu0 %v1251
        %1352 = vmatpush.msra.mxu0 %v1250
        %1353 = vmatpush.msra.mxu0 %v1249
        %1354 = vmatmul.f32.gmra.mxu0 %v1323
        %v1355 = vpop.f32.mrf.mxu0
        %v1356 = vadd.f32 0.0, %v1355
        %1357 = vdwg.mxu0
        %v1358 = vadd.f32 %v1337, %v1356
        %1359 = vst [vmem:[#allocation3] sm:$0xff] %v1358
        %1360 = vst.msk [vmem:[#allocation6] sm:$0xff] %vm1329, %v1311
        // Predicated region
        $region81: #{tpu_custom_call.1} parent=47 // pred_check
          %p1361 = pneg %p354
        $region82: #{tpu_custom_call.1} parent=47 // pred_check_branch
          %1363 = sbr.rel (%p1361) target = $region84
        $region83: #{tpu_custom_call.1} parent=47 // pred_region
          %v1364 = vld [vmem:[#allocation7] sm:$0xff]
          %vm1365 = vcmp.gt.f32.partialorder %v1364, 0.0
          %v1366 = vsel %vm1365, %v1364, 1.0
          %v1367 = vld [vmem:[#allocation3] sm:$0xff]
          %v1368 = vrcp.pop %v1366
          %1370 = vset.pattern.permute.xlu0 0
          %1371 = vperm.xlu0 %1370, %v1368
          %v1372 = vpop.permute.xlu0 %1371
          %v1374 = vmul.f32 %v1367, %v1372
          %1375 = vst [vmem:[#allocation3] sm:$0xff] %v1374
        $region84: #{tpu_custom_call.1} parent=47 // pred_fallthru
          _
        %p1376 = scmp.eq.s32.totalorder %s27, 2
        %p1377 = pnand %p1376, %p354
        %p1378 = pneg %p1377
        // Predicated region
        $region85: #{tpu_custom_call.1} parent=47 // pred_check
          _
        $region86: #{tpu_custom_call.1} parent=47 // pred_check_branch
          %1380 = sbr.rel (%p1377) target = $region88
        $region87: #{tpu_custom_call.1} parent=47 // pred_region
          %v1381 = vld [vmem:[#allocation2] sm:$0xff]
          %1382 = vst [vmem:[#allocation19] sm:$0xff] %v1381
          %v1383 = vld [vmem:[#allocation3] sm:$0xff]
          %1384 = vst [vmem:[#allocation19 + $0x8] sm:$0xff] %v1383
        $region88: #{tpu_custom_call.1} parent=47 // pred_fallthru
          _
        // Predicated region
        $region89: #{tpu_custom_call.1} parent=47 // pred_check
          %p1385 = pneg %p195
        $region90: #{tpu_custom_call.1} parent=47 // pred_check_branch
          %1387 = sbr.rel (%p1385) target = $region92
        $region91: #{tpu_custom_call.1} parent=47 // pred_region
          %1389 = vsyncadd [#allocation10], 0
          %s1391 = sshll.u32 [#allocation19], 4
          %s1392 = int_to_ptr.vmem [resolvable:$true] %s1391
          %s1393 = sshll.u32 %s7, 4
          %s1394 = int_to_ptr.hbm [resolvable:$true] %s1393
          %1396 = dma.vmem_to_hbm [thread:$0]  %s1392, 256, %s1394, [#allocation10]
        $region92: #{tpu_custom_call.1} parent=47 // pred_fallthru
          _
        // Predicated region
        $region93: #{tpu_custom_call.1} parent=47 // pred_check
          %p1397 = pneg %p195
        $region94: #{tpu_custom_call.1} parent=47 // pred_check_branch
          %1399 = sbr.rel (%p1397) target = $region96
        $region95: #{tpu_custom_call.1} parent=47 // pred_region
          %1401 = dma.done [#allocation10], 256
        $region96: #{tpu_custom_call.1} parent=47 // pred_fallthru
          _
      $region48: #{tpu_custom_call.1} parent=5 // pred_fallthru
        _
      %p1402 = scmp.le.s32.totalorder 2, %s18
      // Predicated region
      $region97: #{tpu_custom_call.1} parent=5 // pred_check
        %p1403 = pneg %p1402
      $region98: #{tpu_custom_call.1} parent=5 // pred_check_branch
        %1405 = sbr.rel (%p1403) target = $region100
      $region99: #{tpu_custom_call.1} parent=5 // pred_region
        %s1406 = ssub.s32 %s18, 2
      $region100: #{tpu_custom_call.1} parent=5 // pred_fallthru
        _
    $region6: #{tpu_custom_call.1} parent=1 // loop_footer
      %s22 = sadd.s32 1, %s18
    $region7: #{tpu_custom_call.1} parent=1 // loop_footer_branch
      %17 = sbr.rel target = $region3
    $region8: #{tpu_custom_call.1} parent=1 // loop_exit
      _
    %1407 = vsyncpa [#allocation9], 1
    %s1408 = scalar_lea.sflag [#allocation9], 1
    %1409 = vsyncpa %s1408, 1
    %1410 = vsyncpa [#allocation12], 1
    %1411 = vsyncpa [#allocation15], 1
    %1412 = vsyncpa [#allocation18], 1
    %1413 = vsyncpa [#allocation10], 1
    %s1414 = scalar_lea.sflag [#allocation10], 1
    %1415 = vsyncpa %s1414, 1

</llo_original>
